<compile_context>
chip_gen: v5e
topology: v5e:2x2
jax: 0.10.0
libtpu: 0.0.40
codegen_flags: <defaults>
</compile_context>

<pallas_src>
import numpy as np

import jax
import jax.numpy as jnp
from jax import lax
from jax.experimental import pallas as pl
from jax.experimental.pallas import tpu as pltpu


# ----------------------------- in-kernel building blocks ------------------------------

def _conv_pool_cols(src_ref, w_ref, b_ref, acc_ref, dst_ref, m_rows):
    """Toeplitz conv (5 kh taps) + bias + ReLU + horizontal half of the 2x2 max-pool.

    src_ref : (>= m_rows + 4, 128)  input rows (row r of image b at r = b*H + h)
    w_ref   : (5, 128, 256)         packed Toeplitz weights; even/odd output columns live
                                    in the two 128-lane halves of the N=256 output
    b_ref   : (1, 256)              packed bias
    acc_ref : (>= m_rows, 256)      f32 scratch accumulator
    dst_ref : (>= m_rows, 128)      row r <- max(even col, odd col) of conv output row r
    """
    f32 = jnp.float32
    acc_ref[pl.ds(0, m_rows), :] = jnp.dot(
        src_ref[pl.ds(0, m_rows), :], w_ref[0], preferred_element_type=f32)
    for kh in range(1, 5):
        acc_ref[pl.ds(0, m_rows), :] += jnp.dot(
            src_ref[pl.ds(kh, m_rows), :], w_ref[kh], preferred_element_type=f32)
    y = jnp.maximum(acc_ref[pl.ds(0, m_rows), :] + b_ref[...], 0.0)
    dst_ref[pl.ds(0, m_rows), :] = jnp.maximum(y[:, :128], y[:, 128:])


def _pool_rows(src_ref, dst_ref, n_out):
    """Vertical half of the 2x2 max-pool: row-pair max via stride-2 sublane reads."""
    dst_ref[...] = jnp.maximum(src_ref[pl.ds(0, n_out, 2), :],
                               src_ref[pl.ds(1, n_out, 2), :])


# ----------------------------- fused Pallas kernel ------------------------------

def _lenet_kernel(x_ref, w1_ref, b1_ref, w2_ref, b2_ref,
                  wf1_ref, bf1_ref, wf2_ref, bf2_ref, wf3_ref, bf3_ref,
                  out_ref, acc_ref, c1_ref, p1_ref, c2_ref, p2_ref):
    f32 = jnp.float32
    bb = out_ref.shape[0]            # images in this batch block
    m1 = bb * 32 - 4                 # conv1 row slots computed (28 valid per image)
    m2 = bb * 16 - 4                 # conv2 row slots computed (10 valid per image)

    # One-time init: the 4 never-written tail rows of the conv scratches only feed pooled
    # rows that are themselves discarded, but keep them deterministic.
    @pl.when(pl.program_id(0) == 0)
    def _():
        c1_ref[pl.ds(m1, 4), :] = jnp.zeros((4, 128), f32)
        c2_ref[pl.ds(m2, 4), :] = jnp.zeros((4, 128), f32)

    # ---- conv1 + ReLU + 2x2 max-pool ------------------------------------------------
    _conv_pool_cols(x_ref, w1_ref, b1_ref, acc_ref, c1_ref, m1)
    _pool_rows(c1_ref, p1_ref, bb * 16)

    # ---- conv2 + ReLU + 2x2 max-pool (reads pooled conv1 straight from VMEM) ---------
    _conv_pool_cols(p1_ref, w2_ref, b2_ref, acc_ref, c2_ref, m2)
    _pool_rows(c2_ref, p2_ref, bb * 8)

    # ---- fc1 (gathers the 5 valid pooled rows per image) + fc2 + fc3 -----------------
    h = jnp.dot(p2_ref[pl.ds(0, bb, 8), :], wf1_ref[0], preferred_element_type=f32)
    for ph in range(1, 5):
        h = h + jnp.dot(p2_ref[pl.ds(ph, bb, 8), :], wf1_ref[ph],
                        preferred_element_type=f32)
    h = jnp.maximum(h + bf1_ref[...], 0.0)                           # (bb, 128), 120 valid
    h = jnp.maximum(jnp.dot(h, wf2_ref[...], preferred_element_type=f32)
                    + bf2_ref[...], 0.0)                             # (bb, 128), 84 valid
    out_ref[...] = (jnp.dot(h, wf3_ref[...], preferred_element_type=f32)
                    + bf3_ref[...]).astype(out_ref.dtype)            # (bb, 128), 10 valid


# --------------------------------- forward ------------------------------------

def net_forward(packed, x, *, batch_block=8):
    """x: (B, 3, 32, 32) NCHW float32 -> logits (B, 10)."""
    B = x.shape[0]
    bb = batch_block
    n_blocks = -(-B // bb)
    Bp = n_blocks * bb

    # Stage input: rows = (image, h), lanes = w*3 + ci, padded 96 -> 128 lanes; batch
    # padded to a multiple of the block.
    # TODO(synk): fold this single transpose/pad staging pass into the kernel (accept
    # NHWC / 96-lane blocks) to drop one extra HBM round trip of the input at large batch.
    xr = x.transpose(0, 2, 3, 1).reshape(B * 32, 96)
    xr = jnp.pad(xr, ((0, (Bp - B) * 32), (0, 32)))

    def resident(arr):   # whole operand resident in VMEM: constant index_map, fetched once
        return pl.BlockSpec(arr.shape, lambda i, n=arr.ndim: (0,) * n)

    weight_keys = ("w1", "b1", "w2", "b2", "wf1", "bf1", "wf2", "bf2", "wf3", "bf3")
    out = pl.pallas_call(
        _lenet_kernel,
        out_shape=jax.ShapeDtypeStruct((Bp, 128), jnp.float32),
        grid=(n_blocks,),
        in_specs=[pl.BlockSpec((bb * 32, 128), lambda i: (i, 0))]
                 + [resident(packed[k]) for k in weight_keys],
        out_specs=pl.BlockSpec((bb, 128), lambda i: (i, 0)),
        scratch_shapes=[
            pltpu.VMEM((bb * 32, 256), jnp.float32),   # conv matmul accumulator (shared)
            pltpu.VMEM((bb * 32, 128), jnp.float32),   # conv1 (ReLU + column-pooled)
            pltpu.VMEM((bb * 16, 128), jnp.float32),   # pooled conv1
            pltpu.VMEM((bb * 16, 128), jnp.float32),   # conv2 (ReLU + column-pooled)
            pltpu.VMEM((bb * 8, 128), jnp.float32),    # pooled conv2
        ],
        compiler_params=pltpu.CompilerParams(
            dimension_semantics=("parallel",),
            vmem_limit_bytes=48 * 1024 * 1024),
    )(xr, *[packed[k] for k in weight_keys])
    return out[:B, :10]


net_forward_jit = jax.jit(net_forward, static_argnames=("batch_block",))


# ------------------------------ parameters ------------------------------------

def init_params(key):
    """Raw parameters in the PyTorch module's layout (Conv2d: (O,I,KH,KW); Linear: (out,in))."""
    ks = jax.random.split(key, 10)

    def unif(k, shape, fan_in):
        bound = 1.0 / float(np.sqrt(fan_in))
        return jax.random.uniform(k, shape, jnp.float32, -bound, bound)

    return {
        "conv1_w": unif(ks[0], (6, 3, 5, 5), 3 * 5 * 5),
        "conv1_b": unif(ks[1], (6,), 3 * 5 * 5),
        "conv2_w": unif(ks[2], (16, 6, 5, 5), 6 * 5 * 5),
        "conv2_b": unif(ks[3], (16,), 6 * 5 * 5),
        "fc1_w": unif(ks[4], (120, 400), 400),
        "fc1_b": unif(ks[5], (120,), 400),
        "fc2_w": unif(ks[6], (84, 120), 120),
        "fc2_b": unif(ks[7], (84,), 120),
        "fc3_w": unif(ks[8], (10, 84), 84),
        "fc3_b": unif(ks[9], (10,), 84),
    }


def pack_params(raw):
    """One-time packing into the kernel's padded / Toeplitz layouts (hoisted out of forward)."""
    w1 = np.asarray(raw["conv1_w"], np.float32)
    b1 = np.asarray(raw["conv1_b"], np.float32)
    w2 = np.asarray(raw["conv2_w"], np.float32)
    b2 = np.asarray(raw["conv2_b"], np.float32)

    # conv1 Toeplitz: rows = w*3 + ci (K padded 96->128), cols = dw*128 + co*16 + pw,
    # where ow = 2*pw + dw (even/odd output column in the two 128-lane halves).
    T1 = np.zeros((5, 128, 256), np.float32)
    for kh in range(5):
        for kw in range(5):
            for ow in range(28):
                wpos = ow + kw
                pw, dw = ow // 2, ow % 2
                for co in range(6):
                    T1[kh, wpos * 3:wpos * 3 + 3, dw * 128 + co * 16 + pw] = w1[co, :, kh, kw]
    B1 = np.zeros((1, 256), np.float32)
    for dw in range(2):
        for co in range(6):
            B1[0, dw * 128 + co * 16: dw * 128 + (co + 1) * 16] = b1[co]

    # conv2 Toeplitz: rows = ci*16 + w (= pool1 output column layout), cols = dw*128 + co*8 + pw.
    T2 = np.zeros((5, 128, 256), np.float32)
    ci_rows = np.arange(6) * 16
    for kh in range(5):
        for kw in range(5):
            for ow in range(10):
                wpos = ow + kw
                pw, dw = ow // 2, ow % 2
                for co in range(16):
                    T2[kh, ci_rows + wpos, dw * 128 + co * 8 + pw] = w2[co, :, kh, kw]
    B2 = np.zeros((1, 256), np.float32)
    for dw in range(2):
        for co in range(16):
            B2[0, dw * 128 + co * 8: dw * 128 + (co + 1) * 8] = b2[co]

    # fc1 split over the 5 pooled rows; rows = co*8 + pw (= pool2 column layout); N padded to 128.
    f1 = np.asarray(raw["fc1_w"], np.float32)               # (120, 400), feature = co*25 + ph*5 + pw
    F1 = np.zeros((5, 128, 128), np.float32)
    for ph in range(5):
        for co in range(16):
            for pw in range(5):
                F1[ph, co * 8 + pw, :120] = f1[:, co * 25 + ph * 5 + pw]
    BF1 = np.zeros((1, 128), np.float32)
    BF1[0, :120] = np.asarray(raw["fc1_b"], np.float32)

    F2 = np.zeros((128, 128), np.float32)
    F2[:120, :84] = np.asarray(raw["fc2_w"], np.float32).T
    BF2 = np.zeros((1, 128), np.float32)
    BF2[0, :84] = np.asarray(raw["fc2_b"], np.float32)

    F3 = np.zeros((128, 128), np.float32)
    F3[:84, :10] = np.asarray(raw["fc3_w"], np.float32).T
    BF3 = np.zeros((1, 128), np.float32)
    BF3[0, :10] = np.asarray(raw["fc3_b"], np.float32)

    return {
        "w1": jnp.asarray(T1), "b1": jnp.asarray(B1),
        "w2": jnp.asarray(T2), "b2": jnp.asarray(B2),
        "wf1": jnp.asarray(F1), "bf1": jnp.asarray(BF1),
        "wf2": jnp.asarray(F2), "bf2": jnp.asarray(BF2),
        "wf3": jnp.asarray(F3), "bf3": jnp.asarray(BF3),
    }


# --------------------------- plain-JAX reference (for self-check) ---------------------------

def reference_forward(raw, x):
    dn = ("NCHW", "OIHW", "NCHW")
    y = lax.conv_general_dilated(x, raw["conv1_w"], (1, 1), "VALID", dimension_numbers=dn)
    y = jax.nn.relu(y + raw["conv1_b"][None, :, None, None])
    y = lax.reduce_window(y, -jnp.inf, lax.max, (1, 1, 2, 2), (1, 1, 2, 2), "VALID")
    y = lax.conv_general_dilated(y, raw["conv2_w"], (1, 1), "VALID", dimension_numbers=dn)
    y = jax.nn.relu(y + raw["conv2_b"][None, :, None, None])
    y = lax.reduce_window(y, -jnp.inf, lax.max, (1, 1, 2, 2), (1, 1, 2, 2), "VALID")
    y = y.reshape(y.shape[0], 16 * 5 * 5)
    y = jax.nn.relu(y @ raw["fc1_w"].T + raw["fc1_b"])
    y = jax.nn.relu(y @ raw["fc2_w"].T + raw["fc2_b"])
    return y @ raw["fc3_w"].T + raw["fc3_b"]


if __name__ == "__main__":
    key = jax.random.PRNGKey(0)
    k_params, k_x = jax.random.split(key)
    raw = init_params(k_params)
    packed = pack_params(raw)

    # fc1 expects 16*5*5 features, which forces 3x32x32 (CIFAR-sized) input.  Batch 16
    # with an 8-image block exercises the 2-step batch grid.
    x = jax.random.normal(k_x, (16, 3, 32, 32), dtype=jnp.float32)

    out = net_forward_jit(packed, x, batch_block=8)
    jax.block_until_ready(out)
    assert out.shape == (16, 10) and out.dtype == jnp.float32

    # Numerical self-check against a plain-JAX reference of the PyTorch module.  Both the
    # kernel and the XLA reference run their f32 matmuls at TPU DEFAULT precision (bf16
    # passes), so agreement is bounded by that rather than by f32 matmul error.
    ref = reference_forward(raw, x)
    err = float(jnp.max(jnp.abs(out - ref)))
    assert np.isfinite(err) and err < 2e-2, f"mismatch vs reference: max abs err = {err}"

    print("KERNEL_OK")
</pallas_src>

<mosaic_0001>
module attributes {stable_mosaic.version = 11 : i64} {
  func.func @_lenet_kernel(%arg0: i32, %arg1: memref<256x128xf32, #tpu.memory_space<vmem>>, %arg2: memref<5x128x256xf32, #tpu.memory_space<vmem>>, %arg3: memref<1x256xf32, #tpu.memory_space<vmem>>, %arg4: memref<5x128x256xf32, #tpu.memory_space<vmem>>, %arg5: memref<1x256xf32, #tpu.memory_space<vmem>>, %arg6: memref<5x128x128xf32, #tpu.memory_space<vmem>>, %arg7: memref<1x128xf32, #tpu.memory_space<vmem>>, %arg8: memref<128x128xf32, #tpu.memory_space<vmem>>, %arg9: memref<1x128xf32, #tpu.memory_space<vmem>>, %arg10: memref<128x128xf32, #tpu.memory_space<vmem>>, %arg11: memref<1x128xf32, #tpu.memory_space<vmem>>, %arg12: memref<8x128xf32, #tpu.memory_space<vmem>>, %arg13: memref<256x256xf32, #tpu.memory_space<vmem>>, %arg14: memref<256x128xf32, #tpu.memory_space<vmem>>, %arg15: memref<128x128xf32, #tpu.memory_space<vmem>>, %arg16: memref<128x128xf32, #tpu.memory_space<vmem>>, %arg17: memref<64x128xf32, #tpu.memory_space<vmem>>) attributes {dimension_semantics = [#tpu.dimension_semantics<parallel>], iteration_bounds = array<i64: 2>, scalar_prefetch = 0 : i64, scratch_operands = 5 : i64, tpu.core_type = #tpu.core_type<tc>, window_params = [{transform_indices = @transform_0, window_bounds = array<i64: 256, 128>}, {pipeline_mode = #tpu.pipeline_mode<synchronous>, transform_indices = @transform_1, window_bounds = array<i64: 5, 128, 256>}, {pipeline_mode = #tpu.pipeline_mode<synchronous>, transform_indices = @transform_2, window_bounds = array<i64: 1, 256>}, {pipeline_mode = #tpu.pipeline_mode<synchronous>, transform_indices = @transform_3, window_bounds = array<i64: 5, 128, 256>}, {pipeline_mode = #tpu.pipeline_mode<synchronous>, transform_indices = @transform_4, window_bounds = array<i64: 1, 256>}, {pipeline_mode = #tpu.pipeline_mode<synchronous>, transform_indices = @transform_5, window_bounds = array<i64: 5, 128, 128>}, {pipeline_mode = #tpu.pipeline_mode<synchronous>, transform_indices = @transform_6, window_bounds = array<i64: 1, 128>}, {pipeline_mode = #tpu.pipeline_mode<synchronous>, transform_indices = @transform_7, window_bounds = array<i64: 128, 128>}, {pipeline_mode = #tpu.pipeline_mode<synchronous>, transform_indices = @transform_8, window_bounds = array<i64: 1, 128>}, {pipeline_mode = #tpu.pipeline_mode<synchronous>, transform_indices = @transform_9, window_bounds = array<i64: 128, 128>}, {pipeline_mode = #tpu.pipeline_mode<synchronous>, transform_indices = @transform_10, window_bounds = array<i64: 1, 128>}, {transform_indices = @transform_11, window_bounds = array<i64: 8, 128>}]} {
    %c0_i32 = arith.constant 0 : i32
    %0 = arith.cmpi eq, %arg0, %c0_i32 : i32
    %1 = arith.extui %0 : i1 to i32
    %c0_i32_0 = arith.constant 0 : i32
    %2 = arith.cmpi ne, %1, %c0_i32_0 : i32
    scf.if %2 {
      %cst_163 = arith.constant 0.000000e+00 : f32
      %139 = vector.broadcast %cst_163 : f32 to vector<4x128xf32>
      %c252 = arith.constant 252 : index
      %c0_164 = arith.constant 0 : index
      %140 = vector.load %arg14[%c252, %c0_164] : memref<256x128xf32, #tpu.memory_space<vmem>>, vector<4x128xf32>
      tpu.vector_store %arg14[%c252, %c0_164], %139 {strides = array<i32>} : memref<256x128xf32, #tpu.memory_space<vmem>>, vector<4x128xf32>,
      %cst_165 = arith.constant 0.000000e+00 : f32
      %141 = vector.broadcast %cst_165 : f32 to vector<4x128xf32>
      %c124 = arith.constant 124 : index
      %c0_166 = arith.constant 0 : index
      %142 = vector.load %arg16[%c124, %c0_166] : memref<128x128xf32, #tpu.memory_space<vmem>>, vector<4x128xf32>
      tpu.vector_store %arg16[%c124, %c0_166], %141 {strides = array<i32>} : memref<128x128xf32, #tpu.memory_space<vmem>>, vector<4x128xf32>,
    } else {
    }
    %c0 = arith.constant 0 : index
    %c0_1 = arith.constant 0 : index
    %3 = vector.load %arg1[%c0, %c0_1] : memref<256x128xf32, #tpu.memory_space<vmem>>, vector<252x128xf32>
    %c0_2 = arith.constant 0 : index
    %c0_3 = arith.constant 0 : index
    %c0_4 = arith.constant 0 : index
    %4 = vector.load %arg2[%c0_2, %c0_3, %c0_4] : memref<5x128x256xf32, #tpu.memory_space<vmem>>, vector<1x128x256xf32>
    %5 = vector.shape_cast %4 : vector<1x128x256xf32> to vector<128x256xf32>
    %cst = arith.constant dense<0.000000e+00> : vector<252x256xf32>
    %6 = tpu.matmul %3, %5, %cst {dimension_numbers = #tpu.dot_dimension_numbers<[1], [0], [0], [1], [0, 0, 1, 1], [], []>} : vector<252x128xf32>, vector<128x256xf32>, vector<252x256xf32> -> vector<252x256xf32>
    %c0_5 = arith.constant 0 : index
    %c0_6 = arith.constant 0 : index
    %7 = vector.load %arg13[%c0_5, %c0_6] : memref<256x256xf32, #tpu.memory_space<vmem>>, vector<252x256xf32>
    tpu.vector_store %arg13[%c0_5, %c0_6], %6 {strides = array<i32>} : memref<256x256xf32, #tpu.memory_space<vmem>>, vector<252x256xf32>,
    %c0_7 = arith.constant 0 : index
    %c0_8 = arith.constant 0 : index
    %8 = vector.load %arg13[%c0_7, %c0_8] : memref<256x256xf32, #tpu.memory_space<vmem>>, vector<252x256xf32>
    %c1 = arith.constant 1 : index
    %c0_9 = arith.constant 0 : index
    %9 = vector.load %arg1[%c1, %c0_9] : memref<256x128xf32, #tpu.memory_space<vmem>>, vector<252x128xf32>
    %c1_10 = arith.constant 1 : index
    %c0_11 = arith.constant 0 : index
    %c0_12 = arith.constant 0 : index
    %10 = vector.load %arg2[%c1_10, %c0_11, %c0_12] : memref<5x128x256xf32, #tpu.memory_space<vmem>>, vector<1x128x256xf32>
    %11 = vector.shape_cast %10 : vector<1x128x256xf32> to vector<128x256xf32>
    %cst_13 = arith.constant dense<0.000000e+00> : vector<252x256xf32>
    %12 = tpu.matmul %9, %11, %cst_13 {dimension_numbers = #tpu.dot_dimension_numbers<[1], [0], [0], [1], [0, 0, 1, 1], [], []>} : vector<252x128xf32>, vector<128x256xf32>, vector<252x256xf32> -> vector<252x256xf32>
    %13 = arith.addf %8, %12 : vector<252x256xf32>
    %c0_14 = arith.constant 0 : index
    %c0_15 = arith.constant 0 : index
    %14 = vector.load %arg13[%c0_14, %c0_15] : memref<256x256xf32, #tpu.memory_space<vmem>>, vector<252x256xf32>
    tpu.vector_store %arg13[%c0_14, %c0_15], %13 {strides = array<i32>} : memref<256x256xf32, #tpu.memory_space<vmem>>, vector<252x256xf32>,
    %c0_16 = arith.constant 0 : index
    %c0_17 = arith.constant 0 : index
    %15 = vector.load %arg13[%c0_16, %c0_17] : memref<256x256xf32, #tpu.memory_space<vmem>>, vector<252x256xf32>
    %c2 = arith.constant 2 : index
    %c0_18 = arith.constant 0 : index
    %16 = vector.load %arg1[%c2, %c0_18] : memref<256x128xf32, #tpu.memory_space<vmem>>, vector<252x128xf32>
    %c2_19 = arith.constant 2 : index
    %c0_20 = arith.constant 0 : index
    %c0_21 = arith.constant 0 : index
    %17 = vector.load %arg2[%c2_19, %c0_20, %c0_21] : memref<5x128x256xf32, #tpu.memory_space<vmem>>, vector<1x128x256xf32>
    %18 = vector.shape_cast %17 : vector<1x128x256xf32> to vector<128x256xf32>
    %cst_22 = arith.constant dense<0.000000e+00> : vector<252x256xf32>
    %19 = tpu.matmul %16, %18, %cst_22 {dimension_numbers = #tpu.dot_dimension_numbers<[1], [0], [0], [1], [0, 0, 1, 1], [], []>} : vector<252x128xf32>, vector<128x256xf32>, vector<252x256xf32> -> vector<252x256xf32>
    %20 = arith.addf %15, %19 : vector<252x256xf32>
    %c0_23 = arith.constant 0 : index
    %c0_24 = arith.constant 0 : index
    %21 = vector.load %arg13[%c0_23, %c0_24] : memref<256x256xf32, #tpu.memory_space<vmem>>, vector<252x256xf32>
    tpu.vector_store %arg13[%c0_23, %c0_24], %20 {strides = array<i32>} : memref<256x256xf32, #tpu.memory_space<vmem>>, vector<252x256xf32>,
    %c0_25 = arith.constant 0 : index
    %c0_26 = arith.constant 0 : index
    %22 = vector.load %arg13[%c0_25, %c0_26] : memref<256x256xf32, #tpu.memory_space<vmem>>, vector<252x256xf32>
    %c3 = arith.constant 3 : index
    %c0_27 = arith.constant 0 : index
    %23 = vector.load %arg1[%c3, %c0_27] : memref<256x128xf32, #tpu.memory_space<vmem>>, vector<252x128xf32>
    %c3_28 = arith.constant 3 : index
    %c0_29 = arith.constant 0 : index
    %c0_30 = arith.constant 0 : index
    %24 = vector.load %arg2[%c3_28, %c0_29, %c0_30] : memref<5x128x256xf32, #tpu.memory_space<vmem>>, vector<1x128x256xf32>
    %25 = vector.shape_cast %24 : vector<1x128x256xf32> to vector<128x256xf32>
    %cst_31 = arith.constant dense<0.000000e+00> : vector<252x256xf32>
    %26 = tpu.matmul %23, %25, %cst_31 {dimension_numbers = #tpu.dot_dimension_numbers<[1], [0], [0], [1], [0, 0, 1, 1], [], []>} : vector<252x128xf32>, vector<128x256xf32>, vector<252x256xf32> -> vector<252x256xf32>
    %27 = arith.addf %22, %26 : vector<252x256xf32>
    %c0_32 = arith.constant 0 : index
    %c0_33 = arith.constant 0 : index
    %28 = vector.load %arg13[%c0_32, %c0_33] : memref<256x256xf32, #tpu.memory_space<vmem>>, vector<252x256xf32>
    tpu.vector_store %arg13[%c0_32, %c0_33], %27 {strides = array<i32>} : memref<256x256xf32, #tpu.memory_space<vmem>>, vector<252x256xf32>,
    %c0_34 = arith.constant 0 : index
    %c0_35 = arith.constant 0 : index
    %29 = vector.load %arg13[%c0_34, %c0_35] : memref<256x256xf32, #tpu.memory_space<vmem>>, vector<252x256xf32>
    %c4 = arith.constant 4 : index
    %c0_36 = arith.constant 0 : index
    %30 = vector.load %arg1[%c4, %c0_36] : memref<256x128xf32, #tpu.memory_space<vmem>>, vector<252x128xf32>
    %c4_37 = arith.constant 4 : index
    %c0_38 = arith.constant 0 : index
    %c0_39 = arith.constant 0 : index
    %31 = vector.load %arg2[%c4_37, %c0_38, %c0_39] : memref<5x128x256xf32, #tpu.memory_space<vmem>>, vector<1x128x256xf32>
    %32 = vector.shape_cast %31 : vector<1x128x256xf32> to vector<128x256xf32>
    %cst_40 = arith.constant dense<0.000000e+00> : vector<252x256xf32>
    %33 = tpu.matmul %30, %32, %cst_40 {dimension_numbers = #tpu.dot_dimension_numbers<[1], [0], [0], [1], [0, 0, 1, 1], [], []>} : vector<252x128xf32>, vector<128x256xf32>, vector<252x256xf32> -> vector<252x256xf32>
    %34 = arith.addf %29, %33 : vector<252x256xf32>
    %c0_41 = arith.constant 0 : index
    %c0_42 = arith.constant 0 : index
    %35 = vector.load %arg13[%c0_41, %c0_42] : memref<256x256xf32, #tpu.memory_space<vmem>>, vector<252x256xf32>
    tpu.vector_store %arg13[%c0_41, %c0_42], %34 {strides = array<i32>} : memref<256x256xf32, #tpu.memory_space<vmem>>, vector<252x256xf32>,
    %c0_43 = arith.constant 0 : index
    %c0_44 = arith.constant 0 : index
    %36 = vector.load %arg13[%c0_43, %c0_44] : memref<256x256xf32, #tpu.memory_space<vmem>>, vector<252x256xf32>
    %c0_45 = arith.constant 0 : index
    %c0_46 = arith.constant 0 : index
    %37 = vector.load %arg3[%c0_45, %c0_46] : memref<1x256xf32, #tpu.memory_space<vmem>>, vector<1x256xf32>
    %38 = vector.broadcast %37 : vector<1x256xf32> to vector<252x256xf32>
    %39 = arith.addf %36, %38 : vector<252x256xf32>
    %cst_47 = arith.constant 0.000000e+00 : f32
    %40 = vector.broadcast %cst_47 : f32 to vector<252x256xf32>
    %41 = arith.maximumf %39, %40 : vector<252x256xf32>
    %42 = vector.extract_strided_slice %41 {offsets = [0, 0], sizes = [252, 128], strides = [1, 1]} : vector<252x256xf32> to vector<252x128xf32>
    %43 = vector.extract_strided_slice %41 {offsets = [0, 128], sizes = [252, 128], strides = [1, 1]} : vector<252x256xf32> to vector<252x128xf32>
    %44 = arith.maximumf %42, %43 : vector<252x128xf32>
    %c0_48 = arith.constant 0 : index
    %c0_49 = arith.constant 0 : index
    %45 = vector.load %arg14[%c0_48, %c0_49] : memref<256x128xf32, #tpu.memory_space<vmem>>, vector<252x128xf32>
    tpu.vector_store %arg14[%c0_48, %c0_49], %44 {strides = array<i32>} : memref<256x128xf32, #tpu.memory_space<vmem>>, vector<252x128xf32>,
    %c0_50 = arith.constant 0 : index
    %c0_51 = arith.constant 0 : index
    %46 = tpu.strided_load %arg14[%c0_50, %c0_51] {strides = array<i32: 2, 1>} : memref<256x128xf32, #tpu.memory_space<vmem>>, vector<128x128xf32>
    %c1_52 = arith.constant 1 : index
    %c0_53 = arith.constant 0 : index
    %47 = tpu.strided_load %arg14[%c1_52, %c0_53] {strides = array<i32: 2, 1>} : memref<256x128xf32, #tpu.memory_space<vmem>>, vector<128x128xf32>
    %48 = arith.maximumf %46, %47 : vector<128x128xf32>
    %c0_54 = arith.constant 0 : index
    %c0_55 = arith.constant 0 : index
    %49 = vector.load %arg15[%c0_54, %c0_55] : memref<128x128xf32, #tpu.memory_space<vmem>>, vector<128x128xf32>
    tpu.vector_store %arg15[%c0_54, %c0_55], %48 {strides = array<i32>} : memref<128x128xf32, #tpu.memory_space<vmem>>, vector<128x128xf32>,
    %c0_56 = arith.constant 0 : index
    %c0_57 = arith.constant 0 : index
    %50 = vector.load %arg15[%c0_56, %c0_57] : memref<128x128xf32, #tpu.memory_space<vmem>>, vector<124x128xf32>
    %c0_58 = arith.constant 0 : index
    %c0_59 = arith.constant 0 : index
    %c0_60 = arith.constant 0 : index
    %51 = vector.load %arg4[%c0_58, %c0_59, %c0_60] : memref<5x128x256xf32, #tpu.memory_space<vmem>>, vector<1x128x256xf32>
    %52 = vector.shape_cast %51 : vector<1x128x256xf32> to vector<128x256xf32>
    %cst_61 = arith.constant dense<0.000000e+00> : vector<124x256xf32>
    %53 = tpu.matmul %50, %52, %cst_61 {dimension_numbers = #tpu.dot_dimension_numbers<[1], [0], [0], [1], [0, 0, 1, 1], [], []>} : vector<124x128xf32>, vector<128x256xf32>, vector<124x256xf32> -> vector<124x256xf32>
    %c0_62 = arith.constant 0 : index
    %c0_63 = arith.constant 0 : index
    %54 = vector.load %arg13[%c0_62, %c0_63] : memref<256x256xf32, #tpu.memory_space<vmem>>, vector<124x256xf32>
    tpu.vector_store %arg13[%c0_62, %c0_63], %53 {strides = array<i32>} : memref<256x256xf32, #tpu.memory_space<vmem>>, vector<124x256xf32>,
    %c0_64 = arith.constant 0 : index
    %c0_65 = arith.constant 0 : index
    %55 = vector.load %arg13[%c0_64, %c0_65] : memref<256x256xf32, #tpu.memory_space<vmem>>, vector<124x256xf32>
    %c1_66 = arith.constant 1 : index
    %c0_67 = arith.constant 0 : index
    %56 = vector.load %arg15[%c1_66, %c0_67] : memref<128x128xf32, #tpu.memory_space<vmem>>, vector<124x128xf32>
    %c1_68 = arith.constant 1 : index
    %c0_69 = arith.constant 0 : index
    %c0_70 = arith.constant 0 : index
    %57 = vector.load %arg4[%c1_68, %c0_69, %c0_70] : memref<5x128x256xf32, #tpu.memory_space<vmem>>, vector<1x128x256xf32>
    %58 = vector.shape_cast %57 : vector<1x128x256xf32> to vector<128x256xf32>
    %cst_71 = arith.constant dense<0.000000e+00> : vector<124x256xf32>
    %59 = tpu.matmul %56, %58, %cst_71 {dimension_numbers = #tpu.dot_dimension_numbers<[1], [0], [0], [1], [0, 0, 1, 1], [], []>} : vector<124x128xf32>, vector<128x256xf32>, vector<124x256xf32> -> vector<124x256xf32>
    %60 = arith.addf %55, %59 : vector<124x256xf32>
    %c0_72 = arith.constant 0 : index
    %c0_73 = arith.constant 0 : index
    %61 = vector.load %arg13[%c0_72, %c0_73] : memref<256x256xf32, #tpu.memory_space<vmem>>, vector<124x256xf32>
    tpu.vector_store %arg13[%c0_72, %c0_73], %60 {strides = array<i32>} : memref<256x256xf32, #tpu.memory_space<vmem>>, vector<124x256xf32>,
    %c0_74 = arith.constant 0 : index
    %c0_75 = arith.constant 0 : index
    %62 = vector.load %arg13[%c0_74, %c0_75] : memref<256x256xf32, #tpu.memory_space<vmem>>, vector<124x256xf32>
    %c2_76 = arith.constant 2 : index
    %c0_77 = arith.constant 0 : index
    %63 = vector.load %arg15[%c2_76, %c0_77] : memref<128x128xf32, #tpu.memory_space<vmem>>, vector<124x128xf32>
    %c2_78 = arith.constant 2 : index
    %c0_79 = arith.constant 0 : index
    %c0_80 = arith.constant 0 : index
    %64 = vector.load %arg4[%c2_78, %c0_79, %c0_80] : memref<5x128x256xf32, #tpu.memory_space<vmem>>, vector<1x128x256xf32>
    %65 = vector.shape_cast %64 : vector<1x128x256xf32> to vector<128x256xf32>
    %cst_81 = arith.constant dense<0.000000e+00> : vector<124x256xf32>
    %66 = tpu.matmul %63, %65, %cst_81 {dimension_numbers = #tpu.dot_dimension_numbers<[1], [0], [0], [1], [0, 0, 1, 1], [], []>} : vector<124x128xf32>, vector<128x256xf32>, vector<124x256xf32> -> vector<124x256xf32>
    %67 = arith.addf %62, %66 : vector<124x256xf32>
    %c0_82 = arith.constant 0 : index
    %c0_83 = arith.constant 0 : index
    %68 = vector.load %arg13[%c0_82, %c0_83] : memref<256x256xf32, #tpu.memory_space<vmem>>, vector<124x256xf32>
    tpu.vector_store %arg13[%c0_82, %c0_83], %67 {strides = array<i32>} : memref<256x256xf32, #tpu.memory_space<vmem>>, vector<124x256xf32>,
    %c0_84 = arith.constant 0 : index
    %c0_85 = arith.constant 0 : index
    %69 = vector.load %arg13[%c0_84, %c0_85] : memref<256x256xf32, #tpu.memory_space<vmem>>, vector<124x256xf32>
    %c3_86 = arith.constant 3 : index
    %c0_87 = arith.constant 0 : index
    %70 = vector.load %arg15[%c3_86, %c0_87] : memref<128x128xf32, #tpu.memory_space<vmem>>, vector<124x128xf32>
    %c3_88 = arith.constant 3 : index
    %c0_89 = arith.constant 0 : index
    %c0_90 = arith.constant 0 : index
    %71 = vector.load %arg4[%c3_88, %c0_89, %c0_90] : memref<5x128x256xf32, #tpu.memory_space<vmem>>, vector<1x128x256xf32>
    %72 = vector.shape_cast %71 : vector<1x128x256xf32> to vector<128x256xf32>
    %cst_91 = arith.constant dense<0.000000e+00> : vector<124x256xf32>
    %73 = tpu.matmul %70, %72, %cst_91 {dimension_numbers = #tpu.dot_dimension_numbers<[1], [0], [0], [1], [0, 0, 1, 1], [], []>} : vector<124x128xf32>, vector<128x256xf32>, vector<124x256xf32> -> vector<124x256xf32>
    %74 = arith.addf %69, %73 : vector<124x256xf32>
    %c0_92 = arith.constant 0 : index
    %c0_93 = arith.constant 0 : index
    %75 = vector.load %arg13[%c0_92, %c0_93] : memref<256x256xf32, #tpu.memory_space<vmem>>, vector<124x256xf32>
    tpu.vector_store %arg13[%c0_92, %c0_93], %74 {strides = array<i32>} : memref<256x256xf32, #tpu.memory_space<vmem>>, vector<124x256xf32>,
    %c0_94 = arith.constant 0 : index
    %c0_95 = arith.constant 0 : index
    %76 = vector.load %arg13[%c0_94, %c0_95] : memref<256x256xf32, #tpu.memory_space<vmem>>, vector<124x256xf32>
    %c4_96 = arith.constant 4 : index
    %c0_97 = arith.constant 0 : index
    %77 = vector.load %arg15[%c4_96, %c0_97] : memref<128x128xf32, #tpu.memory_space<vmem>>, vector<124x128xf32>
    %c4_98 = arith.constant 4 : index
    %c0_99 = arith.constant 0 : index
    %c0_100 = arith.constant 0 : index
    %78 = vector.load %arg4[%c4_98, %c0_99, %c0_100] : memref<5x128x256xf32, #tpu.memory_space<vmem>>, vector<1x128x256xf32>
    %79 = vector.shape_cast %78 : vector<1x128x256xf32> to vector<128x256xf32>
    %cst_101 = arith.constant dense<0.000000e+00> : vector<124x256xf32>
    %80 = tpu.matmul %77, %79, %cst_101 {dimension_numbers = #tpu.dot_dimension_numbers<[1], [0], [0], [1], [0, 0, 1, 1], [], []>} : vector<124x128xf32>, vector<128x256xf32>, vector<124x256xf32> -> vector<124x256xf32>
    %81 = arith.addf %76, %80 : vector<124x256xf32>
    %c0_102 = arith.constant 0 : index
    %c0_103 = arith.constant 0 : index
    %82 = vector.load %arg13[%c0_102, %c0_103] : memref<256x256xf32, #tpu.memory_space<vmem>>, vector<124x256xf32>
    tpu.vector_store %arg13[%c0_102, %c0_103], %81 {strides = array<i32>} : memref<256x256xf32, #tpu.memory_space<vmem>>, vector<124x256xf32>,
    %c0_104 = arith.constant 0 : index
    %c0_105 = arith.constant 0 : index
    %83 = vector.load %arg13[%c0_104, %c0_105] : memref<256x256xf32, #tpu.memory_space<vmem>>, vector<124x256xf32>
    %c0_106 = arith.constant 0 : index
    %c0_107 = arith.constant 0 : index
    %84 = vector.load %arg5[%c0_106, %c0_107] : memref<1x256xf32, #tpu.memory_space<vmem>>, vector<1x256xf32>
    %85 = vector.broadcast %84 : vector<1x256xf32> to vector<124x256xf32>
    %86 = arith.addf %83, %85 : vector<124x256xf32>
    %cst_108 = arith.constant 0.000000e+00 : f32
    %87 = vector.broadcast %cst_108 : f32 to vector<124x256xf32>
    %88 = arith.maximumf %86, %87 : vector<124x256xf32>
    %89 = vector.extract_strided_slice %88 {offsets = [0, 0], sizes = [124, 128], strides = [1, 1]} : vector<124x256xf32> to vector<124x128xf32>
    %90 = vector.extract_strided_slice %88 {offsets = [0, 128], sizes = [124, 128], strides = [1, 1]} : vector<124x256xf32> to vector<124x128xf32>
    %91 = arith.maximumf %89, %90 : vector<124x128xf32>
    %c0_109 = arith.constant 0 : index
    %c0_110 = arith.constant 0 : index
    %92 = vector.load %arg16[%c0_109, %c0_110] : memref<128x128xf32, #tpu.memory_space<vmem>>, vector<124x128xf32>
    tpu.vector_store %arg16[%c0_109, %c0_110], %91 {strides = array<i32>} : memref<128x128xf32, #tpu.memory_space<vmem>>, vector<124x128xf32>,
    %c0_111 = arith.constant 0 : index
    %c0_112 = arith.constant 0 : index
    %93 = tpu.strided_load %arg16[%c0_111, %c0_112] {strides = array<i32: 2, 1>} : memref<128x128xf32, #tpu.memory_space<vmem>>, vector<64x128xf32>
    %c1_113 = arith.constant 1 : index
    %c0_114 = arith.constant 0 : index
    %94 = tpu.strided_load %arg16[%c1_113, %c0_114] {strides = array<i32: 2, 1>} : memref<128x128xf32, #tpu.memory_space<vmem>>, vector<64x128xf32>
    %95 = arith.maximumf %93, %94 : vector<64x128xf32>
    %c0_115 = arith.constant 0 : index
    %c0_116 = arith.constant 0 : index
    %96 = vector.load %arg17[%c0_115, %c0_116] : memref<64x128xf32, #tpu.memory_space<vmem>>, vector<64x128xf32>
    tpu.vector_store %arg17[%c0_115, %c0_116], %95 {strides = array<i32>} : memref<64x128xf32, #tpu.memory_space<vmem>>, vector<64x128xf32>,
    %c0_117 = arith.constant 0 : index
    %c0_118 = arith.constant 0 : index
    %97 = tpu.strided_load %arg17[%c0_117, %c0_118] {strides = array<i32: 8, 1>} : memref<64x128xf32, #tpu.memory_space<vmem>>, vector<8x128xf32>
    %c0_119 = arith.constant 0 : index
    %c0_120 = arith.constant 0 : index
    %c0_121 = arith.constant 0 : index
    %98 = vector.load %arg6[%c0_119, %c0_120, %c0_121] : memref<5x128x128xf32, #tpu.memory_space<vmem>>, vector<1x128x128xf32>
    %99 = vector.shape_cast %98 : vector<1x128x128xf32> to vector<128x128xf32>
    %cst_122 = arith.constant dense<0.000000e+00> : vector<8x128xf32>
    %100 = tpu.matmul %97, %99, %cst_122 {dimension_numbers = #tpu.dot_dimension_numbers<[1], [0], [0], [1], [0, 0, 1, 1], [], []>} : vector<8x128xf32>, vector<128x128xf32>, vector<8x128xf32> -> vector<8x128xf32>
    %c1_123 = arith.constant 1 : index
    %c0_124 = arith.constant 0 : index
    %101 = tpu.strided_load %arg17[%c1_123, %c0_124] {strides = array<i32: 8, 1>} : memref<64x128xf32, #tpu.memory_space<vmem>>, vector<8x128xf32>
    %c1_125 = arith.constant 1 : index
    %c0_126 = arith.constant 0 : index
    %c0_127 = arith.constant 0 : index
    %102 = vector.load %arg6[%c1_125, %c0_126, %c0_127] : memref<5x128x128xf32, #tpu.memory_space<vmem>>, vector<1x128x128xf32>
    %103 = vector.shape_cast %102 : vector<1x128x128xf32> to vector<128x128xf32>
    %cst_128 = arith.constant dense<0.000000e+00> : vector<8x128xf32>
    %104 = tpu.matmul %101, %103, %cst_128 {dimension_numbers = #tpu.dot_dimension_numbers<[1], [0], [0], [1], [0, 0, 1, 1], [], []>} : vector<8x128xf32>, vector<128x128xf32>, vector<8x128xf32> -> vector<8x128xf32>
    %105 = arith.addf %100, %104 : vector<8x128xf32>
    %c2_129 = arith.constant 2 : index
    %c0_130 = arith.constant 0 : index
    %106 = tpu.strided_load %arg17[%c2_129, %c0_130] {strides = array<i32: 8, 1>} : memref<64x128xf32, #tpu.memory_space<vmem>>, vector<8x128xf32>
    %c2_131 = arith.constant 2 : index
    %c0_132 = arith.constant 0 : index
    %c0_133 = arith.constant 0 : index
    %107 = vector.load %arg6[%c2_131, %c0_132, %c0_133] : memref<5x128x128xf32, #tpu.memory_space<vmem>>, vector<1x128x128xf32>
    %108 = vector.shape_cast %107 : vector<1x128x128xf32> to vector<128x128xf32>
    %cst_134 = arith.constant dense<0.000000e+00> : vector<8x128xf32>
    %109 = tpu.matmul %106, %108, %cst_134 {dimension_numbers = #tpu.dot_dimension_numbers<[1], [0], [0], [1], [0, 0, 1, 1], [], []>} : vector<8x128xf32>, vector<128x128xf32>, vector<8x128xf32> -> vector<8x128xf32>
    %110 = arith.addf %105, %109 : vector<8x128xf32>
    %c3_135 = arith.constant 3 : index
    %c0_136 = arith.constant 0 : index
    %111 = tpu.strided_load %arg17[%c3_135, %c0_136] {strides = array<i32: 8, 1>} : memref<64x128xf32, #tpu.memory_space<vmem>>, vector<8x128xf32>
    %c3_137 = arith.constant 3 : index
    %c0_138 = arith.constant 0 : index
    %c0_139 = arith.constant 0 : index
    %112 = vector.load %arg6[%c3_137, %c0_138, %c0_139] : memref<5x128x128xf32, #tpu.memory_space<vmem>>, vector<1x128x128xf32>
    %113 = vector.shape_cast %112 : vector<1x128x128xf32> to vector<128x128xf32>
    %cst_140 = arith.constant dense<0.000000e+00> : vector<8x128xf32>
    %114 = tpu.matmul %111, %113, %cst_140 {dimension_numbers = #tpu.dot_dimension_numbers<[1], [0], [0], [1], [0, 0, 1, 1], [], []>} : vector<8x128xf32>, vector<128x128xf32>, vector<8x128xf32> -> vector<8x128xf32>
    %115 = arith.addf %110, %114 : vector<8x128xf32>
    %c4_141 = arith.constant 4 : index
    %c0_142 = arith.constant 0 : index
    %116 = tpu.strided_load %arg17[%c4_141, %c0_142] {strides = array<i32: 8, 1>} : memref<64x128xf32, #tpu.memory_space<vmem>>, vector<8x128xf32>
    %c4_143 = arith.constant 4 : index
    %c0_144 = arith.constant 0 : index
    %c0_145 = arith.constant 0 : index
    %117 = vector.load %arg6[%c4_143, %c0_144, %c0_145] : memref<5x128x128xf32, #tpu.memory_space<vmem>>, vector<1x128x128xf32>
    %118 = vector.shape_cast %117 : vector<1x128x128xf32> to vector<128x128xf32>
    %cst_146 = arith.constant dense<0.000000e+00> : vector<8x128xf32>
    %119 = tpu.matmul %116, %118, %cst_146 {dimension_numbers = #tpu.dot_dimension_numbers<[1], [0], [0], [1], [0, 0, 1, 1], [], []>} : vector<8x128xf32>, vector<128x128xf32>, vector<8x128xf32> -> vector<8x128xf32>
    %120 = arith.addf %115, %119 : vector<8x128xf32>
    %c0_147 = arith.constant 0 : index
    %c0_148 = arith.constant 0 : index
    %121 = vector.load %arg7[%c0_147, %c0_148] : memref<1x128xf32, #tpu.memory_space<vmem>>, vector<1x128xf32>
    %122 = vector.broadcast %121 : vector<1x128xf32> to vector<8x128xf32>
    %123 = arith.addf %120, %122 : vector<8x128xf32>
    %cst_149 = arith.constant 0.000000e+00 : f32
    %124 = vector.broadcast %cst_149 : f32 to vector<8x128xf32>
    %125 = arith.maximumf %123, %124 : vector<8x128xf32>
    %c0_150 = arith.constant 0 : index
    %c0_151 = arith.constant 0 : index
    %126 = vector.load %arg8[%c0_150, %c0_151] : memref<128x128xf32, #tpu.memory_space<vmem>>, vector<128x128xf32>
    %cst_152 = arith.constant dense<0.000000e+00> : vector<8x128xf32>
    %127 = tpu.matmul %125, %126, %cst_152 {dimension_numbers = #tpu.dot_dimension_numbers<[1], [0], [0], [1], [0, 0, 1, 1], [], []>} : vector<8x128xf32>, vector<128x128xf32>, vector<8x128xf32> -> vector<8x128xf32>
    %c0_153 = arith.constant 0 : index
    %c0_154 = arith.constant 0 : index
    %128 = vector.load %arg9[%c0_153, %c0_154] : memref<1x128xf32, #tpu.memory_space<vmem>>, vector<1x128xf32>
    %129 = vector.broadcast %128 : vector<1x128xf32> to vector<8x128xf32>
    %130 = arith.addf %127, %129 : vector<8x128xf32>
    %cst_155 = arith.constant 0.000000e+00 : f32
    %131 = vector.broadcast %cst_155 : f32 to vector<8x128xf32>
    %132 = arith.maximumf %130, %131 : vector<8x128xf32>
    %c0_156 = arith.constant 0 : index
    %c0_157 = arith.constant 0 : index
    %133 = vector.load %arg10[%c0_156, %c0_157] : memref<128x128xf32, #tpu.memory_space<vmem>>, vector<128x128xf32>
    %cst_158 = arith.constant dense<0.000000e+00> : vector<8x128xf32>
    %134 = tpu.matmul %132, %133, %cst_158 {dimension_numbers = #tpu.dot_dimension_numbers<[1], [0], [0], [1], [0, 0, 1, 1], [], []>} : vector<8x128xf32>, vector<128x128xf32>, vector<8x128xf32> -> vector<8x128xf32>
    %c0_159 = arith.constant 0 : index
    %c0_160 = arith.constant 0 : index
    %135 = vector.load %arg11[%c0_159, %c0_160] : memref<1x128xf32, #tpu.memory_space<vmem>>, vector<1x128xf32>
    %136 = vector.broadcast %135 : vector<1x128xf32> to vector<8x128xf32>
    %137 = arith.addf %134, %136 : vector<8x128xf32>
    %c0_161 = arith.constant 0 : index
    %c0_162 = arith.constant 0 : index
    %138 = vector.load %arg12[%c0_161, %c0_162] : memref<8x128xf32, #tpu.memory_space<vmem>>, vector<8x128xf32>
    tpu.vector_store %arg12[%c0_161, %c0_162], %137 {strides = array<i32>} : memref<8x128xf32, #tpu.memory_space<vmem>>, vector<8x128xf32>,
    return
  }
  func.func @transform_0(%arg0: i32) -> (i32, i32) {
    %c0_i32 = arith.constant 0 : i32
    %c0_i32_0 = arith.constant 0 : i32
    return %arg0, %c0_i32 : i32, i32
  }
  func.func @transform_1(%arg0: i32) -> (i32, i32, i32) {
    %c0_i32 = arith.constant 0 : i32
    %c0_i32_0 = arith.constant 0 : i32
    %c0_i32_1 = arith.constant 0 : i32
    %c0_i32_2 = arith.constant 0 : i32
    return %c0_i32, %c0_i32_0, %c0_i32_1 : i32, i32, i32
  }
  func.func @transform_2(%arg0: i32) -> (i32, i32) {
    %c0_i32 = arith.constant 0 : i32
    %c0_i32_0 = arith.constant 0 : i32
    %c0_i32_1 = arith.constant 0 : i32
    return %c0_i32, %c0_i32_0 : i32, i32
  }
  func.func @transform_3(%arg0: i32) -> (i32, i32, i32) {
    %c0_i32 = arith.constant 0 : i32
    %c0_i32_0 = arith.constant 0 : i32
    %c0_i32_1 = arith.constant 0 : i32
    %c0_i32_2 = arith.constant 0 : i32
    return %c0_i32, %c0_i32_0, %c0_i32_1 : i32, i32, i32
  }
  func.func @transform_4(%arg0: i32) -> (i32, i32) {
    %c0_i32 = arith.constant 0 : i32
    %c0_i32_0 = arith.constant 0 : i32
    %c0_i32_1 = arith.constant 0 : i32
    return %c0_i32, %c0_i32_0 : i32, i32
  }
  func.func @transform_5(%arg0: i32) -> (i32, i32, i32) {
    %c0_i32 = arith.constant 0 : i32
    %c0_i32_0 = arith.constant 0 : i32
    %c0_i32_1 = arith.constant 0 : i32
    %c0_i32_2 = arith.constant 0 : i32
    return %c0_i32, %c0_i32_0, %c0_i32_1 : i32, i32, i32
  }
  func.func @transform_6(%arg0: i32) -> (i32, i32) {
    %c0_i32 = arith.constant 0 : i32
    %c0_i32_0 = arith.constant 0 : i32
    %c0_i32_1 = arith.constant 0 : i32
    return %c0_i32, %c0_i32_0 : i32, i32
  }
  func.func @transform_7(%arg0: i32) -> (i32, i32) {
    %c0_i32 = arith.constant 0 : i32
    %c0_i32_0 = arith.constant 0 : i32
    %c0_i32_1 = arith.constant 0 : i32
    return %c0_i32, %c0_i32_0 : i32, i32
  }
  func.func @transform_8(%arg0: i32) -> (i32, i32) {
    %c0_i32 = arith.constant 0 : i32
    %c0_i32_0 = arith.constant 0 : i32
    %c0_i32_1 = arith.constant 0 : i32
    return %c0_i32, %c0_i32_0 : i32, i32
  }
  func.func @transform_9(%arg0: i32) -> (i32, i32) {
    %c0_i32 = arith.constant 0 : i32
    %c0_i32_0 = arith.constant 0 : i32
    %c0_i32_1 = arith.constant 0 : i32
    return %c0_i32, %c0_i32_0 : i32, i32
  }
  func.func @transform_10(%arg0: i32) -> (i32, i32) {
    %c0_i32 = arith.constant 0 : i32
    %c0_i32_0 = arith.constant 0 : i32
    %c0_i32_1 = arith.constant 0 : i32
    return %c0_i32, %c0_i32_0 : i32, i32
  }
  func.func @transform_11(%arg0: i32) -> (i32, i32) {
    %c0_i32 = arith.constant 0 : i32
    %c0_i32_0 = arith.constant 0 : i32
    return %arg0, %c0_i32 : i32, i32
  }
}

</mosaic_0001>

<llo_original>
// kernel: net_forward.1
$region0: #{net_forward.1}
  #allocation0 [shape = 'u32[]', space=smem, size = 0x4, offset = 0x4, fixed_abs, tag = 'smem constant byte address 0x4 - core index']
  #allocation1 [shape = 'u32[72,128]{1,0:T(1,128)}', space=vmem, size = 0x9000, scoped, tag = 'internal scratch']
  #allocation2 [shape = 'f32[256,256]{1,0:T(8,128)}', space=vmem, size = 0x40000, scoped, tag = 'scratch operand']
  #allocation3 [shape = 'f32[256,128]{1,0:T(8,128)}', space=vmem, size = 0x20000, scoped, tag = 'scratch operand']
  #allocation4 [shape = 'f32[128,128]{1,0:T(8,128)}', space=vmem, size = 0x10000, scoped, tag = 'scratch operand']
  #allocation5 [shape = 'f32[128,128]{1,0:T(8,128)}', space=vmem, size = 0x10000, scoped, tag = 'scratch operand']
  #allocation6 [shape = 'f32[64,128]{1,0:T(8,128)}', space=vmem, size = 0x8000, scoped, tag = 'scratch operand']
  %s0 = inlined_call_operand.vmem [shape: f32[512,128], index: 0, kind: input, shape index: {}]
  %s1 = inlined_call_operand.vmem [shape: f32[5,128,256], index: 1, kind: input, shape index: {}]
  %s2 = inlined_call_operand.vmem [shape: f32[1,256], index: 2, kind: input, shape index: {}]
  %s3 = inlined_call_operand.vmem [shape: f32[5,128,256], index: 3, kind: input, shape index: {}]
  %s4 = inlined_call_operand.vmem [shape: f32[1,256], index: 4, kind: input, shape index: {}]
  %s5 = inlined_call_operand.vmem [shape: f32[5,128,128], index: 5, kind: input, shape index: {}]
  %s6 = inlined_call_operand.vmem [shape: f32[1,128], index: 6, kind: input, shape index: {}]
  %s7 = inlined_call_operand.vmem [shape: f32[128,128], index: 7, kind: input, shape index: {}]
  %s8 = inlined_call_operand.vmem [shape: f32[1,128], index: 8, kind: input, shape index: {}]
  %s9 = inlined_call_operand.vmem [shape: f32[128,128], index: 9, kind: input, shape index: {}]
  %s10 = inlined_call_operand.vmem [shape: f32[1,128], index: 10, kind: input, shape index: {}]
  %s11 = inlined_call_operand.hbm [shape: f32[16,128], index: 11, kind: output, shape index: {}]
  %s12 = sld [smem:[#allocation0]]
  $region81: #{net_forward.1} parent=0
    _
  %s14 = ssub.s32 1, %s12
  %s15 = scalar_select 0, %s14, %s12
  $region1: #{net_forward.1} parent=0
    #allocation7 [shape = 'u8[8192]{0}', space=vmem, size = 0x2000, scoped, tag = 'output window, operand 0']
    #allocation8 [shape = 's32[2]{0}', space=sflag, size = 0x8, scoped, tag = 'scoped memory for net_forward.1']
    %16 = vsyncpa [#allocation8], 0
    %s17 = scalar_lea.sflag [#allocation8], 1
    %18 = vsyncpa %s17, 0
    loop: start=0, step=1, limit=4
    $region2: #{net_forward.1} parent=1 // loop_pre_header
      _
    $region3: #{net_forward.1} parent=1 // loop_header
      %s20 = sphi 0, %s24
      %p21 = scmp.ge.s32.totalorder %s20, 4
      %s30 = sphi 0, %s32
      %s33 = sphi 0, %s30
      %s34 = sphi 0, %s33
      %s50 = sphi 0, %s34
      %s54 = sphi 0, %s54
      %s56 = sphi 0, %s54
      %s57 = sphi 0, %s56
      %s71 = sphi 0, %s57
      %s75 = sphi 0, %s75
      %s77 = sphi 0, %s75
      %s78 = sphi 0, %s77
      %s92 = sphi 0, %s78
      %s96 = sphi 0, %s96
      %s98 = sphi 0, %s96
      %s99 = sphi 0, %s98
      %s113 = sphi 0, %s99
      %s117 = sphi 0, %s117
      %s119 = sphi 0, %s117
      %s120 = sphi 0, %s119
      %s134 = sphi 0, %s120
      %s138 = sphi 0, %s138
      %s140 = sphi 0, %s138
      %s141 = sphi 0, %s140
      %s155 = sphi 0, %s141
      %s159 = sphi 0, %s159
      %s161 = sphi 0, %s159
      %s162 = sphi 0, %s161
      %s176 = sphi 0, %s162
      %s180 = sphi 0, %s180
      %s182 = sphi 0, %s180
      %s183 = sphi 0, %s182
      %s197 = sphi 0, %s183
      %s201 = sphi 0, %s201
      %s203 = sphi 0, %s201
      %s204 = sphi 0, %s203
      %s218 = sphi 0, %s204
      %s222 = sphi 0, %s222
      %s224 = sphi 0, %s222
      %s225 = sphi 0, %s224
      %s239 = sphi 0, %s225
      %s243 = sphi 0, %s243
      %s245 = sphi 0, %s243
      %s246 = sphi 0, %s245
      %s260 = sphi 0, %s246
      %s266 = sphi 0, %s268
      %s269 = sphi 0, %s266
      %s270 = sphi 0, %s269
      %s286 = sphi 0, %s270
    $region4: #{net_forward.1} parent=1 // loop_header_branch
      %23 = sbr.rel (%p21) target = $region8
    $region5: #{net_forward.1} parent=1 // loop_body
      %s25 = ssub.s32 %s20, 1
      %s26 = ssub.s32 %s20, 2
      %s27 = sadd.s32 %s20, 1
      %s28 = ssub.s32 %s20, %s27
      %p29 = scmp.eq.s32.totalorder %s28, 0
      %s31 = sadd.s32 %s30, 1
      %s32 = scalar_select %p29, %s30, %s31
      %p35 = pneg %p29
      %p36 = scmp.eq.s32.totalorder %s20, 1
      %p37 = por %p35, %p36
      %p38 = scmp.ne.s32.totalorder %s30, %s33
      %p39 = scmp.eq.s32.totalorder %s20, 0
      %p40 = por %p38, %p39
      %p41 = scmp.ne.s32.totalorder %s30, %s33
      %p42 = scmp.eq.s32.totalorder %s25, 1
      %p43 = por %p41, %p42
      %p44 = scmp.ne.s32.totalorder %s33, %s34
      %p45 = scmp.eq.s32.totalorder %s25, 0
      %p46 = por %p44, %p45
      %p47 = scmp.ne.s32.totalorder %s33, %s34
      %p48 = scmp.eq.s32.totalorder %s26, 1
      %p49 = por %p47, %p48
      %p51 = scmp.ne.s32.totalorder %s34, %s50
      %p52 = scmp.eq.s32.totalorder %s26, 0
      %p53 = por %p51, %p52
      %s55 = sadd.s32 %s54, 1
      %p58 = scmp.eq.s32.totalorder %s20, 1
      %p59 = scmp.ne.s32.totalorder %s54, %s56
      %p60 = scmp.eq.s32.totalorder %s20, 0
      %p61 = por %p59, %p60
      %p62 = scmp.ne.s32.totalorder %s54, %s56
      %p63 = scmp.eq.s32.totalorder %s25, 1
      %p64 = por %p62, %p63
      %p65 = scmp.ne.s32.totalorder %s56, %s57
      %p66 = scmp.eq.s32.totalorder %s25, 0
      %p67 = por %p65, %p66
      %p68 = scmp.ne.s32.totalorder %s56, %s57
      %p69 = scmp.eq.s32.totalorder %s26, 1
      %p70 = por %p68, %p69
      %p72 = scmp.ne.s32.totalorder %s57, %s71
      %p73 = scmp.eq.s32.totalorder %s26, 0
      %p74 = por %p72, %p73
      %s76 = sadd.s32 %s75, 1
      %p79 = scmp.eq.s32.totalorder %s20, 1
      %p80 = scmp.ne.s32.totalorder %s75, %s77
      %p81 = scmp.eq.s32.totalorder %s20, 0
      %p82 = por %p80, %p81
      %p83 = scmp.ne.s32.totalorder %s75, %s77
      %p84 = scmp.eq.s32.totalorder %s25, 1
      %p85 = por %p83, %p84
      %p86 = scmp.ne.s32.totalorder %s77, %s78
      %p87 = scmp.eq.s32.totalorder %s25, 0
      %p88 = por %p86, %p87
      %p89 = scmp.ne.s32.totalorder %s77, %s78
      %p90 = scmp.eq.s32.totalorder %s26, 1
      %p91 = por %p89, %p90
      %p93 = scmp.ne.s32.totalorder %s78, %s92
      %p94 = scmp.eq.s32.totalorder %s26, 0
      %p95 = por %p93, %p94
      %s97 = sadd.s32 %s96, 1
      %p100 = scmp.eq.s32.totalorder %s20, 1
      %p101 = scmp.ne.s32.totalorder %s96, %s98
      %p102 = scmp.eq.s32.totalorder %s20, 0
      %p103 = por %p101, %p102
      %p104 = scmp.ne.s32.totalorder %s96, %s98
      %p105 = scmp.eq.s32.totalorder %s25, 1
      %p106 = por %p104, %p105
      %p107 = scmp.ne.s32.totalorder %s98, %s99
      %p108 = scmp.eq.s32.totalorder %s25, 0
      %p109 = por %p107, %p108
      %p110 = scmp.ne.s32.totalorder %s98, %s99
      %p111 = scmp.eq.s32.totalorder %s26, 1
      %p112 = por %p110, %p111
      %p114 = scmp.ne.s32.totalorder %s99, %s113
      %p115 = scmp.eq.s32.totalorder %s26, 0
      %p116 = por %p114, %p115
      %s118 = sadd.s32 %s117, 1
      %p121 = scmp.eq.s32.totalorder %s20, 1
      %p122 = scmp.ne.s32.totalorder %s117, %s119
      %p123 = scmp.eq.s32.totalorder %s20, 0
      %p124 = por %p122, %p123
      %p125 = scmp.ne.s32.totalorder %s117, %s119
      %p126 = scmp.eq.s32.totalorder %s25, 1
      %p127 = por %p125, %p126
      %p128 = scmp.ne.s32.totalorder %s119, %s120
      %p129 = scmp.eq.s32.totalorder %s25, 0
      %p130 = por %p128, %p129
      %p131 = scmp.ne.s32.totalorder %s119, %s120
      %p132 = scmp.eq.s32.totalorder %s26, 1
      %p133 = por %p131, %p132
      %p135 = scmp.ne.s32.totalorder %s120, %s134
      %p136 = scmp.eq.s32.totalorder %s26, 0
      %p137 = por %p135, %p136
      %s139 = sadd.s32 %s138, 1
      %p142 = scmp.eq.s32.totalorder %s20, 1
      %p143 = scmp.ne.s32.totalorder %s138, %s140
      %p144 = scmp.eq.s32.totalorder %s20, 0
      %p145 = por %p143, %p144
      %p146 = scmp.ne.s32.totalorder %s138, %s140
      %p147 = scmp.eq.s32.totalorder %s25, 1
      %p148 = por %p146, %p147
      %p149 = scmp.ne.s32.totalorder %s140, %s141
      %p150 = scmp.eq.s32.totalorder %s25, 0
      %p151 = por %p149, %p150
      %p152 = scmp.ne.s32.totalorder %s140, %s141
      %p153 = scmp.eq.s32.totalorder %s26, 1
      %p154 = por %p152, %p153
      %p156 = scmp.ne.s32.totalorder %s141, %s155
      %p157 = scmp.eq.s32.totalorder %s26, 0
      %p158 = por %p156, %p157
      %s160 = sadd.s32 %s159, 1
      %p163 = scmp.eq.s32.totalorder %s20, 1
      %p164 = scmp.ne.s32.totalorder %s159, %s161
      %p165 = scmp.eq.s32.totalorder %s20, 0
      %p166 = por %p164, %p165
      %p167 = scmp.ne.s32.totalorder %s159, %s161
      %p168 = scmp.eq.s32.totalorder %s25, 1
      %p169 = por %p167, %p168
      %p170 = scmp.ne.s32.totalorder %s161, %s162
      %p171 = scmp.eq.s32.totalorder %s25, 0
      %p172 = por %p170, %p171
      %p173 = scmp.ne.s32.totalorder %s161, %s162
      %p174 = scmp.eq.s32.totalorder %s26, 1
      %p175 = por %p173, %p174
      %p177 = scmp.ne.s32.totalorder %s162, %s176
      %p178 = scmp.eq.s32.totalorder %s26, 0
      %p179 = por %p177, %p178
      %s181 = sadd.s32 %s180, 1
      %p184 = scmp.eq.s32.totalorder %s20, 1
      %p185 = scmp.ne.s32.totalorder %s180, %s182
      %p186 = scmp.eq.s32.totalorder %s20, 0
      %p187 = por %p185, %p186
      %p188 = scmp.ne.s32.totalorder %s180, %s182
      %p189 = scmp.eq.s32.totalorder %s25, 1
      %p190 = por %p188, %p189
      %p191 = scmp.ne.s32.totalorder %s182, %s183
      %p192 = scmp.eq.s32.totalorder %s25, 0
      %p193 = por %p191, %p192
      %p194 = scmp.ne.s32.totalorder %s182, %s183
      %p195 = scmp.eq.s32.totalorder %s26, 1
      %p196 = por %p194, %p195
      %p198 = scmp.ne.s32.totalorder %s183, %s197
      %p199 = scmp.eq.s32.totalorder %s26, 0
      %p200 = por %p198, %p199
      %s202 = sadd.s32 %s201, 1
      %p205 = scmp.eq.s32.totalorder %s20, 1
      %p206 = scmp.ne.s32.totalorder %s201, %s203
      %p207 = scmp.eq.s32.totalorder %s20, 0
      %p208 = por %p206, %p207
      %p209 = scmp.ne.s32.totalorder %s201, %s203
      %p210 = scmp.eq.s32.totalorder %s25, 1
      %p211 = por %p209, %p210
      %p212 = scmp.ne.s32.totalorder %s203, %s204
      %p213 = scmp.eq.s32.totalorder %s25, 0
      %p214 = por %p212, %p213
      %p215 = scmp.ne.s32.totalorder %s203, %s204
      %p216 = scmp.eq.s32.totalorder %s26, 1
      %p217 = por %p215, %p216
      %p219 = scmp.ne.s32.totalorder %s204, %s218
      %p220 = scmp.eq.s32.totalorder %s26, 0
      %p221 = por %p219, %p220
      %s223 = sadd.s32 %s222, 1
      %p226 = scmp.eq.s32.totalorder %s20, 1
      %p227 = scmp.ne.s32.totalorder %s222, %s224
      %p228 = scmp.eq.s32.totalorder %s20, 0
      %p229 = por %p227, %p228
      %p230 = scmp.ne.s32.totalorder %s222, %s224
      %p231 = scmp.eq.s32.totalorder %s25, 1
      %p232 = por %p230, %p231
      %p233 = scmp.ne.s32.totalorder %s224, %s225
      %p234 = scmp.eq.s32.totalorder %s25, 0
      %p235 = por %p233, %p234
      %p236 = scmp.ne.s32.totalorder %s224, %s225
      %p237 = scmp.eq.s32.totalorder %s26, 1
      %p238 = por %p236, %p237
      %p240 = scmp.ne.s32.totalorder %s225, %s239
      %p241 = scmp.eq.s32.totalorder %s26, 0
      %p242 = por %p240, %p241
      %s244 = sadd.s32 %s243, 1
      %p247 = scmp.eq.s32.totalorder %s20, 1
      %p248 = scmp.ne.s32.totalorder %s243, %s245
      %p249 = scmp.eq.s32.totalorder %s20, 0
      %p250 = por %p248, %p249
      %p251 = scmp.ne.s32.totalorder %s243, %s245
      %p252 = scmp.eq.s32.totalorder %s25, 1
      %p253 = por %p251, %p252
      %p254 = scmp.ne.s32.totalorder %s245, %s246
      %p255 = scmp.eq.s32.totalorder %s25, 0
      %p256 = por %p254, %p255
      %p257 = scmp.ne.s32.totalorder %s245, %s246
      %p258 = scmp.eq.s32.totalorder %s26, 1
      %p259 = por %p257, %p258
      %p261 = scmp.ne.s32.totalorder %s246, %s260
      %p262 = scmp.eq.s32.totalorder %s26, 0
      %p263 = por %p261, %p262
      %s264 = ssub.s32 %s20, %s27
      %p265 = scmp.eq.s32.totalorder %s264, 0
      %s267 = sadd.s32 %s266, 1
      %s268 = scalar_select %p265, %s266, %s267
      %p271 = pneg %p265
      %p272 = scmp.eq.s32.totalorder %s20, 1
      %p273 = por %p271, %p272
      %p274 = scmp.ne.s32.totalorder %s266, %s269
      %p275 = scmp.eq.s32.totalorder %s20, 0
      %p276 = por %p274, %p275
      %p277 = scmp.ne.s32.totalorder %s266, %s269
      %p278 = scmp.eq.s32.totalorder %s25, 1
      %p279 = por %p277, %p278
      %p280 = scmp.ne.s32.totalorder %s269, %s270
      %p281 = scmp.eq.s32.totalorder %s25, 0
      %p282 = por %p280, %p281
      %p283 = scmp.ne.s32.totalorder %s269, %s270
      %p284 = scmp.eq.s32.totalorder %s26, 1
      %p285 = por %p283, %p284
      %p287 = scmp.ne.s32.totalorder %s270, %s286
      %p288 = scmp.eq.s32.totalorder %s26, 0
      %p289 = por %p287, %p288
      %p290 = scmp.le.s32.totalorder 1, %s20
      %p291 = scmp.lt.s32.totalorder %s20, 3
      %p292 = pnand %p290, %p291
      %p293 = pneg %p292
      // Predicated region
      $region9: #{net_forward.1} parent=5 // pred_check
        _
      $region10: #{net_forward.1} parent=5 // pred_check_branch
        %295 = sbr.rel (%p292) target = $region12
      $region11: #{net_forward.1} parent=5 // pred_region
        %s296 = ssub.s32 %s20, 1
        // Predicated region
        $region13: #{net_forward.1} parent=11 // pred_check
          %p297 = pneg %p67
        $region14: #{net_forward.1} parent=11 // pred_check_branch
          %299 = sbr.rel (%p297) target = $region16
        $region15: #{net_forward.1} parent=11 // pred_region
          _
        $region16: #{net_forward.1} parent=11 // pred_fallthru
          _
        // Predicated region
        $region17: #{net_forward.1} parent=11 // pred_check
          %p300 = pneg %p88
        $region18: #{net_forward.1} parent=11 // pred_check_branch
          %302 = sbr.rel (%p300) target = $region20
        $region19: #{net_forward.1} parent=11 // pred_region
          _
        $region20: #{net_forward.1} parent=11 // pred_fallthru
          _
        // Predicated region
        $region21: #{net_forward.1} parent=11 // pred_check
          %p303 = pneg %p109
        $region22: #{net_forward.1} parent=11 // pred_check_branch
          %305 = sbr.rel (%p303) target = $region24
        $region23: #{net_forward.1} parent=11 // pred_region
          _
        $region24: #{net_forward.1} parent=11 // pred_fallthru
          _
        // Predicated region
        $region25: #{net_forward.1} parent=11 // pred_check
          %p306 = pneg %p130
        $region26: #{net_forward.1} parent=11 // pred_check_branch
          %308 = sbr.rel (%p306) target = $region28
        $region27: #{net_forward.1} parent=11 // pred_region
          _
        $region28: #{net_forward.1} parent=11 // pred_fallthru
          _
        // Predicated region
        $region29: #{net_forward.1} parent=11 // pred_check
          %p309 = pneg %p151
        $region30: #{net_forward.1} parent=11 // pred_check_branch
          %311 = sbr.rel (%p309) target = $region32
        $region31: #{net_forward.1} parent=11 // pred_region
          _
        $region32: #{net_forward.1} parent=11 // pred_fallthru
          _
        // Predicated region
        $region33: #{net_forward.1} parent=11 // pred_check
          %p312 = pneg %p172
        $region34: #{net_forward.1} parent=11 // pred_check_branch
          %314 = sbr.rel (%p312) target = $region36
        $region35: #{net_forward.1} parent=11 // pred_region
          _
        $region36: #{net_forward.1} parent=11 // pred_fallthru
          _
        // Predicated region
        $region37: #{net_forward.1} parent=11 // pred_check
          %p315 = pneg %p193
        $region38: #{net_forward.1} parent=11 // pred_check_branch
          %317 = sbr.rel (%p315) target = $region40
        $region39: #{net_forward.1} parent=11 // pred_region
          _
        $region40: #{net_forward.1} parent=11 // pred_fallthru
          _
        // Predicated region
        $region41: #{net_forward.1} parent=11 // pred_check
          %p318 = pneg %p214
        $region42: #{net_forward.1} parent=11 // pred_check_branch
          %320 = sbr.rel (%p318) target = $region44
        $region43: #{net_forward.1} parent=11 // pred_region
          _
        $region44: #{net_forward.1} parent=11 // pred_fallthru
          _
        // Predicated region
        $region45: #{net_forward.1} parent=11 // pred_check
          %p321 = pneg %p235
        $region46: #{net_forward.1} parent=11 // pred_check_branch
          %323 = sbr.rel (%p321) target = $region48
        $region47: #{net_forward.1} parent=11 // pred_region
          _
        $region48: #{net_forward.1} parent=11 // pred_fallthru
          _
        // Predicated region
        $region49: #{net_forward.1} parent=11 // pred_check
          %p324 = pneg %p256
        $region50: #{net_forward.1} parent=11 // pred_check_branch
          %326 = sbr.rel (%p324) target = $region52
        $region51: #{net_forward.1} parent=11 // pred_region
          _
        $region52: #{net_forward.1} parent=11 // pred_fallthru
          _
      $region12: #{net_forward.1} parent=5 // pred_fallthru
        _
      %p327 = scmp.lt.s32.totalorder %s20, 2
      // Predicated region
      $region53: #{net_forward.1} parent=5 // pred_check
        %p328 = pneg %p327
      $region54: #{net_forward.1} parent=5 // pred_check_branch
        %330 = sbr.rel (%p328) target = $region56
      $region55: #{net_forward.1} parent=5 // pred_region
        // Predicated region
        $region57: #{net_forward.1} parent=55 // pred_check
          %p331 = pneg %p40
        $region58: #{net_forward.1} parent=55 // pred_check_branch
          %333 = sbr.rel (%p331) target = $region60
        $region59: #{net_forward.1} parent=55 // pred_region
          %s334 = smul.u32 32, %s20
          %p335 = scmp.lt.s32.totalorder %s334, 63
          %s336 = scalar_select %p335, %s334, 63
          %s337 = smul.addr %s336, 8
          %s338 = scalar_lea.vmem %s0, %s337
          %s339 = smul.u32 32, %s20
        $region60: #{net_forward.1} parent=55 // pred_fallthru
          _
      $region56: #{net_forward.1} parent=5 // pred_fallthru
        _
      %p340 = scmp.le.s32.totalorder 1, %s20
      %p341 = scmp.lt.s32.totalorder %s20, 3
      %p342 = pnand %p340, %p341
      %p343 = pneg %p342
      // Predicated region
      $region61: #{net_forward.1} parent=5 // pred_check
        _
      $region62: #{net_forward.1} parent=5 // pred_check_branch
        %345 = sbr.rel (%p342) target = $region64
      $region63: #{net_forward.1} parent=5 // pred_region
        %s346 = ssub.s32 %s20, 1
        %s347 = smul.u32 32, %s25
        %p348 = scmp.lt.s32.totalorder %s347, 63
        %s349 = scalar_select %p348, %s347, 63
        %s350 = smul.addr %s349, 8
        %s351 = scalar_lea.vmem %s0, %s350
        %p352 = pneg %p46
        %p353 = pneg %p43
        %p354 = pneg %p67
        %p355 = pneg %p64
        %p356 = pneg %p88
        %p357 = pneg %p85
        %p358 = pneg %p109
        %p359 = pneg %p106
        %p360 = pneg %p130
        %p361 = pneg %p127
        %p362 = pneg %p151
        %p363 = pneg %p148
        %p364 = pneg %p172
        %p365 = pneg %p169
        %p366 = pneg %p193
        %p367 = pneg %p190
        %p368 = pneg %p214
        %p369 = pneg %p211
        %p370 = pneg %p235
        %p371 = pneg %p232
        %p372 = pneg %p256
        %p373 = pneg %p253
        %p374 = pneg %p282
        %p375 = pneg %p279
        %s376 = sand.u32 %s269, 1
        %s377 = scalar_lea.sflag [#allocation8], %s376
        %s378 = sand.u32 %s269, 1
        %s379 = smul.addr %s378, 8
        %s380 = scalar_lea.vmem [#allocation7], %s379
        %s381 = smul.u32 32, %s25
        %p382 = scmp.lt.s32.totalorder %s381, 63
        %s383 = scalar_select %p382, %s381, 63
        %s384 = smul.addr %s383, 8
        %s385 = scalar_lea.vmem %s0, %s384
        %s386 = smul.u32 32, %s25
        %p387 = scmp.eq.s32.totalorder %s25, 0
        // Predicated region
        $region65: #{net_forward.1} parent=63 // pred_check
          %p388 = pneg %p387
        $region66: #{net_forward.1} parent=63 // pred_check_branch
          %390 = sbr.rel (%p388) target = $region68
        $region67: #{net_forward.1} parent=63 // pred_region
          %391 = vst [vmem:[#allocation3 + $0xfc] sm:$0xf] 0.0
          %392 = vst [vmem:[#allocation5 + $0x7c] sm:$0xf] 0.0
        $region68: #{net_forward.1} parent=63 // pred_fallthru
          _
        %v393 = vld [vmem:[%s385] sm:$0xff]
        %v394 = vld [vmem:[%s385 + $0x8] sm:$0xff]
        %v395 = vld [vmem:[%s385 + $0x10] sm:$0xff]
        %v396 = vld [vmem:[%s385 + $0x18] sm:$0xff]
        %v397 = vld [vmem:[%s385 + $0x20] sm:$0xff]
        %v398 = vld [vmem:[%s385 + $0x28] sm:$0xff]
        %v399 = vld [vmem:[%s385 + $0x30] sm:$0xff]
        %v400 = vld [vmem:[%s385 + $0x38] sm:$0xff]
        %v401 = vld [vmem:[%s385 + $0x40] sm:$0xff]
        %v402 = vld [vmem:[%s385 + $0x48] sm:$0xff]
        %v403 = vld [vmem:[%s385 + $0x50] sm:$0xff]
        %v404 = vld [vmem:[%s385 + $0x58] sm:$0xff]
        %v405 = vld [vmem:[%s385 + $0x60] sm:$0xff]
        %v406 = vld [vmem:[%s385 + $0x68] sm:$0xff]
        %v407 = vld [vmem:[%s385 + $0x70] sm:$0xff]
        %v408 = vld [vmem:[%s385 + $0x78] sm:$0xff]
        %v409 = vld [vmem:[%s385 + $0x80] sm:$0xff]
        %v410 = vld [vmem:[%s385 + $0x88] sm:$0xff]
        %v411 = vld [vmem:[%s385 + $0x90] sm:$0xff]
        %v412 = vld [vmem:[%s385 + $0x98] sm:$0xff]
        %v413 = vld [vmem:[%s385 + $0xa0] sm:$0xff]
        %v414 = vld [vmem:[%s385 + $0xa8] sm:$0xff]
        %v415 = vld [vmem:[%s385 + $0xb0] sm:$0xff]
        %v416 = vld [vmem:[%s385 + $0xb8] sm:$0xff]
        %v417 = vld [vmem:[%s385 + $0xc0] sm:$0xff]
        %v418 = vld [vmem:[%s385 + $0xc8] sm:$0xff]
        %v419 = vld [vmem:[%s385 + $0xd0] sm:$0xff]
        %v420 = vld [vmem:[%s385 + $0xd8] sm:$0xff]
        %v421 = vld [vmem:[%s385 + $0xe0] sm:$0xff]
        %v422 = vld [vmem:[%s385 + $0xe8] sm:$0xff]
        %v423 = vld [vmem:[%s385 + $0xf0] sm:$0xff]
        %v424 = vld [vmem:[%s385 + $0xf8] sm:$0xf]
        %v425 = vld [vmem:[%s1] sm:$0xff]
        %v426 = vld [vmem:[%s1 + $0x8] sm:$0xff]
        %v427 = vld [vmem:[%s1 + $0x10] sm:$0xff]
        %v428 = vld [vmem:[%s1 + $0x18] sm:$0xff]
        %v429 = vld [vmem:[%s1 + $0x20] sm:$0xff]
        %v430 = vld [vmem:[%s1 + $0x28] sm:$0xff]
        %v431 = vld [vmem:[%s1 + $0x30] sm:$0xff]
        %v432 = vld [vmem:[%s1 + $0x38] sm:$0xff]
        %v433 = vld [vmem:[%s1 + $0x40] sm:$0xff]
        %v434 = vld [vmem:[%s1 + $0x48] sm:$0xff]
        %v435 = vld [vmem:[%s1 + $0x50] sm:$0xff]
        %v436 = vld [vmem:[%s1 + $0x58] sm:$0xff]
        %v437 = vld [vmem:[%s1 + $0x60] sm:$0xff]
        %v438 = vld [vmem:[%s1 + $0x68] sm:$0xff]
        %v439 = vld [vmem:[%s1 + $0x70] sm:$0xff]
        %v440 = vld [vmem:[%s1 + $0x78] sm:$0xff]
        %v441 = vld [vmem:[%s1 + $0x80] sm:$0xff]
        %v442 = vld [vmem:[%s1 + $0x88] sm:$0xff]
        %v443 = vld [vmem:[%s1 + $0x90] sm:$0xff]
        %v444 = vld [vmem:[%s1 + $0x98] sm:$0xff]
        %v445 = vld [vmem:[%s1 + $0xa0] sm:$0xff]
        %v446 = vld [vmem:[%s1 + $0xa8] sm:$0xff]
        %v447 = vld [vmem:[%s1 + $0xb0] sm:$0xff]
        %v448 = vld [vmem:[%s1 + $0xb8] sm:$0xff]
        %v449 = vld [vmem:[%s1 + $0xc0] sm:$0xff]
        %v450 = vld [vmem:[%s1 + $0xc8] sm:$0xff]
        %v451 = vld [vmem:[%s1 + $0xd0] sm:$0xff]
        %v452 = vld [vmem:[%s1 + $0xd8] sm:$0xff]
        %v453 = vld [vmem:[%s1 + $0xe0] sm:$0xff]
        %v454 = vld [vmem:[%s1 + $0xe8] sm:$0xff]
        %v455 = vld [vmem:[%s1 + $0xf0] sm:$0xff]
        %v456 = vld [vmem:[%s1 + $0xf8] sm:$0xff]
        %457 = vmatpush.msra.mxu0 %v455
        %458 = vmatpush.msra.mxu0 %v453
        %459 = vmatpush.msra.mxu0 %v451
        %460 = vmatpush.msra.mxu0 %v449
        %461 = vmatpush.msra.mxu0 %v447
        %462 = vmatpush.msra.mxu0 %v445
        %463 = vmatpush.msra.mxu0 %v443
        %464 = vmatpush.msra.mxu0 %v441
        %465 = vmatpush.msra.mxu0 %v439
        %466 = vmatpush.msra.mxu0 %v437
        %467 = vmatpush.msra.mxu0 %v435
        %468 = vmatpush.msra.mxu0 %v433
        %469 = vmatpush.msra.mxu0 %v431
        %470 = vmatpush.msra.mxu0 %v429
        %471 = vmatpush.msra.mxu0 %v427
        %472 = vmatpush.msra.mxu0 %v425
        %473 = vmatmul.f32.gmra.mxu0 %v393
        %v474 = vpop.f32.mrf.mxu0
        %v475 = vadd.f32 0.0, %v474
        %476 = vmatmul.f32.gmra.mxu0 %v394
        %v477 = vpop.f32.mrf.mxu0
        %v478 = vadd.f32 0.0, %v477
        %479 = vmatmul.f32.gmra.mxu0 %v395
        %v480 = vpop.f32.mrf.mxu0
        %v481 = vadd.f32 0.0, %v480
        %482 = vmatmul.f32.gmra.mxu0 %v396
        %v483 = vpop.f32.mrf.mxu0
        %v484 = vadd.f32 0.0, %v483
        %485 = vmatmul.f32.gmra.mxu0 %v397
        %v486 = vpop.f32.mrf.mxu0
        %v487 = vadd.f32 0.0, %v486
        %488 = vmatmul.f32.gmra.mxu0 %v398
        %v489 = vpop.f32.mrf.mxu0
        %v490 = vadd.f32 0.0, %v489
        %491 = vmatmul.f32.gmra.mxu0 %v399
        %v492 = vpop.f32.mrf.mxu0
        %v493 = vadd.f32 0.0, %v492
        %494 = vmatmul.f32.gmra.mxu0 %v400
        %v495 = vpop.f32.mrf.mxu0
        %v496 = vadd.f32 0.0, %v495
        %497 = vmatmul.f32.gmra.mxu0 %v401
        %v498 = vpop.f32.mrf.mxu0
        %v499 = vadd.f32 0.0, %v498
        %500 = vmatmul.f32.gmra.mxu0 %v402
        %v501 = vpop.f32.mrf.mxu0
        %v502 = vadd.f32 0.0, %v501
        %503 = vmatmul.f32.gmra.mxu0 %v403
        %v504 = vpop.f32.mrf.mxu0
        %v505 = vadd.f32 0.0, %v504
        %506 = vmatmul.f32.gmra.mxu0 %v404
        %v507 = vpop.f32.mrf.mxu0
        %v508 = vadd.f32 0.0, %v507
        %509 = vmatmul.f32.gmra.mxu0 %v405
        %v510 = vpop.f32.mrf.mxu0
        %v511 = vadd.f32 0.0, %v510
        %512 = vmatmul.f32.gmra.mxu0 %v406
        %v513 = vpop.f32.mrf.mxu0
        %v514 = vadd.f32 0.0, %v513
        %515 = vmatmul.f32.gmra.mxu0 %v407
        %v516 = vpop.f32.mrf.mxu0
        %v517 = vadd.f32 0.0, %v516
        %518 = vmatmul.f32.gmra.mxu0 %v408
        %v519 = vpop.f32.mrf.mxu0
        %v520 = vadd.f32 0.0, %v519
        %521 = vmatmul.f32.gmra.mxu0 %v409
        %v522 = vpop.f32.mrf.mxu0
        %v523 = vadd.f32 0.0, %v522
        %524 = vmatmul.f32.gmra.mxu0 %v410
        %v525 = vpop.f32.mrf.mxu0
        %v526 = vadd.f32 0.0, %v525
        %527 = vmatmul.f32.gmra.mxu0 %v411
        %v528 = vpop.f32.mrf.mxu0
        %v529 = vadd.f32 0.0, %v528
        %530 = vmatmul.f32.gmra.mxu0 %v412
        %v531 = vpop.f32.mrf.mxu0
        %v532 = vadd.f32 0.0, %v531
        %533 = vmatmul.f32.gmra.mxu0 %v413
        %v534 = vpop.f32.mrf.mxu0
        %v535 = vadd.f32 0.0, %v534
        %536 = vmatmul.f32.gmra.mxu0 %v414
        %v537 = vpop.f32.mrf.mxu0
        %v538 = vadd.f32 0.0, %v537
        %539 = vmatmul.f32.gmra.mxu0 %v415
        %v540 = vpop.f32.mrf.mxu0
        %v541 = vadd.f32 0.0, %v540
        %542 = vmatmul.f32.gmra.mxu0 %v416
        %v543 = vpop.f32.mrf.mxu0
        %v544 = vadd.f32 0.0, %v543
        %545 = vmatmul.f32.gmra.mxu0 %v417
        %v546 = vpop.f32.mrf.mxu0
        %v547 = vadd.f32 0.0, %v546
        %548 = vmatmul.f32.gmra.mxu0 %v418
        %v549 = vpop.f32.mrf.mxu0
        %v550 = vadd.f32 0.0, %v549
        %551 = vmatmul.f32.gmra.mxu0 %v419
        %v552 = vpop.f32.mrf.mxu0
        %v553 = vadd.f32 0.0, %v552
        %554 = vmatmul.f32.gmra.mxu0 %v420
        %v555 = vpop.f32.mrf.mxu0
        %v556 = vadd.f32 0.0, %v555
        %557 = vmatmul.f32.gmra.mxu0 %v421
        %v558 = vpop.f32.mrf.mxu0
        %v559 = vadd.f32 0.0, %v558
        %560 = vmatmul.f32.gmra.mxu0 %v422
        %v561 = vpop.f32.mrf.mxu0
        %v562 = vadd.f32 0.0, %v561
        %563 = vmatmul.f32.gmra.mxu0 %v423
        %v564 = vpop.f32.mrf.mxu0
        %v565 = vadd.f32 0.0, %v564
        %566 = vmatmul.f32.gmra.mxu0 %v424
        %v567 = vpop.f32.mrf.mxu0
        %v568 = vadd.f32 0.0, %v567
        %569 = vdwg.mxu0
        %570 = vmatpush.msra.mxu0 %v456
        %571 = vmatpush.msra.mxu0 %v454
        %572 = vmatpush.msra.mxu0 %v452
        %573 = vmatpush.msra.mxu0 %v450
        %574 = vmatpush.msra.mxu0 %v448
        %575 = vmatpush.msra.mxu0 %v446
        %576 = vmatpush.msra.mxu0 %v444
        %577 = vmatpush.msra.mxu0 %v442
        %578 = vmatpush.msra.mxu0 %v440
        %579 = vmatpush.msra.mxu0 %v438
        %580 = vmatpush.msra.mxu0 %v436
        %581 = vmatpush.msra.mxu0 %v434
        %582 = vmatpush.msra.mxu0 %v432
        %583 = vmatpush.msra.mxu0 %v430
        %584 = vmatpush.msra.mxu0 %v428
        %585 = vmatpush.msra.mxu0 %v426
        %586 = vmatmul.f32.gmra.mxu0 %v393
        %v587 = vpop.f32.mrf.mxu0
        %v588 = vadd.f32 0.0, %v587
        %589 = vmatmul.f32.gmra.mxu0 %v394
        %v590 = vpop.f32.mrf.mxu0
        %v591 = vadd.f32 0.0, %v590
        %592 = vmatmul.f32.gmra.mxu0 %v395
        %v593 = vpop.f32.mrf.mxu0
        %v594 = vadd.f32 0.0, %v593
        %595 = vmatmul.f32.gmra.mxu0 %v396
        %v596 = vpop.f32.mrf.mxu0
        %v597 = vadd.f32 0.0, %v596
        %598 = vmatmul.f32.gmra.mxu0 %v397
        %v599 = vpop.f32.mrf.mxu0
        %v600 = vadd.f32 0.0, %v599
        %601 = vmatmul.f32.gmra.mxu0 %v398
        %v602 = vpop.f32.mrf.mxu0
        %v603 = vadd.f32 0.0, %v602
        %604 = vmatmul.f32.gmra.mxu0 %v399
        %v605 = vpop.f32.mrf.mxu0
        %v606 = vadd.f32 0.0, %v605
        %607 = vmatmul.f32.gmra.mxu0 %v400
        %v608 = vpop.f32.mrf.mxu0
        %v609 = vadd.f32 0.0, %v608
        %610 = vmatmul.f32.gmra.mxu0 %v401
        %v611 = vpop.f32.mrf.mxu0
        %v612 = vadd.f32 0.0, %v611
        %613 = vmatmul.f32.gmra.mxu0 %v402
        %v614 = vpop.f32.mrf.mxu0
        %v615 = vadd.f32 0.0, %v614
        %616 = vmatmul.f32.gmra.mxu0 %v403
        %v617 = vpop.f32.mrf.mxu0
        %v618 = vadd.f32 0.0, %v617
        %619 = vmatmul.f32.gmra.mxu0 %v404
        %v620 = vpop.f32.mrf.mxu0
        %v621 = vadd.f32 0.0, %v620
        %622 = vmatmul.f32.gmra.mxu0 %v405
        %v623 = vpop.f32.mrf.mxu0
        %v624 = vadd.f32 0.0, %v623
        %625 = vmatmul.f32.gmra.mxu0 %v406
        %v626 = vpop.f32.mrf.mxu0
        %v627 = vadd.f32 0.0, %v626
        %628 = vmatmul.f32.gmra.mxu0 %v407
        %v629 = vpop.f32.mrf.mxu0
        %v630 = vadd.f32 0.0, %v629
        %631 = vmatmul.f32.gmra.mxu0 %v408
        %v632 = vpop.f32.mrf.mxu0
        %v633 = vadd.f32 0.0, %v632
        %634 = vmatmul.f32.gmra.mxu0 %v409
        %v635 = vpop.f32.mrf.mxu0
        %v636 = vadd.f32 0.0, %v635
        %637 = vmatmul.f32.gmra.mxu0 %v410
        %v638 = vpop.f32.mrf.mxu0
        %v639 = vadd.f32 0.0, %v638
        %640 = vmatmul.f32.gmra.mxu0 %v411
        %v641 = vpop.f32.mrf.mxu0
        %v642 = vadd.f32 0.0, %v641
        %643 = vmatmul.f32.gmra.mxu0 %v412
        %v644 = vpop.f32.mrf.mxu0
        %v645 = vadd.f32 0.0, %v644
        %646 = vmatmul.f32.gmra.mxu0 %v413
        %v647 = vpop.f32.mrf.mxu0
        %v648 = vadd.f32 0.0, %v647
        %649 = vmatmul.f32.gmra.mxu0 %v414
        %v650 = vpop.f32.mrf.mxu0
        %v651 = vadd.f32 0.0, %v650
        %652 = vmatmul.f32.gmra.mxu0 %v415
        %v653 = vpop.f32.mrf.mxu0
        %v654 = vadd.f32 0.0, %v653
        %655 = vmatmul.f32.gmra.mxu0 %v416
        %v656 = vpop.f32.mrf.mxu0
        %v657 = vadd.f32 0.0, %v656
        %658 = vmatmul.f32.gmra.mxu0 %v417
        %v659 = vpop.f32.mrf.mxu0
        %v660 = vadd.f32 0.0, %v659
        %661 = vmatmul.f32.gmra.mxu0 %v418
        %v662 = vpop.f32.mrf.mxu0
        %v663 = vadd.f32 0.0, %v662
        %664 = vmatmul.f32.gmra.mxu0 %v419
        %v665 = vpop.f32.mrf.mxu0
        %v666 = vadd.f32 0.0, %v665
        %667 = vmatmul.f32.gmra.mxu0 %v420
        %v668 = vpop.f32.mrf.mxu0
        %v669 = vadd.f32 0.0, %v668
        %670 = vmatmul.f32.gmra.mxu0 %v421
        %v671 = vpop.f32.mrf.mxu0
        %v672 = vadd.f32 0.0, %v671
        %673 = vmatmul.f32.gmra.mxu0 %v422
        %v674 = vpop.f32.mrf.mxu0
        %v675 = vadd.f32 0.0, %v674
        %676 = vmatmul.f32.gmra.mxu0 %v423
        %v677 = vpop.f32.mrf.mxu0
        %v678 = vadd.f32 0.0, %v677
        %679 = vmatmul.f32.gmra.mxu0 %v424
        %v680 = vpop.f32.mrf.mxu0
        %v681 = vadd.f32 0.0, %v680
        %682 = vdwg.mxu0
        %683 = vst [vmem:[#allocation2] sm:$0xff] %v475
        %684 = vst [vmem:[#allocation2 + $0x8] sm:$0xff] %v588
        %685 = vst [vmem:[#allocation2 + $0x10] sm:$0xff] %v478
        %686 = vst [vmem:[#allocation2 + $0x18] sm:$0xff] %v591
        %687 = vst [vmem:[#allocation2 + $0x20] sm:$0xff] %v481
        %688 = vst [vmem:[#allocation2 + $0x28] sm:$0xff] %v594
        %689 = vst [vmem:[#allocation2 + $0x30] sm:$0xff] %v484
        %690 = vst [vmem:[#allocation2 + $0x38] sm:$0xff] %v597
        %691 = vst [vmem:[#allocation2 + $0x40] sm:$0xff] %v487
        %692 = vst [vmem:[#allocation2 + $0x48] sm:$0xff] %v600
        %693 = vst [vmem:[#allocation2 + $0x50] sm:$0xff] %v490
        %694 = vst [vmem:[#allocation2 + $0x58] sm:$0xff] %v603
        %695 = vst [vmem:[#allocation2 + $0x60] sm:$0xff] %v493
        %696 = vst [vmem:[#allocation2 + $0x68] sm:$0xff] %v606
        %697 = vst [vmem:[#allocation2 + $0x70] sm:$0xff] %v496
        %698 = vst [vmem:[#allocation2 + $0x78] sm:$0xff] %v609
        %699 = vst [vmem:[#allocation2 + $0x80] sm:$0xff] %v499
        %700 = vst [vmem:[#allocation2 + $0x88] sm:$0xff] %v612
        %701 = vst [vmem:[#allocation2 + $0x90] sm:$0xff] %v502
        %702 = vst [vmem:[#allocation2 + $0x98] sm:$0xff] %v615
        %703 = vst [vmem:[#allocation2 + $0xa0] sm:$0xff] %v505
        %704 = vst [vmem:[#allocation2 + $0xa8] sm:$0xff] %v618
        %705 = vst [vmem:[#allocation2 + $0xb0] sm:$0xff] %v508
        %706 = vst [vmem:[#allocation2 + $0xb8] sm:$0xff] %v621
        %707 = vst [vmem:[#allocation2 + $0xc0] sm:$0xff] %v511
        %708 = vst [vmem:[#allocation2 + $0xc8] sm:$0xff] %v624
        %709 = vst [vmem:[#allocation2 + $0xd0] sm:$0xff] %v514
        %710 = vst [vmem:[#allocation2 + $0xd8] sm:$0xff] %v627
        %711 = vst [vmem:[#allocation2 + $0xe0] sm:$0xff] %v517
        %712 = vst [vmem:[#allocation2 + $0xe8] sm:$0xff] %v630
        %713 = vst [vmem:[#allocation2 + $0xf0] sm:$0xff] %v520
        %714 = vst [vmem:[#allocation2 + $0xf8] sm:$0xff] %v633
        %715 = vst [vmem:[#allocation2 + $0x100] sm:$0xff] %v523
        %716 = vst [vmem:[#allocation2 + $0x108] sm:$0xff] %v636
        %717 = vst [vmem:[#allocation2 + $0x110] sm:$0xff] %v526
        %718 = vst [vmem:[#allocation2 + $0x118] sm:$0xff] %v639
        %719 = vst [vmem:[#allocation2 + $0x120] sm:$0xff] %v529
        %720 = vst [vmem:[#allocation2 + $0x128] sm:$0xff] %v642
        %721 = vst [vmem:[#allocation2 + $0x130] sm:$0xff] %v532
        %722 = vst [vmem:[#allocation2 + $0x138] sm:$0xff] %v645
        %723 = vst [vmem:[#allocation2 + $0x140] sm:$0xff] %v535
        %724 = vst [vmem:[#allocation2 + $0x148] sm:$0xff] %v648
        %725 = vst [vmem:[#allocation2 + $0x150] sm:$0xff] %v538
        %726 = vst [vmem:[#allocation2 + $0x158] sm:$0xff] %v651
        %727 = vst [vmem:[#allocation2 + $0x160] sm:$0xff] %v541
        %728 = vst [vmem:[#allocation2 + $0x168] sm:$0xff] %v654
        %729 = vst [vmem:[#allocation2 + $0x170] sm:$0xff] %v544
        %730 = vst [vmem:[#allocation2 + $0x178] sm:$0xff] %v657
        %731 = vst [vmem:[#allocation2 + $0x180] sm:$0xff] %v547
        %732 = vst [vmem:[#allocation2 + $0x188] sm:$0xff] %v660
        %733 = vst [vmem:[#allocation2 + $0x190] sm:$0xff] %v550
        %734 = vst [vmem:[#allocation2 + $0x198] sm:$0xff] %v663
        %735 = vst [vmem:[#allocation2 + $0x1a0] sm:$0xff] %v553
        %736 = vst [vmem:[#allocation2 + $0x1a8] sm:$0xff] %v666
        %737 = vst [vmem:[#allocation2 + $0x1b0] sm:$0xff] %v556
        %738 = vst [vmem:[#allocation2 + $0x1b8] sm:$0xff] %v669
        %739 = vst [vmem:[#allocation2 + $0x1c0] sm:$0xff] %v559
        %740 = vst [vmem:[#allocation2 + $0x1c8] sm:$0xff] %v672
        %741 = vst [vmem:[#allocation2 + $0x1d0] sm:$0xff] %v562
        %742 = vst [vmem:[#allocation2 + $0x1d8] sm:$0xff] %v675
        %743 = vst [vmem:[#allocation2 + $0x1e0] sm:$0xff] %v565
        %744 = vst [vmem:[#allocation2 + $0x1e8] sm:$0xff] %v678
        %745 = vst [vmem:[#allocation2 + $0x1f0] sm:$0xf] %v568
        %746 = vst [vmem:[#allocation2 + $0x1f8] sm:$0xf] %v681
        %v747 = vld [vmem:[#allocation2] sm:$0xff]
        %v748 = vld [vmem:[#allocation2 + $0x8] sm:$0xff]
        %v749 = vld [vmem:[#allocation2 + $0x10] sm:$0xff]
        %v750 = vld [vmem:[#allocation2 + $0x18] sm:$0xff]
        %v751 = vld [vmem:[#allocation2 + $0x20] sm:$0xff]
        %v752 = vld [vmem:[#allocation2 + $0x28] sm:$0xff]
        %v753 = vld [vmem:[#allocation2 + $0x30] sm:$0xff]
        %v754 = vld [vmem:[#allocation2 + $0x38] sm:$0xff]
        %v755 = vld [vmem:[#allocation2 + $0x40] sm:$0xff]
        %v756 = vld [vmem:[#allocation2 + $0x48] sm:$0xff]
        %v757 = vld [vmem:[#allocation2 + $0x50] sm:$0xff]
        %v758 = vld [vmem:[#allocation2 + $0x58] sm:$0xff]
        %v759 = vld [vmem:[#allocation2 + $0x60] sm:$0xff]
        %v760 = vld [vmem:[#allocation2 + $0x68] sm:$0xff]
        %v761 = vld [vmem:[#allocation2 + $0x70] sm:$0xff]
        %v762 = vld [vmem:[#allocation2 + $0x78] sm:$0xff]
        %v763 = vld [vmem:[#allocation2 + $0x80] sm:$0xff]
        %v764 = vld [vmem:[#allocation2 + $0x88] sm:$0xff]
        %v765 = vld [vmem:[#allocation2 + $0x90] sm:$0xff]
        %v766 = vld [vmem:[#allocation2 + $0x98] sm:$0xff]
        %v767 = vld [vmem:[#allocation2 + $0xa0] sm:$0xff]
        %v768 = vld [vmem:[#allocation2 + $0xa8] sm:$0xff]
        %v769 = vld [vmem:[#allocation2 + $0xb0] sm:$0xff]
        %v770 = vld [vmem:[#allocation2 + $0xb8] sm:$0xff]
        %v771 = vld [vmem:[#allocation2 + $0xc0] sm:$0xff]
        %v772 = vld [vmem:[#allocation2 + $0xc8] sm:$0xff]
        %v773 = vld [vmem:[#allocation2 + $0xd0] sm:$0xff]
        %v774 = vld [vmem:[#allocation2 + $0xd8] sm:$0xff]
        %v775 = vld [vmem:[#allocation2 + $0xe0] sm:$0xff]
        %v776 = vld [vmem:[#allocation2 + $0xe8] sm:$0xff]
        %v777 = vld [vmem:[#allocation2 + $0xf0] sm:$0xff]
        %v778 = vld [vmem:[#allocation2 + $0xf8] sm:$0xff]
        %v779 = vld [vmem:[#allocation2 + $0x100] sm:$0xff]
        %v780 = vld [vmem:[#allocation2 + $0x108] sm:$0xff]
        %v781 = vld [vmem:[#allocation2 + $0x110] sm:$0xff]
        %v782 = vld [vmem:[#allocation2 + $0x118] sm:$0xff]
        %v783 = vld [vmem:[#allocation2 + $0x120] sm:$0xff]
        %v784 = vld [vmem:[#allocation2 + $0x128] sm:$0xff]
        %v785 = vld [vmem:[#allocation2 + $0x130] sm:$0xff]
        %v786 = vld [vmem:[#allocation2 + $0x138] sm:$0xff]
        %v787 = vld [vmem:[#allocation2 + $0x140] sm:$0xff]
        %v788 = vld [vmem:[#allocation2 + $0x148] sm:$0xff]
        %v789 = vld [vmem:[#allocation2 + $0x150] sm:$0xff]
        %v790 = vld [vmem:[#allocation2 + $0x158] sm:$0xff]
        %v791 = vld [vmem:[#allocation2 + $0x160] sm:$0xff]
        %v792 = vld [vmem:[#allocation2 + $0x168] sm:$0xff]
        %v793 = vld [vmem:[#allocation2 + $0x170] sm:$0xff]
        %v794 = vld [vmem:[#allocation2 + $0x178] sm:$0xff]
        %v795 = vld [vmem:[#allocation2 + $0x180] sm:$0xff]
        %v796 = vld [vmem:[#allocation2 + $0x188] sm:$0xff]
        %v797 = vld [vmem:[#allocation2 + $0x190] sm:$0xff]
        %v798 = vld [vmem:[#allocation2 + $0x198] sm:$0xff]
        %v799 = vld [vmem:[#allocation2 + $0x1a0] sm:$0xff]
        %v800 = vld [vmem:[#allocation2 + $0x1a8] sm:$0xff]
        %v801 = vld [vmem:[#allocation2 + $0x1b0] sm:$0xff]
        %v802 = vld [vmem:[#allocation2 + $0x1b8] sm:$0xff]
        %v803 = vld [vmem:[#allocation2 + $0x1c0] sm:$0xff]
        %v804 = vld [vmem:[#allocation2 + $0x1c8] sm:$0xff]
        %v805 = vld [vmem:[#allocation2 + $0x1d0] sm:$0xff]
        %v806 = vld [vmem:[#allocation2 + $0x1d8] sm:$0xff]
        %v807 = vld [vmem:[#allocation2 + $0x1e0] sm:$0xff]
        %v808 = vld [vmem:[#allocation2 + $0x1e8] sm:$0xff]
        %v809 = vld [vmem:[#allocation2 + $0x1f0] sm:$0xf]
        %v810 = vld [vmem:[#allocation2 + $0x1f8] sm:$0xf]
        %v811 = vld [vmem:[%s385 + $0x1] sm:$0xff]
        %v812 = vld [vmem:[%s385 + $0x9] sm:$0xff]
        %v813 = vld [vmem:[%s385 + $0x11] sm:$0xff]
        %v814 = vld [vmem:[%s385 + $0x19] sm:$0xff]
        %v815 = vld [vmem:[%s385 + $0x21] sm:$0xff]
        %v816 = vld [vmem:[%s385 + $0x29] sm:$0xff]
        %v817 = vld [vmem:[%s385 + $0x31] sm:$0xff]
        %v818 = vld [vmem:[%s385 + $0x39] sm:$0xff]
        %v819 = vld [vmem:[%s385 + $0x41] sm:$0xff]
        %v820 = vld [vmem:[%s385 + $0x49] sm:$0xff]
        %v821 = vld [vmem:[%s385 + $0x51] sm:$0xff]
        %v822 = vld [vmem:[%s385 + $0x59] sm:$0xff]
        %v823 = vld [vmem:[%s385 + $0x61] sm:$0xff]
        %v824 = vld [vmem:[%s385 + $0x69] sm:$0xff]
        %v825 = vld [vmem:[%s385 + $0x71] sm:$0xff]
        %v826 = vld [vmem:[%s385 + $0x79] sm:$0xff]
        %v827 = vld [vmem:[%s385 + $0x81] sm:$0xff]
        %v828 = vld [vmem:[%s385 + $0x89] sm:$0xff]
        %v829 = vld [vmem:[%s385 + $0x91] sm:$0xff]
        %v830 = vld [vmem:[%s385 + $0x99] sm:$0xff]
        %v831 = vld [vmem:[%s385 + $0xa1] sm:$0xff]
        %v832 = vld [vmem:[%s385 + $0xa9] sm:$0xff]
        %v833 = vld [vmem:[%s385 + $0xb1] sm:$0xff]
        %v834 = vld [vmem:[%s385 + $0xb9] sm:$0xff]
        %v835 = vld [vmem:[%s385 + $0xc1] sm:$0xff]
        %v836 = vld [vmem:[%s385 + $0xc9] sm:$0xff]
        %v837 = vld [vmem:[%s385 + $0xd1] sm:$0xff]
        %v838 = vld [vmem:[%s385 + $0xd9] sm:$0xff]
        %v839 = vld [vmem:[%s385 + $0xe1] sm:$0xff]
        %v840 = vld [vmem:[%s385 + $0xe9] sm:$0xff]
        %v841 = vld [vmem:[%s385 + $0xf1] sm:$0xff]
        %v842 = vld [vmem:[%s385 + $0xf9] sm:$0xf]
        %s843 = scalar_lea.vmem %s1, 256
        %v844 = vld [vmem:[%s843] sm:$0xff]
        %v845 = vld [vmem:[%s843 + $0x8] sm:$0xff]
        %v846 = vld [vmem:[%s843 + $0x10] sm:$0xff]
        %v847 = vld [vmem:[%s843 + $0x18] sm:$0xff]
        %v848 = vld [vmem:[%s843 + $0x20] sm:$0xff]
        %v849 = vld [vmem:[%s843 + $0x28] sm:$0xff]
        %v850 = vld [vmem:[%s843 + $0x30] sm:$0xff]
        %v851 = vld [vmem:[%s843 + $0x38] sm:$0xff]
        %v852 = vld [vmem:[%s843 + $0x40] sm:$0xff]
        %v853 = vld [vmem:[%s843 + $0x48] sm:$0xff]
        %v854 = vld [vmem:[%s843 + $0x50] sm:$0xff]
        %v855 = vld [vmem:[%s843 + $0x58] sm:$0xff]
        %v856 = vld [vmem:[%s843 + $0x60] sm:$0xff]
        %v857 = vld [vmem:[%s843 + $0x68] sm:$0xff]
        %v858 = vld [vmem:[%s843 + $0x70] sm:$0xff]
        %v859 = vld [vmem:[%s843 + $0x78] sm:$0xff]
        %v860 = vld [vmem:[%s843 + $0x80] sm:$0xff]
        %v861 = vld [vmem:[%s843 + $0x88] sm:$0xff]
        %v862 = vld [vmem:[%s843 + $0x90] sm:$0xff]
        %v863 = vld [vmem:[%s843 + $0x98] sm:$0xff]
        %v864 = vld [vmem:[%s843 + $0xa0] sm:$0xff]
        %v865 = vld [vmem:[%s843 + $0xa8] sm:$0xff]
        %v866 = vld [vmem:[%s843 + $0xb0] sm:$0xff]
        %v867 = vld [vmem:[%s843 + $0xb8] sm:$0xff]
        %v868 = vld [vmem:[%s843 + $0xc0] sm:$0xff]
        %v869 = vld [vmem:[%s843 + $0xc8] sm:$0xff]
        %v870 = vld [vmem:[%s843 + $0xd0] sm:$0xff]
        %v871 = vld [vmem:[%s843 + $0xd8] sm:$0xff]
        %v872 = vld [vmem:[%s843 + $0xe0] sm:$0xff]
        %v873 = vld [vmem:[%s843 + $0xe8] sm:$0xff]
        %v874 = vld [vmem:[%s843 + $0xf0] sm:$0xff]
        %v875 = vld [vmem:[%s843 + $0xf8] sm:$0xff]
        %876 = vmatpush.msra.mxu0 %v874
        %877 = vmatpush.msra.mxu0 %v872
        %878 = vmatpush.msra.mxu0 %v870
        %879 = vmatpush.msra.mxu0 %v868
        %880 = vmatpush.msra.mxu0 %v866
        %881 = vmatpush.msra.mxu0 %v864
        %882 = vmatpush.msra.mxu0 %v862
        %883 = vmatpush.msra.mxu0 %v860
        %884 = vmatpush.msra.mxu0 %v858
        %885 = vmatpush.msra.mxu0 %v856
        %886 = vmatpush.msra.mxu0 %v854
        %887 = vmatpush.msra.mxu0 %v852
        %888 = vmatpush.msra.mxu0 %v850
        %889 = vmatpush.msra.mxu0 %v848
        %890 = vmatpush.msra.mxu0 %v846
        %891 = vmatpush.msra.mxu0 %v844
        %892 = vmatmul.f32.gmra.mxu0 %v811
        %v893 = vpop.f32.mrf.mxu0
        %v894 = vadd.f32 0.0, %v893
        %895 = vmatmul.f32.gmra.mxu0 %v812
        %v896 = vpop.f32.mrf.mxu0
        %v897 = vadd.f32 0.0, %v896
        %898 = vmatmul.f32.gmra.mxu0 %v813
        %v899 = vpop.f32.mrf.mxu0
        %v900 = vadd.f32 0.0, %v899
        %901 = vmatmul.f32.gmra.mxu0 %v814
        %v902 = vpop.f32.mrf.mxu0
        %v903 = vadd.f32 0.0, %v902
        %904 = vmatmul.f32.gmra.mxu0 %v815
        %v905 = vpop.f32.mrf.mxu0
        %v906 = vadd.f32 0.0, %v905
        %907 = vmatmul.f32.gmra.mxu0 %v816
        %v908 = vpop.f32.mrf.mxu0
        %v909 = vadd.f32 0.0, %v908
        %910 = vmatmul.f32.gmra.mxu0 %v817
        %v911 = vpop.f32.mrf.mxu0
        %v912 = vadd.f32 0.0, %v911
        %913 = vmatmul.f32.gmra.mxu0 %v818
        %v914 = vpop.f32.mrf.mxu0
        %v915 = vadd.f32 0.0, %v914
        %916 = vmatmul.f32.gmra.mxu0 %v819
        %v917 = vpop.f32.mrf.mxu0
        %v918 = vadd.f32 0.0, %v917
        %919 = vmatmul.f32.gmra.mxu0 %v820
        %v920 = vpop.f32.mrf.mxu0
        %v921 = vadd.f32 0.0, %v920
        %922 = vmatmul.f32.gmra.mxu0 %v821
        %v923 = vpop.f32.mrf.mxu0
        %v924 = vadd.f32 0.0, %v923
        %925 = vmatmul.f32.gmra.mxu0 %v822
        %v926 = vpop.f32.mrf.mxu0
        %v927 = vadd.f32 0.0, %v926
        %928 = vmatmul.f32.gmra.mxu0 %v823
        %v929 = vpop.f32.mrf.mxu0
        %v930 = vadd.f32 0.0, %v929
        %931 = vmatmul.f32.gmra.mxu0 %v824
        %v932 = vpop.f32.mrf.mxu0
        %v933 = vadd.f32 0.0, %v932
        %934 = vmatmul.f32.gmra.mxu0 %v825
        %v935 = vpop.f32.mrf.mxu0
        %v936 = vadd.f32 0.0, %v935
        %937 = vmatmul.f32.gmra.mxu0 %v826
        %v938 = vpop.f32.mrf.mxu0
        %v939 = vadd.f32 0.0, %v938
        %940 = vmatmul.f32.gmra.mxu0 %v827
        %v941 = vpop.f32.mrf.mxu0
        %v942 = vadd.f32 0.0, %v941
        %943 = vmatmul.f32.gmra.mxu0 %v828
        %v944 = vpop.f32.mrf.mxu0
        %v945 = vadd.f32 0.0, %v944
        %946 = vmatmul.f32.gmra.mxu0 %v829
        %v947 = vpop.f32.mrf.mxu0
        %v948 = vadd.f32 0.0, %v947
        %949 = vmatmul.f32.gmra.mxu0 %v830
        %v950 = vpop.f32.mrf.mxu0
        %v951 = vadd.f32 0.0, %v950
        %952 = vmatmul.f32.gmra.mxu0 %v831
        %v953 = vpop.f32.mrf.mxu0
        %v954 = vadd.f32 0.0, %v953
        %955 = vmatmul.f32.gmra.mxu0 %v832
        %v956 = vpop.f32.mrf.mxu0
        %v957 = vadd.f32 0.0, %v956
        %958 = vmatmul.f32.gmra.mxu0 %v833
        %v959 = vpop.f32.mrf.mxu0
        %v960 = vadd.f32 0.0, %v959
        %961 = vmatmul.f32.gmra.mxu0 %v834
        %v962 = vpop.f32.mrf.mxu0
        %v963 = vadd.f32 0.0, %v962
        %964 = vmatmul.f32.gmra.mxu0 %v835
        %v965 = vpop.f32.mrf.mxu0
        %v966 = vadd.f32 0.0, %v965
        %967 = vmatmul.f32.gmra.mxu0 %v836
        %v968 = vpop.f32.mrf.mxu0
        %v969 = vadd.f32 0.0, %v968
        %970 = vmatmul.f32.gmra.mxu0 %v837
        %v971 = vpop.f32.mrf.mxu0
        %v972 = vadd.f32 0.0, %v971
        %973 = vmatmul.f32.gmra.mxu0 %v838
        %v974 = vpop.f32.mrf.mxu0
        %v975 = vadd.f32 0.0, %v974
        %976 = vmatmul.f32.gmra.mxu0 %v839
        %v977 = vpop.f32.mrf.mxu0
        %v978 = vadd.f32 0.0, %v977
        %979 = vmatmul.f32.gmra.mxu0 %v840
        %v980 = vpop.f32.mrf.mxu0
        %v981 = vadd.f32 0.0, %v980
        %982 = vmatmul.f32.gmra.mxu0 %v841
        %v983 = vpop.f32.mrf.mxu0
        %v984 = vadd.f32 0.0, %v983
        %985 = vmatmul.f32.gmra.mxu0 %v842
        %v986 = vpop.f32.mrf.mxu0
        %v987 = vadd.f32 0.0, %v986
        %988 = vdwg.mxu0
        %989 = vmatpush.msra.mxu0 %v875
        %990 = vmatpush.msra.mxu0 %v873
        %991 = vmatpush.msra.mxu0 %v871
        %992 = vmatpush.msra.mxu0 %v869
        %993 = vmatpush.msra.mxu0 %v867
        %994 = vmatpush.msra.mxu0 %v865
        %995 = vmatpush.msra.mxu0 %v863
        %996 = vmatpush.msra.mxu0 %v861
        %997 = vmatpush.msra.mxu0 %v859
        %998 = vmatpush.msra.mxu0 %v857
        %999 = vmatpush.msra.mxu0 %v855
        %1000 = vmatpush.msra.mxu0 %v853
        %1001 = vmatpush.msra.mxu0 %v851
        %1002 = vmatpush.msra.mxu0 %v849
        %1003 = vmatpush.msra.mxu0 %v847
        %1004 = vmatpush.msra.mxu0 %v845
        %1005 = vmatmul.f32.gmra.mxu0 %v811
        %v1006 = vpop.f32.mrf.mxu0
        %v1007 = vadd.f32 0.0, %v1006
        %1008 = vmatmul.f32.gmra.mxu0 %v812
        %v1009 = vpop.f32.mrf.mxu0
        %v1010 = vadd.f32 0.0, %v1009
        %1011 = vmatmul.f32.gmra.mxu0 %v813
        %v1012 = vpop.f32.mrf.mxu0
        %v1013 = vadd.f32 0.0, %v1012
        %1014 = vmatmul.f32.gmra.mxu0 %v814
        %v1015 = vpop.f32.mrf.mxu0
        %v1016 = vadd.f32 0.0, %v1015
        %1017 = vmatmul.f32.gmra.mxu0 %v815
        %v1018 = vpop.f32.mrf.mxu0
        %v1019 = vadd.f32 0.0, %v1018
        %1020 = vmatmul.f32.gmra.mxu0 %v816
        %v1021 = vpop.f32.mrf.mxu0
        %v1022 = vadd.f32 0.0, %v1021
        %1023 = vmatmul.f32.gmra.mxu0 %v817
        %v1024 = vpop.f32.mrf.mxu0
        %v1025 = vadd.f32 0.0, %v1024
        %1026 = vmatmul.f32.gmra.mxu0 %v818
        %v1027 = vpop.f32.mrf.mxu0
        %v1028 = vadd.f32 0.0, %v1027
        %1029 = vmatmul.f32.gmra.mxu0 %v819
        %v1030 = vpop.f32.mrf.mxu0
        %v1031 = vadd.f32 0.0, %v1030
        %1032 = vmatmul.f32.gmra.mxu0 %v820
        %v1033 = vpop.f32.mrf.mxu0
        %v1034 = vadd.f32 0.0, %v1033
        %1035 = vmatmul.f32.gmra.mxu0 %v821
        %v1036 = vpop.f32.mrf.mxu0
        %v1037 = vadd.f32 0.0, %v1036
        %1038 = vmatmul.f32.gmra.mxu0 %v822
        %v1039 = vpop.f32.mrf.mxu0
        %v1040 = vadd.f32 0.0, %v1039
        %1041 = vmatmul.f32.gmra.mxu0 %v823
        %v1042 = vpop.f32.mrf.mxu0
        %v1043 = vadd.f32 0.0, %v1042
        %1044 = vmatmul.f32.gmra.mxu0 %v824
        %v1045 = vpop.f32.mrf.mxu0
        %v1046 = vadd.f32 0.0, %v1045
        %1047 = vmatmul.f32.gmra.mxu0 %v825
        %v1048 = vpop.f32.mrf.mxu0
        %v1049 = vadd.f32 0.0, %v1048
        %1050 = vmatmul.f32.gmra.mxu0 %v826
        %v1051 = vpop.f32.mrf.mxu0
        %v1052 = vadd.f32 0.0, %v1051
        %1053 = vmatmul.f32.gmra.mxu0 %v827
        %v1054 = vpop.f32.mrf.mxu0
        %v1055 = vadd.f32 0.0, %v1054
        %1056 = vmatmul.f32.gmra.mxu0 %v828
        %v1057 = vpop.f32.mrf.mxu0
        %v1058 = vadd.f32 0.0, %v1057
        %1059 = vmatmul.f32.gmra.mxu0 %v829
        %v1060 = vpop.f32.mrf.mxu0
        %v1061 = vadd.f32 0.0, %v1060
        %1062 = vmatmul.f32.gmra.mxu0 %v830
        %v1063 = vpop.f32.mrf.mxu0
        %v1064 = vadd.f32 0.0, %v1063
        %1065 = vmatmul.f32.gmra.mxu0 %v831
        %v1066 = vpop.f32.mrf.mxu0
        %v1067 = vadd.f32 0.0, %v1066
        %1068 = vmatmul.f32.gmra.mxu0 %v832
        %v1069 = vpop.f32.mrf.mxu0
        %v1070 = vadd.f32 0.0, %v1069
        %1071 = vmatmul.f32.gmra.mxu0 %v833
        %v1072 = vpop.f32.mrf.mxu0
        %v1073 = vadd.f32 0.0, %v1072
        %1074 = vmatmul.f32.gmra.mxu0 %v834
        %v1075 = vpop.f32.mrf.mxu0
        %v1076 = vadd.f32 0.0, %v1075
        %1077 = vmatmul.f32.gmra.mxu0 %v835
        %v1078 = vpop.f32.mrf.mxu0
        %v1079 = vadd.f32 0.0, %v1078
        %1080 = vmatmul.f32.gmra.mxu0 %v836
        %v1081 = vpop.f32.mrf.mxu0
        %v1082 = vadd.f32 0.0, %v1081
        %1083 = vmatmul.f32.gmra.mxu0 %v837
        %v1084 = vpop.f32.mrf.mxu0
        %v1085 = vadd.f32 0.0, %v1084
        %1086 = vmatmul.f32.gmra.mxu0 %v838
        %v1087 = vpop.f32.mrf.mxu0
        %v1088 = vadd.f32 0.0, %v1087
        %1089 = vmatmul.f32.gmra.mxu0 %v839
        %v1090 = vpop.f32.mrf.mxu0
        %v1091 = vadd.f32 0.0, %v1090
        %1092 = vmatmul.f32.gmra.mxu0 %v840
        %v1093 = vpop.f32.mrf.mxu0
        %v1094 = vadd.f32 0.0, %v1093
        %1095 = vmatmul.f32.gmra.mxu0 %v841
        %v1096 = vpop.f32.mrf.mxu0
        %v1097 = vadd.f32 0.0, %v1096
        %1098 = vmatmul.f32.gmra.mxu0 %v842
        %v1099 = vpop.f32.mrf.mxu0
        %v1100 = vadd.f32 0.0, %v1099
        %1101 = vdwg.mxu0
        %v1102 = vadd.f32 %v747, %v894
        %v1103 = vadd.f32 %v748, %v1007
        %v1104 = vadd.f32 %v749, %v897
        %v1105 = vadd.f32 %v750, %v1010
        %v1106 = vadd.f32 %v751, %v900
        %v1107 = vadd.f32 %v752, %v1013
        %v1108 = vadd.f32 %v753, %v903
        %v1109 = vadd.f32 %v754, %v1016
        %v1110 = vadd.f32 %v755, %v906
        %v1111 = vadd.f32 %v756, %v1019
        %v1112 = vadd.f32 %v757, %v909
        %v1113 = vadd.f32 %v758, %v1022
        %v1114 = vadd.f32 %v759, %v912
        %v1115 = vadd.f32 %v760, %v1025
        %v1116 = vadd.f32 %v761, %v915
        %v1117 = vadd.f32 %v762, %v1028
        %v1118 = vadd.f32 %v763, %v918
        %v1119 = vadd.f32 %v764, %v1031
        %v1120 = vadd.f32 %v765, %v921
        %v1121 = vadd.f32 %v766, %v1034
        %v1122 = vadd.f32 %v767, %v924
        %v1123 = vadd.f32 %v768, %v1037
        %v1124 = vadd.f32 %v769, %v927
        %v1125 = vadd.f32 %v770, %v1040
        %v1126 = vadd.f32 %v771, %v930
        %v1127 = vadd.f32 %v772, %v1043
        %v1128 = vadd.f32 %v773, %v933
        %v1129 = vadd.f32 %v774, %v1046
        %v1130 = vadd.f32 %v775, %v936
        %v1131 = vadd.f32 %v776, %v1049
        %v1132 = vadd.f32 %v777, %v939
        %v1133 = vadd.f32 %v778, %v1052
        %v1134 = vadd.f32 %v779, %v942
        %v1135 = vadd.f32 %v780, %v1055
        %v1136 = vadd.f32 %v781, %v945
        %v1137 = vadd.f32 %v782, %v1058
        %v1138 = vadd.f32 %v783, %v948
        %v1139 = vadd.f32 %v784, %v1061
        %v1140 = vadd.f32 %v785, %v951
        %v1141 = vadd.f32 %v786, %v1064
        %v1142 = vadd.f32 %v787, %v954
        %v1143 = vadd.f32 %v788, %v1067
        %v1144 = vadd.f32 %v789, %v957
        %v1145 = vadd.f32 %v790, %v1070
        %v1146 = vadd.f32 %v791, %v960
        %v1147 = vadd.f32 %v792, %v1073
        %v1148 = vadd.f32 %v793, %v963
        %v1149 = vadd.f32 %v794, %v1076
        %v1150 = vadd.f32 %v795, %v966
        %v1151 = vadd.f32 %v796, %v1079
        %v1152 = vadd.f32 %v797, %v969
        %v1153 = vadd.f32 %v798, %v1082
        %v1154 = vadd.f32 %v799, %v972
        %v1155 = vadd.f32 %v800, %v1085
        %v1156 = vadd.f32 %v801, %v975
        %v1157 = vadd.f32 %v802, %v1088
        %v1158 = vadd.f32 %v803, %v978
        %v1159 = vadd.f32 %v804, %v1091
        %v1160 = vadd.f32 %v805, %v981
        %v1161 = vadd.f32 %v806, %v1094
        %v1162 = vadd.f32 %v807, %v984
        %v1163 = vadd.f32 %v808, %v1097
        %v1164 = vadd.f32 %v809, %v987
        %v1165 = vadd.f32 %v810, %v1100
        %1166 = vst [vmem:[#allocation2] sm:$0xff] %v1102
        %1167 = vst [vmem:[#allocation2 + $0x8] sm:$0xff] %v1103
        %1168 = vst [vmem:[#allocation2 + $0x10] sm:$0xff] %v1104
        %1169 = vst [vmem:[#allocation2 + $0x18] sm:$0xff] %v1105
        %1170 = vst [vmem:[#allocation2 + $0x20] sm:$0xff] %v1106
        %1171 = vst [vmem:[#allocation2 + $0x28] sm:$0xff] %v1107
        %1172 = vst [vmem:[#allocation2 + $0x30] sm:$0xff] %v1108
        %1173 = vst [vmem:[#allocation2 + $0x38] sm:$0xff] %v1109
        %1174 = vst [vmem:[#allocation2 + $0x40] sm:$0xff] %v1110
        %1175 = vst [vmem:[#allocation2 + $0x48] sm:$0xff] %v1111
        %1176 = vst [vmem:[#allocation2 + $0x50] sm:$0xff] %v1112
        %1177 = vst [vmem:[#allocation2 + $0x58] sm:$0xff] %v1113
        %1178 = vst [vmem:[#allocation2 + $0x60] sm:$0xff] %v1114
        %1179 = vst [vmem:[#allocation2 + $0x68] sm:$0xff] %v1115
        %1180 = vst [vmem:[#allocation2 + $0x70] sm:$0xff] %v1116
        %1181 = vst [vmem:[#allocation2 + $0x78] sm:$0xff] %v1117
        %1182 = vst [vmem:[#allocation2 + $0x80] sm:$0xff] %v1118
        %1183 = vst [vmem:[#allocation2 + $0x88] sm:$0xff] %v1119
        %1184 = vst [vmem:[#allocation2 + $0x90] sm:$0xff] %v1120
        %1185 = vst [vmem:[#allocation2 + $0x98] sm:$0xff] %v1121
        %1186 = vst [vmem:[#allocation2 + $0xa0] sm:$0xff] %v1122
        %1187 = vst [vmem:[#allocation2 + $0xa8] sm:$0xff] %v1123
        %1188 = vst [vmem:[#allocation2 + $0xb0] sm:$0xff] %v1124
        %1189 = vst [vmem:[#allocation2 + $0xb8] sm:$0xff] %v1125
        %1190 = vst [vmem:[#allocation2 + $0xc0] sm:$0xff] %v1126
        %1191 = vst [vmem:[#allocation2 + $0xc8] sm:$0xff] %v1127
        %1192 = vst [vmem:[#allocation2 + $0xd0] sm:$0xff] %v1128
        %1193 = vst [vmem:[#allocation2 + $0xd8] sm:$0xff] %v1129
        %1194 = vst [vmem:[#allocation2 + $0xe0] sm:$0xff] %v1130
        %1195 = vst [vmem:[#allocation2 + $0xe8] sm:$0xff] %v1131
        %1196 = vst [vmem:[#allocation2 + $0xf0] sm:$0xff] %v1132
        %1197 = vst [vmem:[#allocation2 + $0xf8] sm:$0xff] %v1133
        %1198 = vst [vmem:[#allocation2 + $0x100] sm:$0xff] %v1134
        %1199 = vst [vmem:[#allocation2 + $0x108] sm:$0xff] %v1135
        %1200 = vst [vmem:[#allocation2 + $0x110] sm:$0xff] %v1136
        %1201 = vst [vmem:[#allocation2 + $0x118] sm:$0xff] %v1137
        %1202 = vst [vmem:[#allocation2 + $0x120] sm:$0xff] %v1138
        %1203 = vst [vmem:[#allocation2 + $0x128] sm:$0xff] %v1139
        %1204 = vst [vmem:[#allocation2 + $0x130] sm:$0xff] %v1140
        %1205 = vst [vmem:[#allocation2 + $0x138] sm:$0xff] %v1141
        %1206 = vst [vmem:[#allocation2 + $0x140] sm:$0xff] %v1142
        %1207 = vst [vmem:[#allocation2 + $0x148] sm:$0xff] %v1143
        %1208 = vst [vmem:[#allocation2 + $0x150] sm:$0xff] %v1144
        %1209 = vst [vmem:[#allocation2 + $0x158] sm:$0xff] %v1145
        %1210 = vst [vmem:[#allocation2 + $0x160] sm:$0xff] %v1146
        %1211 = vst [vmem:[#allocation2 + $0x168] sm:$0xff] %v1147
        %1212 = vst [vmem:[#allocation2 + $0x170] sm:$0xff] %v1148
        %1213 = vst [vmem:[#allocation2 + $0x178] sm:$0xff] %v1149
        %1214 = vst [vmem:[#allocation2 + $0x180] sm:$0xff] %v1150
        %1215 = vst [vmem:[#allocation2 + $0x188] sm:$0xff] %v1151
        %1216 = vst [vmem:[#allocation2 + $0x190] sm:$0xff] %v1152
        %1217 = vst [vmem:[#allocation2 + $0x198] sm:$0xff] %v1153
        %1218 = vst [vmem:[#allocation2 + $0x1a0] sm:$0xff] %v1154
        %1219 = vst [vmem:[#allocation2 + $0x1a8] sm:$0xff] %v1155
        %1220 = vst [vmem:[#allocation2 + $0x1b0] sm:$0xff] %v1156
        %1221 = vst [vmem:[#allocation2 + $0x1b8] sm:$0xff] %v1157
        %1222 = vst [vmem:[#allocation2 + $0x1c0] sm:$0xff] %v1158
        %1223 = vst [vmem:[#allocation2 + $0x1c8] sm:$0xff] %v1159
        %1224 = vst [vmem:[#allocation2 + $0x1d0] sm:$0xff] %v1160
        %1225 = vst [vmem:[#allocation2 + $0x1d8] sm:$0xff] %v1161
        %1226 = vst [vmem:[#allocation2 + $0x1e0] sm:$0xff] %v1162
        %1227 = vst [vmem:[#allocation2 + $0x1e8] sm:$0xff] %v1163
        %1228 = vst [vmem:[#allocation2 + $0x1f0] sm:$0xf] %v1164
        %1229 = vst [vmem:[#allocation2 + $0x1f8] sm:$0xf] %v1165
        %v1230 = vld [vmem:[#allocation2] sm:$0xff]
        %v1231 = vld [vmem:[#allocation2 + $0x8] sm:$0xff]
        %v1232 = vld [vmem:[#allocation2 + $0x10] sm:$0xff]
        %v1233 = vld [vmem:[#allocation2 + $0x18] sm:$0xff]
        %v1234 = vld [vmem:[#allocation2 + $0x20] sm:$0xff]
        %v1235 = vld [vmem:[#allocation2 + $0x28] sm:$0xff]
        %v1236 = vld [vmem:[#allocation2 + $0x30] sm:$0xff]
        %v1237 = vld [vmem:[#allocation2 + $0x38] sm:$0xff]
        %v1238 = vld [vmem:[#allocation2 + $0x40] sm:$0xff]
        %v1239 = vld [vmem:[#allocation2 + $0x48] sm:$0xff]
        %v1240 = vld [vmem:[#allocation2 + $0x50] sm:$0xff]
        %v1241 = vld [vmem:[#allocation2 + $0x58] sm:$0xff]
        %v1242 = vld [vmem:[#allocation2 + $0x60] sm:$0xff]
        %v1243 = vld [vmem:[#allocation2 + $0x68] sm:$0xff]
        %v1244 = vld [vmem:[#allocation2 + $0x70] sm:$0xff]
        %v1245 = vld [vmem:[#allocation2 + $0x78] sm:$0xff]
        %v1246 = vld [vmem:[#allocation2 + $0x80] sm:$0xff]
        %v1247 = vld [vmem:[#allocation2 + $0x88] sm:$0xff]
        %v1248 = vld [vmem:[#allocation2 + $0x90] sm:$0xff]
        %v1249 = vld [vmem:[#allocation2 + $0x98] sm:$0xff]
        %v1250 = vld [vmem:[#allocation2 + $0xa0] sm:$0xff]
        %v1251 = vld [vmem:[#allocation2 + $0xa8] sm:$0xff]
        %v1252 = vld [vmem:[#allocation2 + $0xb0] sm:$0xff]
        %v1253 = vld [vmem:[#allocation2 + $0xb8] sm:$0xff]
        %v1254 = vld [vmem:[#allocation2 + $0xc0] sm:$0xff]
        %v1255 = vld [vmem:[#allocation2 + $0xc8] sm:$0xff]
        %v1256 = vld [vmem:[#allocation2 + $0xd0] sm:$0xff]
        %v1257 = vld [vmem:[#allocation2 + $0xd8] sm:$0xff]
        %v1258 = vld [vmem:[#allocation2 + $0xe0] sm:$0xff]
        %v1259 = vld [vmem:[#allocation2 + $0xe8] sm:$0xff]
        %v1260 = vld [vmem:[#allocation2 + $0xf0] sm:$0xff]
        %v1261 = vld [vmem:[#allocation2 + $0xf8] sm:$0xff]
        %v1262 = vld [vmem:[#allocation2 + $0x100] sm:$0xff]
        %v1263 = vld [vmem:[#allocation2 + $0x108] sm:$0xff]
        %v1264 = vld [vmem:[#allocation2 + $0x110] sm:$0xff]
        %v1265 = vld [vmem:[#allocation2 + $0x118] sm:$0xff]
        %v1266 = vld [vmem:[#allocation2 + $0x120] sm:$0xff]
        %v1267 = vld [vmem:[#allocation2 + $0x128] sm:$0xff]
        %v1268 = vld [vmem:[#allocation2 + $0x130] sm:$0xff]
        %v1269 = vld [vmem:[#allocation2 + $0x138] sm:$0xff]
        %v1270 = vld [vmem:[#allocation2 + $0x140] sm:$0xff]
        %v1271 = vld [vmem:[#allocation2 + $0x148] sm:$0xff]
        %v1272 = vld [vmem:[#allocation2 + $0x150] sm:$0xff]
        %v1273 = vld [vmem:[#allocation2 + $0x158] sm:$0xff]
        %v1274 = vld [vmem:[#allocation2 + $0x160] sm:$0xff]
        %v1275 = vld [vmem:[#allocation2 + $0x168] sm:$0xff]
        %v1276 = vld [vmem:[#allocation2 + $0x170] sm:$0xff]
        %v1277 = vld [vmem:[#allocation2 + $0x178] sm:$0xff]
        %v1278 = vld [vmem:[#allocation2 + $0x180] sm:$0xff]
        %v1279 = vld [vmem:[#allocation2 + $0x188] sm:$0xff]
        %v1280 = vld [vmem:[#allocation2 + $0x190] sm:$0xff]
        %v1281 = vld [vmem:[#allocation2 + $0x198] sm:$0xff]
        %v1282 = vld [vmem:[#allocation2 + $0x1a0] sm:$0xff]
        %v1283 = vld [vmem:[#allocation2 + $0x1a8] sm:$0xff]
        %v1284 = vld [vmem:[#allocation2 + $0x1b0] sm:$0xff]
        %v1285 = vld [vmem:[#allocation2 + $0x1b8] sm:$0xff]
        %v1286 = vld [vmem:[#allocation2 + $0x1c0] sm:$0xff]
        %v1287 = vld [vmem:[#allocation2 + $0x1c8] sm:$0xff]
        %v1288 = vld [vmem:[#allocation2 + $0x1d0] sm:$0xff]
        %v1289 = vld [vmem:[#allocation2 + $0x1d8] sm:$0xff]
        %v1290 = vld [vmem:[#allocation2 + $0x1e0] sm:$0xff]
        %v1291 = vld [vmem:[#allocation2 + $0x1e8] sm:$0xff]
        %v1292 = vld [vmem:[#allocation2 + $0x1f0] sm:$0xf]
        %v1293 = vld [vmem:[#allocation2 + $0x1f8] sm:$0xf]
        %v1294 = vld [vmem:[%s385 + $0x2] sm:$0xff]
        %v1295 = vld [vmem:[%s385 + $0xa] sm:$0xff]
        %v1296 = vld [vmem:[%s385 + $0x12] sm:$0xff]
        %v1297 = vld [vmem:[%s385 + $0x1a] sm:$0xff]
        %v1298 = vld [vmem:[%s385 + $0x22] sm:$0xff]
        %v1299 = vld [vmem:[%s385 + $0x2a] sm:$0xff]
        %v1300 = vld [vmem:[%s385 + $0x32] sm:$0xff]
        %v1301 = vld [vmem:[%s385 + $0x3a] sm:$0xff]
        %v1302 = vld [vmem:[%s385 + $0x42] sm:$0xff]
        %v1303 = vld [vmem:[%s385 + $0x4a] sm:$0xff]
        %v1304 = vld [vmem:[%s385 + $0x52] sm:$0xff]
        %v1305 = vld [vmem:[%s385 + $0x5a] sm:$0xff]
        %v1306 = vld [vmem:[%s385 + $0x62] sm:$0xff]
        %v1307 = vld [vmem:[%s385 + $0x6a] sm:$0xff]
        %v1308 = vld [vmem:[%s385 + $0x72] sm:$0xff]
        %v1309 = vld [vmem:[%s385 + $0x7a] sm:$0xff]
        %v1310 = vld [vmem:[%s385 + $0x82] sm:$0xff]
        %v1311 = vld [vmem:[%s385 + $0x8a] sm:$0xff]
        %v1312 = vld [vmem:[%s385 + $0x92] sm:$0xff]
        %v1313 = vld [vmem:[%s385 + $0x9a] sm:$0xff]
        %v1314 = vld [vmem:[%s385 + $0xa2] sm:$0xff]
        %v1315 = vld [vmem:[%s385 + $0xaa] sm:$0xff]
        %v1316 = vld [vmem:[%s385 + $0xb2] sm:$0xff]
        %v1317 = vld [vmem:[%s385 + $0xba] sm:$0xff]
        %v1318 = vld [vmem:[%s385 + $0xc2] sm:$0xff]
        %v1319 = vld [vmem:[%s385 + $0xca] sm:$0xff]
        %v1320 = vld [vmem:[%s385 + $0xd2] sm:$0xff]
        %v1321 = vld [vmem:[%s385 + $0xda] sm:$0xff]
        %v1322 = vld [vmem:[%s385 + $0xe2] sm:$0xff]
        %v1323 = vld [vmem:[%s385 + $0xea] sm:$0xff]
        %v1324 = vld [vmem:[%s385 + $0xf2] sm:$0xff]
        %v1325 = vld [vmem:[%s385 + $0xfa] sm:$0xf]
        %s1326 = scalar_lea.vmem %s1, 512
        %v1327 = vld [vmem:[%s1326] sm:$0xff]
        %v1328 = vld [vmem:[%s1326 + $0x8] sm:$0xff]
        %v1329 = vld [vmem:[%s1326 + $0x10] sm:$0xff]
        %v1330 = vld [vmem:[%s1326 + $0x18] sm:$0xff]
        %v1331 = vld [vmem:[%s1326 + $0x20] sm:$0xff]
        %v1332 = vld [vmem:[%s1326 + $0x28] sm:$0xff]
        %v1333 = vld [vmem:[%s1326 + $0x30] sm:$0xff]
        %v1334 = vld [vmem:[%s1326 + $0x38] sm:$0xff]
        %v1335 = vld [vmem:[%s1326 + $0x40] sm:$0xff]
        %v1336 = vld [vmem:[%s1326 + $0x48] sm:$0xff]
        %v1337 = vld [vmem:[%s1326 + $0x50] sm:$0xff]
        %v1338 = vld [vmem:[%s1326 + $0x58] sm:$0xff]
        %v1339 = vld [vmem:[%s1326 + $0x60] sm:$0xff]
        %v1340 = vld [vmem:[%s1326 + $0x68] sm:$0xff]
        %v1341 = vld [vmem:[%s1326 + $0x70] sm:$0xff]
        %v1342 = vld [vmem:[%s1326 + $0x78] sm:$0xff]
        %v1343 = vld [vmem:[%s1326 + $0x80] sm:$0xff]
        %v1344 = vld [vmem:[%s1326 + $0x88] sm:$0xff]
        %v1345 = vld [vmem:[%s1326 + $0x90] sm:$0xff]
        %v1346 = vld [vmem:[%s1326 + $0x98] sm:$0xff]
        %v1347 = vld [vmem:[%s1326 + $0xa0] sm:$0xff]
        %v1348 = vld [vmem:[%s1326 + $0xa8] sm:$0xff]
        %v1349 = vld [vmem:[%s1326 + $0xb0] sm:$0xff]
        %v1350 = vld [vmem:[%s1326 + $0xb8] sm:$0xff]
        %v1351 = vld [vmem:[%s1326 + $0xc0] sm:$0xff]
        %v1352 = vld [vmem:[%s1326 + $0xc8] sm:$0xff]
        %v1353 = vld [vmem:[%s1326 + $0xd0] sm:$0xff]
        %v1354 = vld [vmem:[%s1326 + $0xd8] sm:$0xff]
        %v1355 = vld [vmem:[%s1326 + $0xe0] sm:$0xff]
        %v1356 = vld [vmem:[%s1326 + $0xe8] sm:$0xff]
        %v1357 = vld [vmem:[%s1326 + $0xf0] sm:$0xff]
        %v1358 = vld [vmem:[%s1326 + $0xf8] sm:$0xff]
        %1359 = vmatpush.msra.mxu0 %v1357
        %1360 = vmatpush.msra.mxu0 %v1355
        %1361 = vmatpush.msra.mxu0 %v1353
        %1362 = vmatpush.msra.mxu0 %v1351
        %1363 = vmatpush.msra.mxu0 %v1349
        %1364 = vmatpush.msra.mxu0 %v1347
        %1365 = vmatpush.msra.mxu0 %v1345
        %1366 = vmatpush.msra.mxu0 %v1343
        %1367 = vmatpush.msra.mxu0 %v1341
        %1368 = vmatpush.msra.mxu0 %v1339
        %1369 = vmatpush.msra.mxu0 %v1337
        %1370 = vmatpush.msra.mxu0 %v1335
        %1371 = vmatpush.msra.mxu0 %v1333
        %1372 = vmatpush.msra.mxu0 %v1331
        %1373 = vmatpush.msra.mxu0 %v1329
        %1374 = vmatpush.msra.mxu0 %v1327
        %1375 = vmatmul.f32.gmra.mxu0 %v1294
        %v1376 = vpop.f32.mrf.mxu0
        %v1377 = vadd.f32 0.0, %v1376
        %1378 = vmatmul.f32.gmra.mxu0 %v1295
        %v1379 = vpop.f32.mrf.mxu0
        %v1380 = vadd.f32 0.0, %v1379
        %1381 = vmatmul.f32.gmra.mxu0 %v1296
        %v1382 = vpop.f32.mrf.mxu0
        %v1383 = vadd.f32 0.0, %v1382
        %1384 = vmatmul.f32.gmra.mxu0 %v1297
        %v1385 = vpop.f32.mrf.mxu0
        %v1386 = vadd.f32 0.0, %v1385
        %1387 = vmatmul.f32.gmra.mxu0 %v1298
        %v1388 = vpop.f32.mrf.mxu0
        %v1389 = vadd.f32 0.0, %v1388
        %1390 = vmatmul.f32.gmra.mxu0 %v1299
        %v1391 = vpop.f32.mrf.mxu0
        %v1392 = vadd.f32 0.0, %v1391
        %1393 = vmatmul.f32.gmra.mxu0 %v1300
        %v1394 = vpop.f32.mrf.mxu0
        %v1395 = vadd.f32 0.0, %v1394
        %1396 = vmatmul.f32.gmra.mxu0 %v1301
        %v1397 = vpop.f32.mrf.mxu0
        %v1398 = vadd.f32 0.0, %v1397
        %1399 = vmatmul.f32.gmra.mxu0 %v1302
        %v1400 = vpop.f32.mrf.mxu0
        %v1401 = vadd.f32 0.0, %v1400
        %1402 = vmatmul.f32.gmra.mxu0 %v1303
        %v1403 = vpop.f32.mrf.mxu0
        %v1404 = vadd.f32 0.0, %v1403
        %1405 = vmatmul.f32.gmra.mxu0 %v1304
        %v1406 = vpop.f32.mrf.mxu0
        %v1407 = vadd.f32 0.0, %v1406
        %1408 = vmatmul.f32.gmra.mxu0 %v1305
        %v1409 = vpop.f32.mrf.mxu0
        %v1410 = vadd.f32 0.0, %v1409
        %1411 = vmatmul.f32.gmra.mxu0 %v1306
        %v1412 = vpop.f32.mrf.mxu0
        %v1413 = vadd.f32 0.0, %v1412
        %1414 = vmatmul.f32.gmra.mxu0 %v1307
        %v1415 = vpop.f32.mrf.mxu0
        %v1416 = vadd.f32 0.0, %v1415
        %1417 = vmatmul.f32.gmra.mxu0 %v1308
        %v1418 = vpop.f32.mrf.mxu0
        %v1419 = vadd.f32 0.0, %v1418
        %1420 = vmatmul.f32.gmra.mxu0 %v1309
        %v1421 = vpop.f32.mrf.mxu0
        %v1422 = vadd.f32 0.0, %v1421
        %1423 = vmatmul.f32.gmra.mxu0 %v1310
        %v1424 = vpop.f32.mrf.mxu0
        %v1425 = vadd.f32 0.0, %v1424
        %1426 = vmatmul.f32.gmra.mxu0 %v1311
        %v1427 = vpop.f32.mrf.mxu0
        %v1428 = vadd.f32 0.0, %v1427
        %1429 = vmatmul.f32.gmra.mxu0 %v1312
        %v1430 = vpop.f32.mrf.mxu0
        %v1431 = vadd.f32 0.0, %v1430
        %1432 = vmatmul.f32.gmra.mxu0 %v1313
        %v1433 = vpop.f32.mrf.mxu0
        %v1434 = vadd.f32 0.0, %v1433
        %1435 = vmatmul.f32.gmra.mxu0 %v1314
        %v1436 = vpop.f32.mrf.mxu0
        %v1437 = vadd.f32 0.0, %v1436
        %1438 = vmatmul.f32.gmra.mxu0 %v1315
        %v1439 = vpop.f32.mrf.mxu0
        %v1440 = vadd.f32 0.0, %v1439
        %1441 = vmatmul.f32.gmra.mxu0 %v1316
        %v1442 = vpop.f32.mrf.mxu0
        %v1443 = vadd.f32 0.0, %v1442
        %1444 = vmatmul.f32.gmra.mxu0 %v1317
        %v1445 = vpop.f32.mrf.mxu0
        %v1446 = vadd.f32 0.0, %v1445
        %1447 = vmatmul.f32.gmra.mxu0 %v1318
        %v1448 = vpop.f32.mrf.mxu0
        %v1449 = vadd.f32 0.0, %v1448
        %1450 = vmatmul.f32.gmra.mxu0 %v1319
        %v1451 = vpop.f32.mrf.mxu0
        %v1452 = vadd.f32 0.0, %v1451
        %1453 = vmatmul.f32.gmra.mxu0 %v1320
        %v1454 = vpop.f32.mrf.mxu0
        %v1455 = vadd.f32 0.0, %v1454
        %1456 = vmatmul.f32.gmra.mxu0 %v1321
        %v1457 = vpop.f32.mrf.mxu0
        %v1458 = vadd.f32 0.0, %v1457
        %1459 = vmatmul.f32.gmra.mxu0 %v1322
        %v1460 = vpop.f32.mrf.mxu0
        %v1461 = vadd.f32 0.0, %v1460
        %1462 = vmatmul.f32.gmra.mxu0 %v1323
        %v1463 = vpop.f32.mrf.mxu0
        %v1464 = vadd.f32 0.0, %v1463
        %1465 = vmatmul.f32.gmra.mxu0 %v1324
        %v1466 = vpop.f32.mrf.mxu0
        %v1467 = vadd.f32 0.0, %v1466
        %1468 = vmatmul.f32.gmra.mxu0 %v1325
        %v1469 = vpop.f32.mrf.mxu0
        %v1470 = vadd.f32 0.0, %v1469
        %1471 = vdwg.mxu0
        %1472 = vmatpush.msra.mxu0 %v1358
        %1473 = vmatpush.msra.mxu0 %v1356
        %1474 = vmatpush.msra.mxu0 %v1354
        %1475 = vmatpush.msra.mxu0 %v1352
        %1476 = vmatpush.msra.mxu0 %v1350
        %1477 = vmatpush.msra.mxu0 %v1348
        %1478 = vmatpush.msra.mxu0 %v1346
        %1479 = vmatpush.msra.mxu0 %v1344
        %1480 = vmatpush.msra.mxu0 %v1342
        %1481 = vmatpush.msra.mxu0 %v1340
        %1482 = vmatpush.msra.mxu0 %v1338
        %1483 = vmatpush.msra.mxu0 %v1336
        %1484 = vmatpush.msra.mxu0 %v1334
        %1485 = vmatpush.msra.mxu0 %v1332
        %1486 = vmatpush.msra.mxu0 %v1330
        %1487 = vmatpush.msra.mxu0 %v1328
        %1488 = vmatmul.f32.gmra.mxu0 %v1294
        %v1489 = vpop.f32.mrf.mxu0
        %v1490 = vadd.f32 0.0, %v1489
        %1491 = vmatmul.f32.gmra.mxu0 %v1295
        %v1492 = vpop.f32.mrf.mxu0
        %v1493 = vadd.f32 0.0, %v1492
        %1494 = vmatmul.f32.gmra.mxu0 %v1296
        %v1495 = vpop.f32.mrf.mxu0
        %v1496 = vadd.f32 0.0, %v1495
        %1497 = vmatmul.f32.gmra.mxu0 %v1297
        %v1498 = vpop.f32.mrf.mxu0
        %v1499 = vadd.f32 0.0, %v1498
        %1500 = vmatmul.f32.gmra.mxu0 %v1298
        %v1501 = vpop.f32.mrf.mxu0
        %v1502 = vadd.f32 0.0, %v1501
        %1503 = vmatmul.f32.gmra.mxu0 %v1299
        %v1504 = vpop.f32.mrf.mxu0
        %v1505 = vadd.f32 0.0, %v1504
        %1506 = vmatmul.f32.gmra.mxu0 %v1300
        %v1507 = vpop.f32.mrf.mxu0
        %v1508 = vadd.f32 0.0, %v1507
        %1509 = vmatmul.f32.gmra.mxu0 %v1301
        %v1510 = vpop.f32.mrf.mxu0
        %v1511 = vadd.f32 0.0, %v1510
        %1512 = vmatmul.f32.gmra.mxu0 %v1302
        %v1513 = vpop.f32.mrf.mxu0
        %v1514 = vadd.f32 0.0, %v1513
        %1515 = vmatmul.f32.gmra.mxu0 %v1303
        %v1516 = vpop.f32.mrf.mxu0
        %v1517 = vadd.f32 0.0, %v1516
        %1518 = vmatmul.f32.gmra.mxu0 %v1304
        %v1519 = vpop.f32.mrf.mxu0
        %v1520 = vadd.f32 0.0, %v1519
        %1521 = vmatmul.f32.gmra.mxu0 %v1305
        %v1522 = vpop.f32.mrf.mxu0
        %v1523 = vadd.f32 0.0, %v1522
        %1524 = vmatmul.f32.gmra.mxu0 %v1306
        %v1525 = vpop.f32.mrf.mxu0
        %v1526 = vadd.f32 0.0, %v1525
        %1527 = vmatmul.f32.gmra.mxu0 %v1307
        %v1528 = vpop.f32.mrf.mxu0
        %v1529 = vadd.f32 0.0, %v1528
        %1530 = vmatmul.f32.gmra.mxu0 %v1308
        %v1531 = vpop.f32.mrf.mxu0
        %v1532 = vadd.f32 0.0, %v1531
        %1533 = vmatmul.f32.gmra.mxu0 %v1309
        %v1534 = vpop.f32.mrf.mxu0
        %v1535 = vadd.f32 0.0, %v1534
        %1536 = vmatmul.f32.gmra.mxu0 %v1310
        %v1537 = vpop.f32.mrf.mxu0
        %v1538 = vadd.f32 0.0, %v1537
        %1539 = vmatmul.f32.gmra.mxu0 %v1311
        %v1540 = vpop.f32.mrf.mxu0
        %v1541 = vadd.f32 0.0, %v1540
        %1542 = vmatmul.f32.gmra.mxu0 %v1312
        %v1543 = vpop.f32.mrf.mxu0
        %v1544 = vadd.f32 0.0, %v1543
        %1545 = vmatmul.f32.gmra.mxu0 %v1313
        %v1546 = vpop.f32.mrf.mxu0
        %v1547 = vadd.f32 0.0, %v1546
        %1548 = vmatmul.f32.gmra.mxu0 %v1314
        %v1549 = vpop.f32.mrf.mxu0
        %v1550 = vadd.f32 0.0, %v1549
        %1551 = vmatmul.f32.gmra.mxu0 %v1315
        %v1552 = vpop.f32.mrf.mxu0
        %v1553 = vadd.f32 0.0, %v1552
        %1554 = vmatmul.f32.gmra.mxu0 %v1316
        %v1555 = vpop.f32.mrf.mxu0
        %v1556 = vadd.f32 0.0, %v1555
        %1557 = vmatmul.f32.gmra.mxu0 %v1317
        %v1558 = vpop.f32.mrf.mxu0
        %v1559 = vadd.f32 0.0, %v1558
        %1560 = vmatmul.f32.gmra.mxu0 %v1318
        %v1561 = vpop.f32.mrf.mxu0
        %v1562 = vadd.f32 0.0, %v1561
        %1563 = vmatmul.f32.gmra.mxu0 %v1319
        %v1564 = vpop.f32.mrf.mxu0
        %v1565 = vadd.f32 0.0, %v1564
        %1566 = vmatmul.f32.gmra.mxu0 %v1320
        %v1567 = vpop.f32.mrf.mxu0
        %v1568 = vadd.f32 0.0, %v1567
        %1569 = vmatmul.f32.gmra.mxu0 %v1321
        %v1570 = vpop.f32.mrf.mxu0
        %v1571 = vadd.f32 0.0, %v1570
        %1572 = vmatmul.f32.gmra.mxu0 %v1322
        %v1573 = vpop.f32.mrf.mxu0
        %v1574 = vadd.f32 0.0, %v1573
        %1575 = vmatmul.f32.gmra.mxu0 %v1323
        %v1576 = vpop.f32.mrf.mxu0
        %v1577 = vadd.f32 0.0, %v1576
        %1578 = vmatmul.f32.gmra.mxu0 %v1324
        %v1579 = vpop.f32.mrf.mxu0
        %v1580 = vadd.f32 0.0, %v1579
        %1581 = vmatmul.f32.gmra.mxu0 %v1325
        %v1582 = vpop.f32.mrf.mxu0
        %v1583 = vadd.f32 0.0, %v1582
        %1584 = vdwg.mxu0
        %v1585 = vadd.f32 %v1230, %v1377
        %v1586 = vadd.f32 %v1231, %v1490
        %v1587 = vadd.f32 %v1232, %v1380
        %v1588 = vadd.f32 %v1233, %v1493
        %v1589 = vadd.f32 %v1234, %v1383
        %v1590 = vadd.f32 %v1235, %v1496
        %v1591 = vadd.f32 %v1236, %v1386
        %v1592 = vadd.f32 %v1237, %v1499
        %v1593 = vadd.f32 %v1238, %v1389
        %v1594 = vadd.f32 %v1239, %v1502
        %v1595 = vadd.f32 %v1240, %v1392
        %v1596 = vadd.f32 %v1241, %v1505
        %v1597 = vadd.f32 %v1242, %v1395
        %v1598 = vadd.f32 %v1243, %v1508
        %v1599 = vadd.f32 %v1244, %v1398
        %v1600 = vadd.f32 %v1245, %v1511
        %v1601 = vadd.f32 %v1246, %v1401
        %v1602 = vadd.f32 %v1247, %v1514
        %v1603 = vadd.f32 %v1248, %v1404
        %v1604 = vadd.f32 %v1249, %v1517
        %v1605 = vadd.f32 %v1250, %v1407
        %v1606 = vadd.f32 %v1251, %v1520
        %v1607 = vadd.f32 %v1252, %v1410
        %v1608 = vadd.f32 %v1253, %v1523
        %v1609 = vadd.f32 %v1254, %v1413
        %v1610 = vadd.f32 %v1255, %v1526
        %v1611 = vadd.f32 %v1256, %v1416
        %v1612 = vadd.f32 %v1257, %v1529
        %v1613 = vadd.f32 %v1258, %v1419
        %v1614 = vadd.f32 %v1259, %v1532
        %v1615 = vadd.f32 %v1260, %v1422
        %v1616 = vadd.f32 %v1261, %v1535
        %v1617 = vadd.f32 %v1262, %v1425
        %v1618 = vadd.f32 %v1263, %v1538
        %v1619 = vadd.f32 %v1264, %v1428
        %v1620 = vadd.f32 %v1265, %v1541
        %v1621 = vadd.f32 %v1266, %v1431
        %v1622 = vadd.f32 %v1267, %v1544
        %v1623 = vadd.f32 %v1268, %v1434
        %v1624 = vadd.f32 %v1269, %v1547
        %v1625 = vadd.f32 %v1270, %v1437
        %v1626 = vadd.f32 %v1271, %v1550
        %v1627 = vadd.f32 %v1272, %v1440
        %v1628 = vadd.f32 %v1273, %v1553
        %v1629 = vadd.f32 %v1274, %v1443
        %v1630 = vadd.f32 %v1275, %v1556
        %v1631 = vadd.f32 %v1276, %v1446
        %v1632 = vadd.f32 %v1277, %v1559
        %v1633 = vadd.f32 %v1278, %v1449
        %v1634 = vadd.f32 %v1279, %v1562
        %v1635 = vadd.f32 %v1280, %v1452
        %v1636 = vadd.f32 %v1281, %v1565
        %v1637 = vadd.f32 %v1282, %v1455
        %v1638 = vadd.f32 %v1283, %v1568
        %v1639 = vadd.f32 %v1284, %v1458
        %v1640 = vadd.f32 %v1285, %v1571
        %v1641 = vadd.f32 %v1286, %v1461
        %v1642 = vadd.f32 %v1287, %v1574
        %v1643 = vadd.f32 %v1288, %v1464
        %v1644 = vadd.f32 %v1289, %v1577
        %v1645 = vadd.f32 %v1290, %v1467
        %v1646 = vadd.f32 %v1291, %v1580
        %v1647 = vadd.f32 %v1292, %v1470
        %v1648 = vadd.f32 %v1293, %v1583
        %1649 = vst [vmem:[#allocation2] sm:$0xff] %v1585
        %1650 = vst [vmem:[#allocation2 + $0x8] sm:$0xff] %v1586
        %1651 = vst [vmem:[#allocation2 + $0x10] sm:$0xff] %v1587
        %1652 = vst [vmem:[#allocation2 + $0x18] sm:$0xff] %v1588
        %1653 = vst [vmem:[#allocation2 + $0x20] sm:$0xff] %v1589
        %1654 = vst [vmem:[#allocation2 + $0x28] sm:$0xff] %v1590
        %1655 = vst [vmem:[#allocation2 + $0x30] sm:$0xff] %v1591
        %1656 = vst [vmem:[#allocation2 + $0x38] sm:$0xff] %v1592
        %1657 = vst [vmem:[#allocation2 + $0x40] sm:$0xff] %v1593
        %1658 = vst [vmem:[#allocation2 + $0x48] sm:$0xff] %v1594
        %1659 = vst [vmem:[#allocation2 + $0x50] sm:$0xff] %v1595
        %1660 = vst [vmem:[#allocation2 + $0x58] sm:$0xff] %v1596
        %1661 = vst [vmem:[#allocation2 + $0x60] sm:$0xff] %v1597
        %1662 = vst [vmem:[#allocation2 + $0x68] sm:$0xff] %v1598
        %1663 = vst [vmem:[#allocation2 + $0x70] sm:$0xff] %v1599
        %1664 = vst [vmem:[#allocation2 + $0x78] sm:$0xff] %v1600
        %1665 = vst [vmem:[#allocation2 + $0x80] sm:$0xff] %v1601
        %1666 = vst [vmem:[#allocation2 + $0x88] sm:$0xff] %v1602
        %1667 = vst [vmem:[#allocation2 + $0x90] sm:$0xff] %v1603
        %1668 = vst [vmem:[#allocation2 + $0x98] sm:$0xff] %v1604
        %1669 = vst [vmem:[#allocation2 + $0xa0] sm:$0xff] %v1605
        %1670 = vst [vmem:[#allocation2 + $0xa8] sm:$0xff] %v1606
        %1671 = vst [vmem:[#allocation2 + $0xb0] sm:$0xff] %v1607
        %1672 = vst [vmem:[#allocation2 + $0xb8] sm:$0xff] %v1608
        %1673 = vst [vmem:[#allocation2 + $0xc0] sm:$0xff] %v1609
        %1674 = vst [vmem:[#allocation2 + $0xc8] sm:$0xff] %v1610
        %1675 = vst [vmem:[#allocation2 + $0xd0] sm:$0xff] %v1611
        %1676 = vst [vmem:[#allocation2 + $0xd8] sm:$0xff] %v1612
        %1677 = vst [vmem:[#allocation2 + $0xe0] sm:$0xff] %v1613
        %1678 = vst [vmem:[#allocation2 + $0xe8] sm:$0xff] %v1614
        %1679 = vst [vmem:[#allocation2 + $0xf0] sm:$0xff] %v1615
        %1680 = vst [vmem:[#allocation2 + $0xf8] sm:$0xff] %v1616
        %1681 = vst [vmem:[#allocation2 + $0x100] sm:$0xff] %v1617
        %1682 = vst [vmem:[#allocation2 + $0x108] sm:$0xff] %v1618
        %1683 = vst [vmem:[#allocation2 + $0x110] sm:$0xff] %v1619
        %1684 = vst [vmem:[#allocation2 + $0x118] sm:$0xff] %v1620
        %1685 = vst [vmem:[#allocation2 + $0x120] sm:$0xff] %v1621
        %1686 = vst [vmem:[#allocation2 + $0x128] sm:$0xff] %v1622
        %1687 = vst [vmem:[#allocation2 + $0x130] sm:$0xff] %v1623
        %1688 = vst [vmem:[#allocation2 + $0x138] sm:$0xff] %v1624
        %1689 = vst [vmem:[#allocation2 + $0x140] sm:$0xff] %v1625
        %1690 = vst [vmem:[#allocation2 + $0x148] sm:$0xff] %v1626
        %1691 = vst [vmem:[#allocation2 + $0x150] sm:$0xff] %v1627
        %1692 = vst [vmem:[#allocation2 + $0x158] sm:$0xff] %v1628
        %1693 = vst [vmem:[#allocation2 + $0x160] sm:$0xff] %v1629
        %1694 = vst [vmem:[#allocation2 + $0x168] sm:$0xff] %v1630
        %1695 = vst [vmem:[#allocation2 + $0x170] sm:$0xff] %v1631
        %1696 = vst [vmem:[#allocation2 + $0x178] sm:$0xff] %v1632
        %1697 = vst [vmem:[#allocation2 + $0x180] sm:$0xff] %v1633
        %1698 = vst [vmem:[#allocation2 + $0x188] sm:$0xff] %v1634
        %1699 = vst [vmem:[#allocation2 + $0x190] sm:$0xff] %v1635
        %1700 = vst [vmem:[#allocation2 + $0x198] sm:$0xff] %v1636
        %1701 = vst [vmem:[#allocation2 + $0x1a0] sm:$0xff] %v1637
        %1702 = vst [vmem:[#allocation2 + $0x1a8] sm:$0xff] %v1638
        %1703 = vst [vmem:[#allocation2 + $0x1b0] sm:$0xff] %v1639
        %1704 = vst [vmem:[#allocation2 + $0x1b8] sm:$0xff] %v1640
        %1705 = vst [vmem:[#allocation2 + $0x1c0] sm:$0xff] %v1641
        %1706 = vst [vmem:[#allocation2 + $0x1c8] sm:$0xff] %v1642
        %1707 = vst [vmem:[#allocation2 + $0x1d0] sm:$0xff] %v1643
        %1708 = vst [vmem:[#allocation2 + $0x1d8] sm:$0xff] %v1644
        %1709 = vst [vmem:[#allocation2 + $0x1e0] sm:$0xff] %v1645
        %1710 = vst [vmem:[#allocation2 + $0x1e8] sm:$0xff] %v1646
        %1711 = vst [vmem:[#allocation2 + $0x1f0] sm:$0xf] %v1647
        %1712 = vst [vmem:[#allocation2 + $0x1f8] sm:$0xf] %v1648
        %v1713 = vld [vmem:[#allocation2] sm:$0xff]
        %v1714 = vld [vmem:[#allocation2 + $0x8] sm:$0xff]
        %v1715 = vld [vmem:[#allocation2 + $0x10] sm:$0xff]
        %v1716 = vld [vmem:[#allocation2 + $0x18] sm:$0xff]
        %v1717 = vld [vmem:[#allocation2 + $0x20] sm:$0xff]
        %v1718 = vld [vmem:[#allocation2 + $0x28] sm:$0xff]
        %v1719 = vld [vmem:[#allocation2 + $0x30] sm:$0xff]
        %v1720 = vld [vmem:[#allocation2 + $0x38] sm:$0xff]
        %v1721 = vld [vmem:[#allocation2 + $0x40] sm:$0xff]
        %v1722 = vld [vmem:[#allocation2 + $0x48] sm:$0xff]
        %v1723 = vld [vmem:[#allocation2 + $0x50] sm:$0xff]
        %v1724 = vld [vmem:[#allocation2 + $0x58] sm:$0xff]
        %v1725 = vld [vmem:[#allocation2 + $0x60] sm:$0xff]
        %v1726 = vld [vmem:[#allocation2 + $0x68] sm:$0xff]
        %v1727 = vld [vmem:[#allocation2 + $0x70] sm:$0xff]
        %v1728 = vld [vmem:[#allocation2 + $0x78] sm:$0xff]
        %v1729 = vld [vmem:[#allocation2 + $0x80] sm:$0xff]
        %v1730 = vld [vmem:[#allocation2 + $0x88] sm:$0xff]
        %v1731 = vld [vmem:[#allocation2 + $0x90] sm:$0xff]
        %v1732 = vld [vmem:[#allocation2 + $0x98] sm:$0xff]
        %v1733 = vld [vmem:[#allocation2 + $0xa0] sm:$0xff]
        %v1734 = vld [vmem:[#allocation2 + $0xa8] sm:$0xff]
        %v1735 = vld [vmem:[#allocation2 + $0xb0] sm:$0xff]
        %v1736 = vld [vmem:[#allocation2 + $0xb8] sm:$0xff]
        %v1737 = vld [vmem:[#allocation2 + $0xc0] sm:$0xff]
        %v1738 = vld [vmem:[#allocation2 + $0xc8] sm:$0xff]
        %v1739 = vld [vmem:[#allocation2 + $0xd0] sm:$0xff]
        %v1740 = vld [vmem:[#allocation2 + $0xd8] sm:$0xff]
        %v1741 = vld [vmem:[#allocation2 + $0xe0] sm:$0xff]
        %v1742 = vld [vmem:[#allocation2 + $0xe8] sm:$0xff]
        %v1743 = vld [vmem:[#allocation2 + $0xf0] sm:$0xff]
        %v1744 = vld [vmem:[#allocation2 + $0xf8] sm:$0xff]
        %v1745 = vld [vmem:[#allocation2 + $0x100] sm:$0xff]
        %v1746 = vld [vmem:[#allocation2 + $0x108] sm:$0xff]
        %v1747 = vld [vmem:[#allocation2 + $0x110] sm:$0xff]
        %v1748 = vld [vmem:[#allocation2 + $0x118] sm:$0xff]
        %v1749 = vld [vmem:[#allocation2 + $0x120] sm:$0xff]
        %v1750 = vld [vmem:[#allocation2 + $0x128] sm:$0xff]
        %v1751 = vld [vmem:[#allocation2 + $0x130] sm:$0xff]
        %v1752 = vld [vmem:[#allocation2 + $0x138] sm:$0xff]
        %v1753 = vld [vmem:[#allocation2 + $0x140] sm:$0xff]
        %v1754 = vld [vmem:[#allocation2 + $0x148] sm:$0xff]
        %v1755 = vld [vmem:[#allocation2 + $0x150] sm:$0xff]
        %v1756 = vld [vmem:[#allocation2 + $0x158] sm:$0xff]
        %v1757 = vld [vmem:[#allocation2 + $0x160] sm:$0xff]
        %v1758 = vld [vmem:[#allocation2 + $0x168] sm:$0xff]
        %v1759 = vld [vmem:[#allocation2 + $0x170] sm:$0xff]
        %v1760 = vld [vmem:[#allocation2 + $0x178] sm:$0xff]
        %v1761 = vld [vmem:[#allocation2 + $0x180] sm:$0xff]
        %v1762 = vld [vmem:[#allocation2 + $0x188] sm:$0xff]
        %v1763 = vld [vmem:[#allocation2 + $0x190] sm:$0xff]
        %v1764 = vld [vmem:[#allocation2 + $0x198] sm:$0xff]
        %v1765 = vld [vmem:[#allocation2 + $0x1a0] sm:$0xff]
        %v1766 = vld [vmem:[#allocation2 + $0x1a8] sm:$0xff]
        %v1767 = vld [vmem:[#allocation2 + $0x1b0] sm:$0xff]
        %v1768 = vld [vmem:[#allocation2 + $0x1b8] sm:$0xff]
        %v1769 = vld [vmem:[#allocation2 + $0x1c0] sm:$0xff]
        %v1770 = vld [vmem:[#allocation2 + $0x1c8] sm:$0xff]
        %v1771 = vld [vmem:[#allocation2 + $0x1d0] sm:$0xff]
        %v1772 = vld [vmem:[#allocation2 + $0x1d8] sm:$0xff]
        %v1773 = vld [vmem:[#allocation2 + $0x1e0] sm:$0xff]
        %v1774 = vld [vmem:[#allocation2 + $0x1e8] sm:$0xff]
        %v1775 = vld [vmem:[#allocation2 + $0x1f0] sm:$0xf]
        %v1776 = vld [vmem:[#allocation2 + $0x1f8] sm:$0xf]
        %v1777 = vld [vmem:[%s385 + $0x3] sm:$0xff]
        %v1778 = vld [vmem:[%s385 + $0xb] sm:$0xff]
        %v1779 = vld [vmem:[%s385 + $0x13] sm:$0xff]
        %v1780 = vld [vmem:[%s385 + $0x1b] sm:$0xff]
        %v1781 = vld [vmem:[%s385 + $0x23] sm:$0xff]
        %v1782 = vld [vmem:[%s385 + $0x2b] sm:$0xff]
        %v1783 = vld [vmem:[%s385 + $0x33] sm:$0xff]
        %v1784 = vld [vmem:[%s385 + $0x3b] sm:$0xff]
        %v1785 = vld [vmem:[%s385 + $0x43] sm:$0xff]
        %v1786 = vld [vmem:[%s385 + $0x4b] sm:$0xff]
        %v1787 = vld [vmem:[%s385 + $0x53] sm:$0xff]
        %v1788 = vld [vmem:[%s385 + $0x5b] sm:$0xff]
        %v1789 = vld [vmem:[%s385 + $0x63] sm:$0xff]
        %v1790 = vld [vmem:[%s385 + $0x6b] sm:$0xff]
        %v1791 = vld [vmem:[%s385 + $0x73] sm:$0xff]
        %v1792 = vld [vmem:[%s385 + $0x7b] sm:$0xff]
        %v1793 = vld [vmem:[%s385 + $0x83] sm:$0xff]
        %v1794 = vld [vmem:[%s385 + $0x8b] sm:$0xff]
        %v1795 = vld [vmem:[%s385 + $0x93] sm:$0xff]
        %v1796 = vld [vmem:[%s385 + $0x9b] sm:$0xff]
        %v1797 = vld [vmem:[%s385 + $0xa3] sm:$0xff]
        %v1798 = vld [vmem:[%s385 + $0xab] sm:$0xff]
        %v1799 = vld [vmem:[%s385 + $0xb3] sm:$0xff]
        %v1800 = vld [vmem:[%s385 + $0xbb] sm:$0xff]
        %v1801 = vld [vmem:[%s385 + $0xc3] sm:$0xff]
        %v1802 = vld [vmem:[%s385 + $0xcb] sm:$0xff]
        %v1803 = vld [vmem:[%s385 + $0xd3] sm:$0xff]
        %v1804 = vld [vmem:[%s385 + $0xdb] sm:$0xff]
        %v1805 = vld [vmem:[%s385 + $0xe3] sm:$0xff]
        %v1806 = vld [vmem:[%s385 + $0xeb] sm:$0xff]
        %v1807 = vld [vmem:[%s385 + $0xf3] sm:$0xff]
        %v1808 = vld [vmem:[%s385 + $0xfb] sm:$0xf]
        %s1809 = scalar_lea.vmem %s1, 768
        %v1810 = vld [vmem:[%s1809] sm:$0xff]
        %v1811 = vld [vmem:[%s1809 + $0x8] sm:$0xff]
        %v1812 = vld [vmem:[%s1809 + $0x10] sm:$0xff]
        %v1813 = vld [vmem:[%s1809 + $0x18] sm:$0xff]
        %v1814 = vld [vmem:[%s1809 + $0x20] sm:$0xff]
        %v1815 = vld [vmem:[%s1809 + $0x28] sm:$0xff]
        %v1816 = vld [vmem:[%s1809 + $0x30] sm:$0xff]
        %v1817 = vld [vmem:[%s1809 + $0x38] sm:$0xff]
        %v1818 = vld [vmem:[%s1809 + $0x40] sm:$0xff]
        %v1819 = vld [vmem:[%s1809 + $0x48] sm:$0xff]
        %v1820 = vld [vmem:[%s1809 + $0x50] sm:$0xff]
        %v1821 = vld [vmem:[%s1809 + $0x58] sm:$0xff]
        %v1822 = vld [vmem:[%s1809 + $0x60] sm:$0xff]
        %v1823 = vld [vmem:[%s1809 + $0x68] sm:$0xff]
        %v1824 = vld [vmem:[%s1809 + $0x70] sm:$0xff]
        %v1825 = vld [vmem:[%s1809 + $0x78] sm:$0xff]
        %v1826 = vld [vmem:[%s1809 + $0x80] sm:$0xff]
        %v1827 = vld [vmem:[%s1809 + $0x88] sm:$0xff]
        %v1828 = vld [vmem:[%s1809 + $0x90] sm:$0xff]
        %v1829 = vld [vmem:[%s1809 + $0x98] sm:$0xff]
        %v1830 = vld [vmem:[%s1809 + $0xa0] sm:$0xff]
        %v1831 = vld [vmem:[%s1809 + $0xa8] sm:$0xff]
        %v1832 = vld [vmem:[%s1809 + $0xb0] sm:$0xff]
        %v1833 = vld [vmem:[%s1809 + $0xb8] sm:$0xff]
        %v1834 = vld [vmem:[%s1809 + $0xc0] sm:$0xff]
        %v1835 = vld [vmem:[%s1809 + $0xc8] sm:$0xff]
        %v1836 = vld [vmem:[%s1809 + $0xd0] sm:$0xff]
        %v1837 = vld [vmem:[%s1809 + $0xd8] sm:$0xff]
        %v1838 = vld [vmem:[%s1809 + $0xe0] sm:$0xff]
        %v1839 = vld [vmem:[%s1809 + $0xe8] sm:$0xff]
        %v1840 = vld [vmem:[%s1809 + $0xf0] sm:$0xff]
        %v1841 = vld [vmem:[%s1809 + $0xf8] sm:$0xff]
        %1842 = vmatpush.msra.mxu0 %v1840
        %1843 = vmatpush.msra.mxu0 %v1838
        %1844 = vmatpush.msra.mxu0 %v1836
        %1845 = vmatpush.msra.mxu0 %v1834
        %1846 = vmatpush.msra.mxu0 %v1832
        %1847 = vmatpush.msra.mxu0 %v1830
        %1848 = vmatpush.msra.mxu0 %v1828
        %1849 = vmatpush.msra.mxu0 %v1826
        %1850 = vmatpush.msra.mxu0 %v1824
        %1851 = vmatpush.msra.mxu0 %v1822
        %1852 = vmatpush.msra.mxu0 %v1820
        %1853 = vmatpush.msra.mxu0 %v1818
        %1854 = vmatpush.msra.mxu0 %v1816
        %1855 = vmatpush.msra.mxu0 %v1814
        %1856 = vmatpush.msra.mxu0 %v1812
        %1857 = vmatpush.msra.mxu0 %v1810
        %1858 = vmatmul.f32.gmra.mxu0 %v1777
        %v1859 = vpop.f32.mrf.mxu0
        %v1860 = vadd.f32 0.0, %v1859
        %1861 = vmatmul.f32.gmra.mxu0 %v1778
        %v1862 = vpop.f32.mrf.mxu0
        %v1863 = vadd.f32 0.0, %v1862
        %1864 = vmatmul.f32.gmra.mxu0 %v1779
        %v1865 = vpop.f32.mrf.mxu0
        %v1866 = vadd.f32 0.0, %v1865
        %1867 = vmatmul.f32.gmra.mxu0 %v1780
        %v1868 = vpop.f32.mrf.mxu0
        %v1869 = vadd.f32 0.0, %v1868
        %1870 = vmatmul.f32.gmra.mxu0 %v1781
        %v1871 = vpop.f32.mrf.mxu0
        %v1872 = vadd.f32 0.0, %v1871
        %1873 = vmatmul.f32.gmra.mxu0 %v1782
        %v1874 = vpop.f32.mrf.mxu0
        %v1875 = vadd.f32 0.0, %v1874
        %1876 = vmatmul.f32.gmra.mxu0 %v1783
        %v1877 = vpop.f32.mrf.mxu0
        %v1878 = vadd.f32 0.0, %v1877
        %1879 = vmatmul.f32.gmra.mxu0 %v1784
        %v1880 = vpop.f32.mrf.mxu0
        %v1881 = vadd.f32 0.0, %v1880
        %1882 = vmatmul.f32.gmra.mxu0 %v1785
        %v1883 = vpop.f32.mrf.mxu0
        %v1884 = vadd.f32 0.0, %v1883
        %1885 = vmatmul.f32.gmra.mxu0 %v1786
        %v1886 = vpop.f32.mrf.mxu0
        %v1887 = vadd.f32 0.0, %v1886
        %1888 = vmatmul.f32.gmra.mxu0 %v1787
        %v1889 = vpop.f32.mrf.mxu0
        %v1890 = vadd.f32 0.0, %v1889
        %1891 = vmatmul.f32.gmra.mxu0 %v1788
        %v1892 = vpop.f32.mrf.mxu0
        %v1893 = vadd.f32 0.0, %v1892
        %1894 = vmatmul.f32.gmra.mxu0 %v1789
        %v1895 = vpop.f32.mrf.mxu0
        %v1896 = vadd.f32 0.0, %v1895
        %1897 = vmatmul.f32.gmra.mxu0 %v1790
        %v1898 = vpop.f32.mrf.mxu0
        %v1899 = vadd.f32 0.0, %v1898
        %1900 = vmatmul.f32.gmra.mxu0 %v1791
        %v1901 = vpop.f32.mrf.mxu0
        %v1902 = vadd.f32 0.0, %v1901
        %1903 = vmatmul.f32.gmra.mxu0 %v1792
        %v1904 = vpop.f32.mrf.mxu0
        %v1905 = vadd.f32 0.0, %v1904
        %1906 = vmatmul.f32.gmra.mxu0 %v1793
        %v1907 = vpop.f32.mrf.mxu0
        %v1908 = vadd.f32 0.0, %v1907
        %1909 = vmatmul.f32.gmra.mxu0 %v1794
        %v1910 = vpop.f32.mrf.mxu0
        %v1911 = vadd.f32 0.0, %v1910
        %1912 = vmatmul.f32.gmra.mxu0 %v1795
        %v1913 = vpop.f32.mrf.mxu0
        %v1914 = vadd.f32 0.0, %v1913
        %1915 = vmatmul.f32.gmra.mxu0 %v1796
        %v1916 = vpop.f32.mrf.mxu0
        %v1917 = vadd.f32 0.0, %v1916
        %1918 = vmatmul.f32.gmra.mxu0 %v1797
        %v1919 = vpop.f32.mrf.mxu0
        %v1920 = vadd.f32 0.0, %v1919
        %1921 = vmatmul.f32.gmra.mxu0 %v1798
        %v1922 = vpop.f32.mrf.mxu0
        %v1923 = vadd.f32 0.0, %v1922
        %1924 = vmatmul.f32.gmra.mxu0 %v1799
        %v1925 = vpop.f32.mrf.mxu0
        %v1926 = vadd.f32 0.0, %v1925
        %1927 = vmatmul.f32.gmra.mxu0 %v1800
        %v1928 = vpop.f32.mrf.mxu0
        %v1929 = vadd.f32 0.0, %v1928
        %1930 = vmatmul.f32.gmra.mxu0 %v1801
        %v1931 = vpop.f32.mrf.mxu0
        %v1932 = vadd.f32 0.0, %v1931
        %1933 = vmatmul.f32.gmra.mxu0 %v1802
        %v1934 = vpop.f32.mrf.mxu0
        %v1935 = vadd.f32 0.0, %v1934
        %1936 = vmatmul.f32.gmra.mxu0 %v1803
        %v1937 = vpop.f32.mrf.mxu0
        %v1938 = vadd.f32 0.0, %v1937
        %1939 = vmatmul.f32.gmra.mxu0 %v1804
        %v1940 = vpop.f32.mrf.mxu0
        %v1941 = vadd.f32 0.0, %v1940
        %1942 = vmatmul.f32.gmra.mxu0 %v1805
        %v1943 = vpop.f32.mrf.mxu0
        %v1944 = vadd.f32 0.0, %v1943
        %1945 = vmatmul.f32.gmra.mxu0 %v1806
        %v1946 = vpop.f32.mrf.mxu0
        %v1947 = vadd.f32 0.0, %v1946
        %1948 = vmatmul.f32.gmra.mxu0 %v1807
        %v1949 = vpop.f32.mrf.mxu0
        %v1950 = vadd.f32 0.0, %v1949
        %1951 = vmatmul.f32.gmra.mxu0 %v1808
        %v1952 = vpop.f32.mrf.mxu0
        %v1953 = vadd.f32 0.0, %v1952
        %1954 = vdwg.mxu0
        %1955 = vmatpush.msra.mxu0 %v1841
        %1956 = vmatpush.msra.mxu0 %v1839
        %1957 = vmatpush.msra.mxu0 %v1837
        %1958 = vmatpush.msra.mxu0 %v1835
        %1959 = vmatpush.msra.mxu0 %v1833
        %1960 = vmatpush.msra.mxu0 %v1831
        %1961 = vmatpush.msra.mxu0 %v1829
        %1962 = vmatpush.msra.mxu0 %v1827
        %1963 = vmatpush.msra.mxu0 %v1825
        %1964 = vmatpush.msra.mxu0 %v1823
        %1965 = vmatpush.msra.mxu0 %v1821
        %1966 = vmatpush.msra.mxu0 %v1819
        %1967 = vmatpush.msra.mxu0 %v1817
        %1968 = vmatpush.msra.mxu0 %v1815
        %1969 = vmatpush.msra.mxu0 %v1813
        %1970 = vmatpush.msra.mxu0 %v1811
        %1971 = vmatmul.f32.gmra.mxu0 %v1777
        %v1972 = vpop.f32.mrf.mxu0
        %v1973 = vadd.f32 0.0, %v1972
        %1974 = vmatmul.f32.gmra.mxu0 %v1778
        %v1975 = vpop.f32.mrf.mxu0
        %v1976 = vadd.f32 0.0, %v1975
        %1977 = vmatmul.f32.gmra.mxu0 %v1779
        %v1978 = vpop.f32.mrf.mxu0
        %v1979 = vadd.f32 0.0, %v1978
        %1980 = vmatmul.f32.gmra.mxu0 %v1780
        %v1981 = vpop.f32.mrf.mxu0
        %v1982 = vadd.f32 0.0, %v1981
        %1983 = vmatmul.f32.gmra.mxu0 %v1781
        %v1984 = vpop.f32.mrf.mxu0
        %v1985 = vadd.f32 0.0, %v1984
        %1986 = vmatmul.f32.gmra.mxu0 %v1782
        %v1987 = vpop.f32.mrf.mxu0
        %v1988 = vadd.f32 0.0, %v1987
        %1989 = vmatmul.f32.gmra.mxu0 %v1783
        %v1990 = vpop.f32.mrf.mxu0
        %v1991 = vadd.f32 0.0, %v1990
        %1992 = vmatmul.f32.gmra.mxu0 %v1784
        %v1993 = vpop.f32.mrf.mxu0
        %v1994 = vadd.f32 0.0, %v1993
        %1995 = vmatmul.f32.gmra.mxu0 %v1785
        %v1996 = vpop.f32.mrf.mxu0
        %v1997 = vadd.f32 0.0, %v1996
        %1998 = vmatmul.f32.gmra.mxu0 %v1786
        %v1999 = vpop.f32.mrf.mxu0
        %v2000 = vadd.f32 0.0, %v1999
        %2001 = vmatmul.f32.gmra.mxu0 %v1787
        %v2002 = vpop.f32.mrf.mxu0
        %v2003 = vadd.f32 0.0, %v2002
        %2004 = vmatmul.f32.gmra.mxu0 %v1788
        %v2005 = vpop.f32.mrf.mxu0
        %v2006 = vadd.f32 0.0, %v2005
        %2007 = vmatmul.f32.gmra.mxu0 %v1789
        %v2008 = vpop.f32.mrf.mxu0
        %v2009 = vadd.f32 0.0, %v2008
        %2010 = vmatmul.f32.gmra.mxu0 %v1790
        %v2011 = vpop.f32.mrf.mxu0
        %v2012 = vadd.f32 0.0, %v2011
        %2013 = vmatmul.f32.gmra.mxu0 %v1791
        %v2014 = vpop.f32.mrf.mxu0
        %v2015 = vadd.f32 0.0, %v2014
        %2016 = vmatmul.f32.gmra.mxu0 %v1792
        %v2017 = vpop.f32.mrf.mxu0
        %v2018 = vadd.f32 0.0, %v2017
        %2019 = vmatmul.f32.gmra.mxu0 %v1793
        %v2020 = vpop.f32.mrf.mxu0
        %v2021 = vadd.f32 0.0, %v2020
        %2022 = vmatmul.f32.gmra.mxu0 %v1794
        %v2023 = vpop.f32.mrf.mxu0
        %v2024 = vadd.f32 0.0, %v2023
        %2025 = vmatmul.f32.gmra.mxu0 %v1795
        %v2026 = vpop.f32.mrf.mxu0
        %v2027 = vadd.f32 0.0, %v2026
        %2028 = vmatmul.f32.gmra.mxu0 %v1796
        %v2029 = vpop.f32.mrf.mxu0
        %v2030 = vadd.f32 0.0, %v2029
        %2031 = vmatmul.f32.gmra.mxu0 %v1797
        %v2032 = vpop.f32.mrf.mxu0
        %v2033 = vadd.f32 0.0, %v2032
        %2034 = vmatmul.f32.gmra.mxu0 %v1798
        %v2035 = vpop.f32.mrf.mxu0
        %v2036 = vadd.f32 0.0, %v2035
        %2037 = vmatmul.f32.gmra.mxu0 %v1799
        %v2038 = vpop.f32.mrf.mxu0
        %v2039 = vadd.f32 0.0, %v2038
        %2040 = vmatmul.f32.gmra.mxu0 %v1800
        %v2041 = vpop.f32.mrf.mxu0
        %v2042 = vadd.f32 0.0, %v2041
        %2043 = vmatmul.f32.gmra.mxu0 %v1801
        %v2044 = vpop.f32.mrf.mxu0
        %v2045 = vadd.f32 0.0, %v2044
        %2046 = vmatmul.f32.gmra.mxu0 %v1802
        %v2047 = vpop.f32.mrf.mxu0
        %v2048 = vadd.f32 0.0, %v2047
        %2049 = vmatmul.f32.gmra.mxu0 %v1803
        %v2050 = vpop.f32.mrf.mxu0
        %v2051 = vadd.f32 0.0, %v2050
        %2052 = vmatmul.f32.gmra.mxu0 %v1804
        %v2053 = vpop.f32.mrf.mxu0
        %v2054 = vadd.f32 0.0, %v2053
        %2055 = vmatmul.f32.gmra.mxu0 %v1805
        %v2056 = vpop.f32.mrf.mxu0
        %v2057 = vadd.f32 0.0, %v2056
        %2058 = vmatmul.f32.gmra.mxu0 %v1806
        %v2059 = vpop.f32.mrf.mxu0
        %v2060 = vadd.f32 0.0, %v2059
        %2061 = vmatmul.f32.gmra.mxu0 %v1807
        %v2062 = vpop.f32.mrf.mxu0
        %v2063 = vadd.f32 0.0, %v2062
        %2064 = vmatmul.f32.gmra.mxu0 %v1808
        %v2065 = vpop.f32.mrf.mxu0
        %v2066 = vadd.f32 0.0, %v2065
        %2067 = vdwg.mxu0
        %v2068 = vadd.f32 %v1713, %v1860
        %v2069 = vadd.f32 %v1714, %v1973
        %v2070 = vadd.f32 %v1715, %v1863
        %v2071 = vadd.f32 %v1716, %v1976
        %v2072 = vadd.f32 %v1717, %v1866
        %v2073 = vadd.f32 %v1718, %v1979
        %v2074 = vadd.f32 %v1719, %v1869
        %v2075 = vadd.f32 %v1720, %v1982
        %v2076 = vadd.f32 %v1721, %v1872
        %v2077 = vadd.f32 %v1722, %v1985
        %v2078 = vadd.f32 %v1723, %v1875
        %v2079 = vadd.f32 %v1724, %v1988
        %v2080 = vadd.f32 %v1725, %v1878
        %v2081 = vadd.f32 %v1726, %v1991
        %v2082 = vadd.f32 %v1727, %v1881
        %v2083 = vadd.f32 %v1728, %v1994
        %v2084 = vadd.f32 %v1729, %v1884
        %v2085 = vadd.f32 %v1730, %v1997
        %v2086 = vadd.f32 %v1731, %v1887
        %v2087 = vadd.f32 %v1732, %v2000
        %v2088 = vadd.f32 %v1733, %v1890
        %v2089 = vadd.f32 %v1734, %v2003
        %v2090 = vadd.f32 %v1735, %v1893
        %v2091 = vadd.f32 %v1736, %v2006
        %v2092 = vadd.f32 %v1737, %v1896
        %v2093 = vadd.f32 %v1738, %v2009
        %v2094 = vadd.f32 %v1739, %v1899
        %v2095 = vadd.f32 %v1740, %v2012
        %v2096 = vadd.f32 %v1741, %v1902
        %v2097 = vadd.f32 %v1742, %v2015
        %v2098 = vadd.f32 %v1743, %v1905
        %v2099 = vadd.f32 %v1744, %v2018
        %v2100 = vadd.f32 %v1745, %v1908
        %v2101 = vadd.f32 %v1746, %v2021
        %v2102 = vadd.f32 %v1747, %v1911
        %v2103 = vadd.f32 %v1748, %v2024
        %v2104 = vadd.f32 %v1749, %v1914
        %v2105 = vadd.f32 %v1750, %v2027
        %v2106 = vadd.f32 %v1751, %v1917
        %v2107 = vadd.f32 %v1752, %v2030
        %v2108 = vadd.f32 %v1753, %v1920
        %v2109 = vadd.f32 %v1754, %v2033
        %v2110 = vadd.f32 %v1755, %v1923
        %v2111 = vadd.f32 %v1756, %v2036
        %v2112 = vadd.f32 %v1757, %v1926
        %v2113 = vadd.f32 %v1758, %v2039
        %v2114 = vadd.f32 %v1759, %v1929
        %v2115 = vadd.f32 %v1760, %v2042
        %v2116 = vadd.f32 %v1761, %v1932
        %v2117 = vadd.f32 %v1762, %v2045
        %v2118 = vadd.f32 %v1763, %v1935
        %v2119 = vadd.f32 %v1764, %v2048
        %v2120 = vadd.f32 %v1765, %v1938
        %v2121 = vadd.f32 %v1766, %v2051
        %v2122 = vadd.f32 %v1767, %v1941
        %v2123 = vadd.f32 %v1768, %v2054
        %v2124 = vadd.f32 %v1769, %v1944
        %v2125 = vadd.f32 %v1770, %v2057
        %v2126 = vadd.f32 %v1771, %v1947
        %v2127 = vadd.f32 %v1772, %v2060
        %v2128 = vadd.f32 %v1773, %v1950
        %v2129 = vadd.f32 %v1774, %v2063
        %v2130 = vadd.f32 %v1775, %v1953
        %v2131 = vadd.f32 %v1776, %v2066
        %2132 = vst [vmem:[#allocation2] sm:$0xff] %v2068
        %2133 = vst [vmem:[#allocation2 + $0x8] sm:$0xff] %v2069
        %2134 = vst [vmem:[#allocation2 + $0x10] sm:$0xff] %v2070
        %2135 = vst [vmem:[#allocation2 + $0x18] sm:$0xff] %v2071
        %2136 = vst [vmem:[#allocation2 + $0x20] sm:$0xff] %v2072
        %2137 = vst [vmem:[#allocation2 + $0x28] sm:$0xff] %v2073
        %2138 = vst [vmem:[#allocation2 + $0x30] sm:$0xff] %v2074
        %2139 = vst [vmem:[#allocation2 + $0x38] sm:$0xff] %v2075
        %2140 = vst [vmem:[#allocation2 + $0x40] sm:$0xff] %v2076
        %2141 = vst [vmem:[#allocation2 + $0x48] sm:$0xff] %v2077
        %2142 = vst [vmem:[#allocation2 + $0x50] sm:$0xff] %v2078
        %2143 = vst [vmem:[#allocation2 + $0x58] sm:$0xff] %v2079
        %2144 = vst [vmem:[#allocation2 + $0x60] sm:$0xff] %v2080
        %2145 = vst [vmem:[#allocation2 + $0x68] sm:$0xff] %v2081
        %2146 = vst [vmem:[#allocation2 + $0x70] sm:$0xff] %v2082
        %2147 = vst [vmem:[#allocation2 + $0x78] sm:$0xff] %v2083
        %2148 = vst [vmem:[#allocation2 + $0x80] sm:$0xff] %v2084
        %2149 = vst [vmem:[#allocation2 + $0x88] sm:$0xff] %v2085
        %2150 = vst [vmem:[#allocation2 + $0x90] sm:$0xff] %v2086
        %2151 = vst [vmem:[#allocation2 + $0x98] sm:$0xff] %v2087
        %2152 = vst [vmem:[#allocation2 + $0xa0] sm:$0xff] %v2088
        %2153 = vst [vmem:[#allocation2 + $0xa8] sm:$0xff] %v2089
        %2154 = vst [vmem:[#allocation2 + $0xb0] sm:$0xff] %v2090
        %2155 = vst [vmem:[#allocation2 + $0xb8] sm:$0xff] %v2091
        %2156 = vst [vmem:[#allocation2 + $0xc0] sm:$0xff] %v2092
        %2157 = vst [vmem:[#allocation2 + $0xc8] sm:$0xff] %v2093
        %2158 = vst [vmem:[#allocation2 + $0xd0] sm:$0xff] %v2094
        %2159 = vst [vmem:[#allocation2 + $0xd8] sm:$0xff] %v2095
        %2160 = vst [vmem:[#allocation2 + $0xe0] sm:$0xff] %v2096
        %2161 = vst [vmem:[#allocation2 + $0xe8] sm:$0xff] %v2097
        %2162 = vst [vmem:[#allocation2 + $0xf0] sm:$0xff] %v2098
        %2163 = vst [vmem:[#allocation2 + $0xf8] sm:$0xff] %v2099
        %2164 = vst [vmem:[#allocation2 + $0x100] sm:$0xff] %v2100
        %2165 = vst [vmem:[#allocation2 + $0x108] sm:$0xff] %v2101
        %2166 = vst [vmem:[#allocation2 + $0x110] sm:$0xff] %v2102
        %2167 = vst [vmem:[#allocation2 + $0x118] sm:$0xff] %v2103
        %2168 = vst [vmem:[#allocation2 + $0x120] sm:$0xff] %v2104
        %2169 = vst [vmem:[#allocation2 + $0x128] sm:$0xff] %v2105
        %2170 = vst [vmem:[#allocation2 + $0x130] sm:$0xff] %v2106
        %2171 = vst [vmem:[#allocation2 + $0x138] sm:$0xff] %v2107
        %2172 = vst [vmem:[#allocation2 + $0x140] sm:$0xff] %v2108
        %2173 = vst [vmem:[#allocation2 + $0x148] sm:$0xff] %v2109
        %2174 = vst [vmem:[#allocation2 + $0x150] sm:$0xff] %v2110
        %2175 = vst [vmem:[#allocation2 + $0x158] sm:$0xff] %v2111
        %2176 = vst [vmem:[#allocation2 + $0x160] sm:$0xff] %v2112
        %2177 = vst [vmem:[#allocation2 + $0x168] sm:$0xff] %v2113
        %2178 = vst [vmem:[#allocation2 + $0x170] sm:$0xff] %v2114
        %2179 = vst [vmem:[#allocation2 + $0x178] sm:$0xff] %v2115
        %2180 = vst [vmem:[#allocation2 + $0x180] sm:$0xff] %v2116
        %2181 = vst [vmem:[#allocation2 + $0x188] sm:$0xff] %v2117
        %2182 = vst [vmem:[#allocation2 + $0x190] sm:$0xff] %v2118
        %2183 = vst [vmem:[#allocation2 + $0x198] sm:$0xff] %v2119
        %2184 = vst [vmem:[#allocation2 + $0x1a0] sm:$0xff] %v2120
        %2185 = vst [vmem:[#allocation2 + $0x1a8] sm:$0xff] %v2121
        %2186 = vst [vmem:[#allocation2 + $0x1b0] sm:$0xff] %v2122
        %2187 = vst [vmem:[#allocation2 + $0x1b8] sm:$0xff] %v2123
        %2188 = vst [vmem:[#allocation2 + $0x1c0] sm:$0xff] %v2124
        %2189 = vst [vmem:[#allocation2 + $0x1c8] sm:$0xff] %v2125
        %2190 = vst [vmem:[#allocation2 + $0x1d0] sm:$0xff] %v2126
        %2191 = vst [vmem:[#allocation2 + $0x1d8] sm:$0xff] %v2127
        %2192 = vst [vmem:[#allocation2 + $0x1e0] sm:$0xff] %v2128
        %2193 = vst [vmem:[#allocation2 + $0x1e8] sm:$0xff] %v2129
        %2194 = vst [vmem:[#allocation2 + $0x1f0] sm:$0xf] %v2130
        %2195 = vst [vmem:[#allocation2 + $0x1f8] sm:$0xf] %v2131
        %v2196 = vld [vmem:[#allocation2] sm:$0xff]
        %v2197 = vld [vmem:[#allocation2 + $0x8] sm:$0xff]
        %v2198 = vld [vmem:[#allocation2 + $0x10] sm:$0xff]
        %v2199 = vld [vmem:[#allocation2 + $0x18] sm:$0xff]
        %v2200 = vld [vmem:[#allocation2 + $0x20] sm:$0xff]
        %v2201 = vld [vmem:[#allocation2 + $0x28] sm:$0xff]
        %v2202 = vld [vmem:[#allocation2 + $0x30] sm:$0xff]
        %v2203 = vld [vmem:[#allocation2 + $0x38] sm:$0xff]
        %v2204 = vld [vmem:[#allocation2 + $0x40] sm:$0xff]
        %v2205 = vld [vmem:[#allocation2 + $0x48] sm:$0xff]
        %v2206 = vld [vmem:[#allocation2 + $0x50] sm:$0xff]
        %v2207 = vld [vmem:[#allocation2 + $0x58] sm:$0xff]
        %v2208 = vld [vmem:[#allocation2 + $0x60] sm:$0xff]
        %v2209 = vld [vmem:[#allocation2 + $0x68] sm:$0xff]
        %v2210 = vld [vmem:[#allocation2 + $0x70] sm:$0xff]
        %v2211 = vld [vmem:[#allocation2 + $0x78] sm:$0xff]
        %v2212 = vld [vmem:[#allocation2 + $0x80] sm:$0xff]
        %v2213 = vld [vmem:[#allocation2 + $0x88] sm:$0xff]
        %v2214 = vld [vmem:[#allocation2 + $0x90] sm:$0xff]
        %v2215 = vld [vmem:[#allocation2 + $0x98] sm:$0xff]
        %v2216 = vld [vmem:[#allocation2 + $0xa0] sm:$0xff]
        %v2217 = vld [vmem:[#allocation2 + $0xa8] sm:$0xff]
        %v2218 = vld [vmem:[#allocation2 + $0xb0] sm:$0xff]
        %v2219 = vld [vmem:[#allocation2 + $0xb8] sm:$0xff]
        %v2220 = vld [vmem:[#allocation2 + $0xc0] sm:$0xff]
        %v2221 = vld [vmem:[#allocation2 + $0xc8] sm:$0xff]
        %v2222 = vld [vmem:[#allocation2 + $0xd0] sm:$0xff]
        %v2223 = vld [vmem:[#allocation2 + $0xd8] sm:$0xff]
        %v2224 = vld [vmem:[#allocation2 + $0xe0] sm:$0xff]
        %v2225 = vld [vmem:[#allocation2 + $0xe8] sm:$0xff]
        %v2226 = vld [vmem:[#allocation2 + $0xf0] sm:$0xff]
        %v2227 = vld [vmem:[#allocation2 + $0xf8] sm:$0xff]
        %v2228 = vld [vmem:[#allocation2 + $0x100] sm:$0xff]
        %v2229 = vld [vmem:[#allocation2 + $0x108] sm:$0xff]
        %v2230 = vld [vmem:[#allocation2 + $0x110] sm:$0xff]
        %v2231 = vld [vmem:[#allocation2 + $0x118] sm:$0xff]
        %v2232 = vld [vmem:[#allocation2 + $0x120] sm:$0xff]
        %v2233 = vld [vmem:[#allocation2 + $0x128] sm:$0xff]
        %v2234 = vld [vmem:[#allocation2 + $0x130] sm:$0xff]
        %v2235 = vld [vmem:[#allocation2 + $0x138] sm:$0xff]
        %v2236 = vld [vmem:[#allocation2 + $0x140] sm:$0xff]
        %v2237 = vld [vmem:[#allocation2 + $0x148] sm:$0xff]
        %v2238 = vld [vmem:[#allocation2 + $0x150] sm:$0xff]
        %v2239 = vld [vmem:[#allocation2 + $0x158] sm:$0xff]
        %v2240 = vld [vmem:[#allocation2 + $0x160] sm:$0xff]
        %v2241 = vld [vmem:[#allocation2 + $0x168] sm:$0xff]
        %v2242 = vld [vmem:[#allocation2 + $0x170] sm:$0xff]
        %v2243 = vld [vmem:[#allocation2 + $0x178] sm:$0xff]
        %v2244 = vld [vmem:[#allocation2 + $0x180] sm:$0xff]
        %v2245 = vld [vmem:[#allocation2 + $0x188] sm:$0xff]
        %v2246 = vld [vmem:[#allocation2 + $0x190] sm:$0xff]
        %v2247 = vld [vmem:[#allocation2 + $0x198] sm:$0xff]
        %v2248 = vld [vmem:[#allocation2 + $0x1a0] sm:$0xff]
        %v2249 = vld [vmem:[#allocation2 + $0x1a8] sm:$0xff]
        %v2250 = vld [vmem:[#allocation2 + $0x1b0] sm:$0xff]
        %v2251 = vld [vmem:[#allocation2 + $0x1b8] sm:$0xff]
        %v2252 = vld [vmem:[#allocation2 + $0x1c0] sm:$0xff]
        %v2253 = vld [vmem:[#allocation2 + $0x1c8] sm:$0xff]
        %v2254 = vld [vmem:[#allocation2 + $0x1d0] sm:$0xff]
        %v2255 = vld [vmem:[#allocation2 + $0x1d8] sm:$0xff]
        %v2256 = vld [vmem:[#allocation2 + $0x1e0] sm:$0xff]
        %v2257 = vld [vmem:[#allocation2 + $0x1e8] sm:$0xff]
        %v2258 = vld [vmem:[#allocation2 + $0x1f0] sm:$0xf]
        %v2259 = vld [vmem:[#allocation2 + $0x1f8] sm:$0xf]
        %v2260 = vld [vmem:[%s385 + $0x4] sm:$0xff]
        %v2261 = vld [vmem:[%s385 + $0xc] sm:$0xff]
        %v2262 = vld [vmem:[%s385 + $0x14] sm:$0xff]
        %v2263 = vld [vmem:[%s385 + $0x1c] sm:$0xff]
        %v2264 = vld [vmem:[%s385 + $0x24] sm:$0xff]
        %v2265 = vld [vmem:[%s385 + $0x2c] sm:$0xff]
        %v2266 = vld [vmem:[%s385 + $0x34] sm:$0xff]
        %v2267 = vld [vmem:[%s385 + $0x3c] sm:$0xff]
        %v2268 = vld [vmem:[%s385 + $0x44] sm:$0xff]
        %v2269 = vld [vmem:[%s385 + $0x4c] sm:$0xff]
        %v2270 = vld [vmem:[%s385 + $0x54] sm:$0xff]
        %v2271 = vld [vmem:[%s385 + $0x5c] sm:$0xff]
        %v2272 = vld [vmem:[%s385 + $0x64] sm:$0xff]
        %v2273 = vld [vmem:[%s385 + $0x6c] sm:$0xff]
        %v2274 = vld [vmem:[%s385 + $0x74] sm:$0xff]
        %v2275 = vld [vmem:[%s385 + $0x7c] sm:$0xff]
        %v2276 = vld [vmem:[%s385 + $0x84] sm:$0xff]
        %v2277 = vld [vmem:[%s385 + $0x8c] sm:$0xff]
        %v2278 = vld [vmem:[%s385 + $0x94] sm:$0xff]
        %v2279 = vld [vmem:[%s385 + $0x9c] sm:$0xff]
        %v2280 = vld [vmem:[%s385 + $0xa4] sm:$0xff]
        %v2281 = vld [vmem:[%s385 + $0xac] sm:$0xff]
        %v2282 = vld [vmem:[%s385 + $0xb4] sm:$0xff]
        %v2283 = vld [vmem:[%s385 + $0xbc] sm:$0xff]
        %v2284 = vld [vmem:[%s385 + $0xc4] sm:$0xff]
        %v2285 = vld [vmem:[%s385 + $0xcc] sm:$0xff]
        %v2286 = vld [vmem:[%s385 + $0xd4] sm:$0xff]
        %v2287 = vld [vmem:[%s385 + $0xdc] sm:$0xff]
        %v2288 = vld [vmem:[%s385 + $0xe4] sm:$0xff]
        %v2289 = vld [vmem:[%s385 + $0xec] sm:$0xff]
        %v2290 = vld [vmem:[%s385 + $0xf4] sm:$0xff]
        %v2291 = vld [vmem:[%s385 + $0xfc] sm:$0xf]
        %s2292 = scalar_lea.vmem %s1, 1024
        %v2293 = vld [vmem:[%s2292] sm:$0xff]
        %v2294 = vld [vmem:[%s2292 + $0x8] sm:$0xff]
        %v2295 = vld [vmem:[%s2292 + $0x10] sm:$0xff]
        %v2296 = vld [vmem:[%s2292 + $0x18] sm:$0xff]
        %v2297 = vld [vmem:[%s2292 + $0x20] sm:$0xff]
        %v2298 = vld [vmem:[%s2292 + $0x28] sm:$0xff]
        %v2299 = vld [vmem:[%s2292 + $0x30] sm:$0xff]
        %v2300 = vld [vmem:[%s2292 + $0x38] sm:$0xff]
        %v2301 = vld [vmem:[%s2292 + $0x40] sm:$0xff]
        %v2302 = vld [vmem:[%s2292 + $0x48] sm:$0xff]
        %v2303 = vld [vmem:[%s2292 + $0x50] sm:$0xff]
        %v2304 = vld [vmem:[%s2292 + $0x58] sm:$0xff]
        %v2305 = vld [vmem:[%s2292 + $0x60] sm:$0xff]
        %v2306 = vld [vmem:[%s2292 + $0x68] sm:$0xff]
        %v2307 = vld [vmem:[%s2292 + $0x70] sm:$0xff]
        %v2308 = vld [vmem:[%s2292 + $0x78] sm:$0xff]
        %v2309 = vld [vmem:[%s2292 + $0x80] sm:$0xff]
        %v2310 = vld [vmem:[%s2292 + $0x88] sm:$0xff]
        %v2311 = vld [vmem:[%s2292 + $0x90] sm:$0xff]
        %v2312 = vld [vmem:[%s2292 + $0x98] sm:$0xff]
        %v2313 = vld [vmem:[%s2292 + $0xa0] sm:$0xff]
        %v2314 = vld [vmem:[%s2292 + $0xa8] sm:$0xff]
        %v2315 = vld [vmem:[%s2292 + $0xb0] sm:$0xff]
        %v2316 = vld [vmem:[%s2292 + $0xb8] sm:$0xff]
        %v2317 = vld [vmem:[%s2292 + $0xc0] sm:$0xff]
        %v2318 = vld [vmem:[%s2292 + $0xc8] sm:$0xff]
        %v2319 = vld [vmem:[%s2292 + $0xd0] sm:$0xff]
        %v2320 = vld [vmem:[%s2292 + $0xd8] sm:$0xff]
        %v2321 = vld [vmem:[%s2292 + $0xe0] sm:$0xff]
        %v2322 = vld [vmem:[%s2292 + $0xe8] sm:$0xff]
        %v2323 = vld [vmem:[%s2292 + $0xf0] sm:$0xff]
        %v2324 = vld [vmem:[%s2292 + $0xf8] sm:$0xff]
        %2325 = vmatpush.msra.mxu0 %v2323
        %2326 = vmatpush.msra.mxu0 %v2321
        %2327 = vmatpush.msra.mxu0 %v2319
        %2328 = vmatpush.msra.mxu0 %v2317
        %2329 = vmatpush.msra.mxu0 %v2315
        %2330 = vmatpush.msra.mxu0 %v2313
        %2331 = vmatpush.msra.mxu0 %v2311
        %2332 = vmatpush.msra.mxu0 %v2309
        %2333 = vmatpush.msra.mxu0 %v2307
        %2334 = vmatpush.msra.mxu0 %v2305
        %2335 = vmatpush.msra.mxu0 %v2303
        %2336 = vmatpush.msra.mxu0 %v2301
        %2337 = vmatpush.msra.mxu0 %v2299
        %2338 = vmatpush.msra.mxu0 %v2297
        %2339 = vmatpush.msra.mxu0 %v2295
        %2340 = vmatpush.msra.mxu0 %v2293
        %2341 = vmatmul.f32.gmra.mxu0 %v2260
        %v2342 = vpop.f32.mrf.mxu0
        %v2343 = vadd.f32 0.0, %v2342
        %2344 = vmatmul.f32.gmra.mxu0 %v2261
        %v2345 = vpop.f32.mrf.mxu0
        %v2346 = vadd.f32 0.0, %v2345
        %2347 = vmatmul.f32.gmra.mxu0 %v2262
        %v2348 = vpop.f32.mrf.mxu0
        %v2349 = vadd.f32 0.0, %v2348
        %2350 = vmatmul.f32.gmra.mxu0 %v2263
        %v2351 = vpop.f32.mrf.mxu0
        %v2352 = vadd.f32 0.0, %v2351
        %2353 = vmatmul.f32.gmra.mxu0 %v2264
        %v2354 = vpop.f32.mrf.mxu0
        %v2355 = vadd.f32 0.0, %v2354
        %2356 = vmatmul.f32.gmra.mxu0 %v2265
        %v2357 = vpop.f32.mrf.mxu0
        %v2358 = vadd.f32 0.0, %v2357
        %2359 = vmatmul.f32.gmra.mxu0 %v2266
        %v2360 = vpop.f32.mrf.mxu0
        %v2361 = vadd.f32 0.0, %v2360
        %2362 = vmatmul.f32.gmra.mxu0 %v2267
        %v2363 = vpop.f32.mrf.mxu0
        %v2364 = vadd.f32 0.0, %v2363
        %2365 = vmatmul.f32.gmra.mxu0 %v2268
        %v2366 = vpop.f32.mrf.mxu0
        %v2367 = vadd.f32 0.0, %v2366
        %2368 = vmatmul.f32.gmra.mxu0 %v2269
        %v2369 = vpop.f32.mrf.mxu0
        %v2370 = vadd.f32 0.0, %v2369
        %2371 = vmatmul.f32.gmra.mxu0 %v2270
        %v2372 = vpop.f32.mrf.mxu0
        %v2373 = vadd.f32 0.0, %v2372
        %2374 = vmatmul.f32.gmra.mxu0 %v2271
        %v2375 = vpop.f32.mrf.mxu0
        %v2376 = vadd.f32 0.0, %v2375
        %2377 = vmatmul.f32.gmra.mxu0 %v2272
        %v2378 = vpop.f32.mrf.mxu0
        %v2379 = vadd.f32 0.0, %v2378
        %2380 = vmatmul.f32.gmra.mxu0 %v2273
        %v2381 = vpop.f32.mrf.mxu0
        %v2382 = vadd.f32 0.0, %v2381
        %2383 = vmatmul.f32.gmra.mxu0 %v2274
        %v2384 = vpop.f32.mrf.mxu0
        %v2385 = vadd.f32 0.0, %v2384
        %2386 = vmatmul.f32.gmra.mxu0 %v2275
        %v2387 = vpop.f32.mrf.mxu0
        %v2388 = vadd.f32 0.0, %v2387
        %2389 = vmatmul.f32.gmra.mxu0 %v2276
        %v2390 = vpop.f32.mrf.mxu0
        %v2391 = vadd.f32 0.0, %v2390
        %2392 = vmatmul.f32.gmra.mxu0 %v2277
        %v2393 = vpop.f32.mrf.mxu0
        %v2394 = vadd.f32 0.0, %v2393
        %2395 = vmatmul.f32.gmra.mxu0 %v2278
        %v2396 = vpop.f32.mrf.mxu0
        %v2397 = vadd.f32 0.0, %v2396
        %2398 = vmatmul.f32.gmra.mxu0 %v2279
        %v2399 = vpop.f32.mrf.mxu0
        %v2400 = vadd.f32 0.0, %v2399
        %2401 = vmatmul.f32.gmra.mxu0 %v2280
        %v2402 = vpop.f32.mrf.mxu0
        %v2403 = vadd.f32 0.0, %v2402
        %2404 = vmatmul.f32.gmra.mxu0 %v2281
        %v2405 = vpop.f32.mrf.mxu0
        %v2406 = vadd.f32 0.0, %v2405
        %2407 = vmatmul.f32.gmra.mxu0 %v2282
        %v2408 = vpop.f32.mrf.mxu0
        %v2409 = vadd.f32 0.0, %v2408
        %2410 = vmatmul.f32.gmra.mxu0 %v2283
        %v2411 = vpop.f32.mrf.mxu0
        %v2412 = vadd.f32 0.0, %v2411
        %2413 = vmatmul.f32.gmra.mxu0 %v2284
        %v2414 = vpop.f32.mrf.mxu0
        %v2415 = vadd.f32 0.0, %v2414
        %2416 = vmatmul.f32.gmra.mxu0 %v2285
        %v2417 = vpop.f32.mrf.mxu0
        %v2418 = vadd.f32 0.0, %v2417
        %2419 = vmatmul.f32.gmra.mxu0 %v2286
        %v2420 = vpop.f32.mrf.mxu0
        %v2421 = vadd.f32 0.0, %v2420
        %2422 = vmatmul.f32.gmra.mxu0 %v2287
        %v2423 = vpop.f32.mrf.mxu0
        %v2424 = vadd.f32 0.0, %v2423
        %2425 = vmatmul.f32.gmra.mxu0 %v2288
        %v2426 = vpop.f32.mrf.mxu0
        %v2427 = vadd.f32 0.0, %v2426
        %2428 = vmatmul.f32.gmra.mxu0 %v2289
        %v2429 = vpop.f32.mrf.mxu0
        %v2430 = vadd.f32 0.0, %v2429
        %2431 = vmatmul.f32.gmra.mxu0 %v2290
        %v2432 = vpop.f32.mrf.mxu0
        %v2433 = vadd.f32 0.0, %v2432
        %2434 = vmatmul.f32.gmra.mxu0 %v2291
        %v2435 = vpop.f32.mrf.mxu0
        %v2436 = vadd.f32 0.0, %v2435
        %2437 = vdwg.mxu0
        %2438 = vmatpush.msra.mxu0 %v2324
        %2439 = vmatpush.msra.mxu0 %v2322
        %2440 = vmatpush.msra.mxu0 %v2320
        %2441 = vmatpush.msra.mxu0 %v2318
        %2442 = vmatpush.msra.mxu0 %v2316
        %2443 = vmatpush.msra.mxu0 %v2314
        %2444 = vmatpush.msra.mxu0 %v2312
        %2445 = vmatpush.msra.mxu0 %v2310
        %2446 = vmatpush.msra.mxu0 %v2308
        %2447 = vmatpush.msra.mxu0 %v2306
        %2448 = vmatpush.msra.mxu0 %v2304
        %2449 = vmatpush.msra.mxu0 %v2302
        %2450 = vmatpush.msra.mxu0 %v2300
        %2451 = vmatpush.msra.mxu0 %v2298
        %2452 = vmatpush.msra.mxu0 %v2296
        %2453 = vmatpush.msra.mxu0 %v2294
        %2454 = vmatmul.f32.gmra.mxu0 %v2260
        %v2455 = vpop.f32.mrf.mxu0
        %v2456 = vadd.f32 0.0, %v2455
        %2457 = vmatmul.f32.gmra.mxu0 %v2261
        %v2458 = vpop.f32.mrf.mxu0
        %v2459 = vadd.f32 0.0, %v2458
        %2460 = vmatmul.f32.gmra.mxu0 %v2262
        %v2461 = vpop.f32.mrf.mxu0
        %v2462 = vadd.f32 0.0, %v2461
        %2463 = vmatmul.f32.gmra.mxu0 %v2263
        %v2464 = vpop.f32.mrf.mxu0
        %v2465 = vadd.f32 0.0, %v2464
        %2466 = vmatmul.f32.gmra.mxu0 %v2264
        %v2467 = vpop.f32.mrf.mxu0
        %v2468 = vadd.f32 0.0, %v2467
        %2469 = vmatmul.f32.gmra.mxu0 %v2265
        %v2470 = vpop.f32.mrf.mxu0
        %v2471 = vadd.f32 0.0, %v2470
        %2472 = vmatmul.f32.gmra.mxu0 %v2266
        %v2473 = vpop.f32.mrf.mxu0
        %v2474 = vadd.f32 0.0, %v2473
        %2475 = vmatmul.f32.gmra.mxu0 %v2267
        %v2476 = vpop.f32.mrf.mxu0
        %v2477 = vadd.f32 0.0, %v2476
        %2478 = vmatmul.f32.gmra.mxu0 %v2268
        %v2479 = vpop.f32.mrf.mxu0
        %v2480 = vadd.f32 0.0, %v2479
        %2481 = vmatmul.f32.gmra.mxu0 %v2269
        %v2482 = vpop.f32.mrf.mxu0
        %v2483 = vadd.f32 0.0, %v2482
        %2484 = vmatmul.f32.gmra.mxu0 %v2270
        %v2485 = vpop.f32.mrf.mxu0
        %v2486 = vadd.f32 0.0, %v2485
        %2487 = vmatmul.f32.gmra.mxu0 %v2271
        %v2488 = vpop.f32.mrf.mxu0
        %v2489 = vadd.f32 0.0, %v2488
        %2490 = vmatmul.f32.gmra.mxu0 %v2272
        %v2491 = vpop.f32.mrf.mxu0
        %v2492 = vadd.f32 0.0, %v2491
        %2493 = vmatmul.f32.gmra.mxu0 %v2273
        %v2494 = vpop.f32.mrf.mxu0
        %v2495 = vadd.f32 0.0, %v2494
        %2496 = vmatmul.f32.gmra.mxu0 %v2274
        %v2497 = vpop.f32.mrf.mxu0
        %v2498 = vadd.f32 0.0, %v2497
        %2499 = vmatmul.f32.gmra.mxu0 %v2275
        %v2500 = vpop.f32.mrf.mxu0
        %v2501 = vadd.f32 0.0, %v2500
        %2502 = vmatmul.f32.gmra.mxu0 %v2276
        %v2503 = vpop.f32.mrf.mxu0
        %v2504 = vadd.f32 0.0, %v2503
        %2505 = vmatmul.f32.gmra.mxu0 %v2277
        %v2506 = vpop.f32.mrf.mxu0
        %v2507 = vadd.f32 0.0, %v2506
        %2508 = vmatmul.f32.gmra.mxu0 %v2278
        %v2509 = vpop.f32.mrf.mxu0
        %v2510 = vadd.f32 0.0, %v2509
        %2511 = vmatmul.f32.gmra.mxu0 %v2279
        %v2512 = vpop.f32.mrf.mxu0
        %v2513 = vadd.f32 0.0, %v2512
        %2514 = vmatmul.f32.gmra.mxu0 %v2280
        %v2515 = vpop.f32.mrf.mxu0
        %v2516 = vadd.f32 0.0, %v2515
        %2517 = vmatmul.f32.gmra.mxu0 %v2281
        %v2518 = vpop.f32.mrf.mxu0
        %v2519 = vadd.f32 0.0, %v2518
        %2520 = vmatmul.f32.gmra.mxu0 %v2282
        %v2521 = vpop.f32.mrf.mxu0
        %v2522 = vadd.f32 0.0, %v2521
        %2523 = vmatmul.f32.gmra.mxu0 %v2283
        %v2524 = vpop.f32.mrf.mxu0
        %v2525 = vadd.f32 0.0, %v2524
        %2526 = vmatmul.f32.gmra.mxu0 %v2284
        %v2527 = vpop.f32.mrf.mxu0
        %v2528 = vadd.f32 0.0, %v2527
        %2529 = vmatmul.f32.gmra.mxu0 %v2285
        %v2530 = vpop.f32.mrf.mxu0
        %v2531 = vadd.f32 0.0, %v2530
        %2532 = vmatmul.f32.gmra.mxu0 %v2286
        %v2533 = vpop.f32.mrf.mxu0
        %v2534 = vadd.f32 0.0, %v2533
        %2535 = vmatmul.f32.gmra.mxu0 %v2287
        %v2536 = vpop.f32.mrf.mxu0
        %v2537 = vadd.f32 0.0, %v2536
        %2538 = vmatmul.f32.gmra.mxu0 %v2288
        %v2539 = vpop.f32.mrf.mxu0
        %v2540 = vadd.f32 0.0, %v2539
        %2541 = vmatmul.f32.gmra.mxu0 %v2289
        %v2542 = vpop.f32.mrf.mxu0
        %v2543 = vadd.f32 0.0, %v2542
        %2544 = vmatmul.f32.gmra.mxu0 %v2290
        %v2545 = vpop.f32.mrf.mxu0
        %v2546 = vadd.f32 0.0, %v2545
        %2547 = vmatmul.f32.gmra.mxu0 %v2291
        %v2548 = vpop.f32.mrf.mxu0
        %v2549 = vadd.f32 0.0, %v2548
        %2550 = vdwg.mxu0
        %v2551 = vadd.f32 %v2196, %v2343
        %v2552 = vadd.f32 %v2197, %v2456
        %v2553 = vadd.f32 %v2198, %v2346
        %v2554 = vadd.f32 %v2199, %v2459
        %v2555 = vadd.f32 %v2200, %v2349
        %v2556 = vadd.f32 %v2201, %v2462
        %v2557 = vadd.f32 %v2202, %v2352
        %v2558 = vadd.f32 %v2203, %v2465
        %v2559 = vadd.f32 %v2204, %v2355
        %v2560 = vadd.f32 %v2205, %v2468
        %v2561 = vadd.f32 %v2206, %v2358
        %v2562 = vadd.f32 %v2207, %v2471
        %v2563 = vadd.f32 %v2208, %v2361
        %v2564 = vadd.f32 %v2209, %v2474
        %v2565 = vadd.f32 %v2210, %v2364
        %v2566 = vadd.f32 %v2211, %v2477
        %v2567 = vadd.f32 %v2212, %v2367
        %v2568 = vadd.f32 %v2213, %v2480
        %v2569 = vadd.f32 %v2214, %v2370
        %v2570 = vadd.f32 %v2215, %v2483
        %v2571 = vadd.f32 %v2216, %v2373
        %v2572 = vadd.f32 %v2217, %v2486
        %v2573 = vadd.f32 %v2218, %v2376
        %v2574 = vadd.f32 %v2219, %v2489
        %v2575 = vadd.f32 %v2220, %v2379
        %v2576 = vadd.f32 %v2221, %v2492
        %v2577 = vadd.f32 %v2222, %v2382
        %v2578 = vadd.f32 %v2223, %v2495
        %v2579 = vadd.f32 %v2224, %v2385
        %v2580 = vadd.f32 %v2225, %v2498
        %v2581 = vadd.f32 %v2226, %v2388
        %v2582 = vadd.f32 %v2227, %v2501
        %v2583 = vadd.f32 %v2228, %v2391
        %v2584 = vadd.f32 %v2229, %v2504
        %v2585 = vadd.f32 %v2230, %v2394
        %v2586 = vadd.f32 %v2231, %v2507
        %v2587 = vadd.f32 %v2232, %v2397
        %v2588 = vadd.f32 %v2233, %v2510
        %v2589 = vadd.f32 %v2234, %v2400
        %v2590 = vadd.f32 %v2235, %v2513
        %v2591 = vadd.f32 %v2236, %v2403
        %v2592 = vadd.f32 %v2237, %v2516
        %v2593 = vadd.f32 %v2238, %v2406
        %v2594 = vadd.f32 %v2239, %v2519
        %v2595 = vadd.f32 %v2240, %v2409
        %v2596 = vadd.f32 %v2241, %v2522
        %v2597 = vadd.f32 %v2242, %v2412
        %v2598 = vadd.f32 %v2243, %v2525
        %v2599 = vadd.f32 %v2244, %v2415
        %v2600 = vadd.f32 %v2245, %v2528
        %v2601 = vadd.f32 %v2246, %v2418
        %v2602 = vadd.f32 %v2247, %v2531
        %v2603 = vadd.f32 %v2248, %v2421
        %v2604 = vadd.f32 %v2249, %v2534
        %v2605 = vadd.f32 %v2250, %v2424
        %v2606 = vadd.f32 %v2251, %v2537
        %v2607 = vadd.f32 %v2252, %v2427
        %v2608 = vadd.f32 %v2253, %v2540
        %v2609 = vadd.f32 %v2254, %v2430
        %v2610 = vadd.f32 %v2255, %v2543
        %v2611 = vadd.f32 %v2256, %v2433
        %v2612 = vadd.f32 %v2257, %v2546
        %v2613 = vadd.f32 %v2258, %v2436
        %v2614 = vadd.f32 %v2259, %v2549
        %2615 = vst [vmem:[#allocation2] sm:$0xff] %v2551
        %2616 = vst [vmem:[#allocation2 + $0x8] sm:$0xff] %v2552
        %2617 = vst [vmem:[#allocation2 + $0x10] sm:$0xff] %v2553
        %2618 = vst [vmem:[#allocation2 + $0x18] sm:$0xff] %v2554
        %2619 = vst [vmem:[#allocation2 + $0x20] sm:$0xff] %v2555
        %2620 = vst [vmem:[#allocation2 + $0x28] sm:$0xff] %v2556
        %2621 = vst [vmem:[#allocation2 + $0x30] sm:$0xff] %v2557
        %2622 = vst [vmem:[#allocation2 + $0x38] sm:$0xff] %v2558
        %2623 = vst [vmem:[#allocation2 + $0x40] sm:$0xff] %v2559
        %2624 = vst [vmem:[#allocation2 + $0x48] sm:$0xff] %v2560
        %2625 = vst [vmem:[#allocation2 + $0x50] sm:$0xff] %v2561
        %2626 = vst [vmem:[#allocation2 + $0x58] sm:$0xff] %v2562
        %2627 = vst [vmem:[#allocation2 + $0x60] sm:$0xff] %v2563
        %2628 = vst [vmem:[#allocation2 + $0x68] sm:$0xff] %v2564
        %2629 = vst [vmem:[#allocation2 + $0x70] sm:$0xff] %v2565
        %2630 = vst [vmem:[#allocation2 + $0x78] sm:$0xff] %v2566
        %2631 = vst [vmem:[#allocation2 + $0x80] sm:$0xff] %v2567
        %2632 = vst [vmem:[#allocation2 + $0x88] sm:$0xff] %v2568
        %2633 = vst [vmem:[#allocation2 + $0x90] sm:$0xff] %v2569
        %2634 = vst [vmem:[#allocation2 + $0x98] sm:$0xff] %v2570
        %2635 = vst [vmem:[#allocation2 + $0xa0] sm:$0xff] %v2571
        %2636 = vst [vmem:[#allocation2 + $0xa8] sm:$0xff] %v2572
        %2637 = vst [vmem:[#allocation2 + $0xb0] sm:$0xff] %v2573
        %2638 = vst [vmem:[#allocation2 + $0xb8] sm:$0xff] %v2574
        %2639 = vst [vmem:[#allocation2 + $0xc0] sm:$0xff] %v2575
        %2640 = vst [vmem:[#allocation2 + $0xc8] sm:$0xff] %v2576
        %2641 = vst [vmem:[#allocation2 + $0xd0] sm:$0xff] %v2577
        %2642 = vst [vmem:[#allocation2 + $0xd8] sm:$0xff] %v2578
        %2643 = vst [vmem:[#allocation2 + $0xe0] sm:$0xff] %v2579
        %2644 = vst [vmem:[#allocation2 + $0xe8] sm:$0xff] %v2580
        %2645 = vst [vmem:[#allocation2 + $0xf0] sm:$0xff] %v2581
        %2646 = vst [vmem:[#allocation2 + $0xf8] sm:$0xff] %v2582
        %2647 = vst [vmem:[#allocation2 + $0x100] sm:$0xff] %v2583
        %2648 = vst [vmem:[#allocation2 + $0x108] sm:$0xff] %v2584
        %2649 = vst [vmem:[#allocation2 + $0x110] sm:$0xff] %v2585
        %2650 = vst [vmem:[#allocation2 + $0x118] sm:$0xff] %v2586
        %2651 = vst [vmem:[#allocation2 + $0x120] sm:$0xff] %v2587
        %2652 = vst [vmem:[#allocation2 + $0x128] sm:$0xff] %v2588
        %2653 = vst [vmem:[#allocation2 + $0x130] sm:$0xff] %v2589
        %2654 = vst [vmem:[#allocation2 + $0x138] sm:$0xff] %v2590
        %2655 = vst [vmem:[#allocation2 + $0x140] sm:$0xff] %v2591
        %2656 = vst [vmem:[#allocation2 + $0x148] sm:$0xff] %v2592
        %2657 = vst [vmem:[#allocation2 + $0x150] sm:$0xff] %v2593
        %2658 = vst [vmem:[#allocation2 + $0x158] sm:$0xff] %v2594
        %2659 = vst [vmem:[#allocation2 + $0x160] sm:$0xff] %v2595
        %2660 = vst [vmem:[#allocation2 + $0x168] sm:$0xff] %v2596
        %2661 = vst [vmem:[#allocation2 + $0x170] sm:$0xff] %v2597
        %2662 = vst [vmem:[#allocation2 + $0x178] sm:$0xff] %v2598
        %2663 = vst [vmem:[#allocation2 + $0x180] sm:$0xff] %v2599
        %2664 = vst [vmem:[#allocation2 + $0x188] sm:$0xff] %v2600
        %2665 = vst [vmem:[#allocation2 + $0x190] sm:$0xff] %v2601
        %2666 = vst [vmem:[#allocation2 + $0x198] sm:$0xff] %v2602
        %2667 = vst [vmem:[#allocation2 + $0x1a0] sm:$0xff] %v2603
        %2668 = vst [vmem:[#allocation2 + $0x1a8] sm:$0xff] %v2604
        %2669 = vst [vmem:[#allocation2 + $0x1b0] sm:$0xff] %v2605
        %2670 = vst [vmem:[#allocation2 + $0x1b8] sm:$0xff] %v2606
        %2671 = vst [vmem:[#allocation2 + $0x1c0] sm:$0xff] %v2607
        %2672 = vst [vmem:[#allocation2 + $0x1c8] sm:$0xff] %v2608
        %2673 = vst [vmem:[#allocation2 + $0x1d0] sm:$0xff] %v2609
        %2674 = vst [vmem:[#allocation2 + $0x1d8] sm:$0xff] %v2610
        %2675 = vst [vmem:[#allocation2 + $0x1e0] sm:$0xff] %v2611
        %2676 = vst [vmem:[#allocation2 + $0x1e8] sm:$0xff] %v2612
        %2677 = vst [vmem:[#allocation2 + $0x1f0] sm:$0xf] %v2613
        %2678 = vst [vmem:[#allocation2 + $0x1f8] sm:$0xf] %v2614
        %v2679 = vld [vmem:[#allocation2] sm:$0xff]
        %v2680 = vld [vmem:[#allocation2 + $0x8] sm:$0xff]
        %v2681 = vld [vmem:[#allocation2 + $0x10] sm:$0xff]
        %v2682 = vld [vmem:[#allocation2 + $0x18] sm:$0xff]
        %v2683 = vld [vmem:[#allocation2 + $0x20] sm:$0xff]
        %v2684 = vld [vmem:[#allocation2 + $0x28] sm:$0xff]
        %v2685 = vld [vmem:[#allocation2 + $0x30] sm:$0xff]
        %v2686 = vld [vmem:[#allocation2 + $0x38] sm:$0xff]
        %v2687 = vld [vmem:[#allocation2 + $0x40] sm:$0xff]
        %v2688 = vld [vmem:[#allocation2 + $0x48] sm:$0xff]
        %v2689 = vld [vmem:[#allocation2 + $0x50] sm:$0xff]
        %v2690 = vld [vmem:[#allocation2 + $0x58] sm:$0xff]
        %v2691 = vld [vmem:[#allocation2 + $0x60] sm:$0xff]
        %v2692 = vld [vmem:[#allocation2 + $0x68] sm:$0xff]
        %v2693 = vld [vmem:[#allocation2 + $0x70] sm:$0xff]
        %v2694 = vld [vmem:[#allocation2 + $0x78] sm:$0xff]
        %v2695 = vld [vmem:[#allocation2 + $0x80] sm:$0xff]
        %v2696 = vld [vmem:[#allocation2 + $0x88] sm:$0xff]
        %v2697 = vld [vmem:[#allocation2 + $0x90] sm:$0xff]
        %v2698 = vld [vmem:[#allocation2 + $0x98] sm:$0xff]
        %v2699 = vld [vmem:[#allocation2 + $0xa0] sm:$0xff]
        %v2700 = vld [vmem:[#allocation2 + $0xa8] sm:$0xff]
        %v2701 = vld [vmem:[#allocation2 + $0xb0] sm:$0xff]
        %v2702 = vld [vmem:[#allocation2 + $0xb8] sm:$0xff]
        %v2703 = vld [vmem:[#allocation2 + $0xc0] sm:$0xff]
        %v2704 = vld [vmem:[#allocation2 + $0xc8] sm:$0xff]
        %v2705 = vld [vmem:[#allocation2 + $0xd0] sm:$0xff]
        %v2706 = vld [vmem:[#allocation2 + $0xd8] sm:$0xff]
        %v2707 = vld [vmem:[#allocation2 + $0xe0] sm:$0xff]
        %v2708 = vld [vmem:[#allocation2 + $0xe8] sm:$0xff]
        %v2709 = vld [vmem:[#allocation2 + $0xf0] sm:$0xff]
        %v2710 = vld [vmem:[#allocation2 + $0xf8] sm:$0xff]
        %v2711 = vld [vmem:[#allocation2 + $0x100] sm:$0xff]
        %v2712 = vld [vmem:[#allocation2 + $0x108] sm:$0xff]
        %v2713 = vld [vmem:[#allocation2 + $0x110] sm:$0xff]
        %v2714 = vld [vmem:[#allocation2 + $0x118] sm:$0xff]
        %v2715 = vld [vmem:[#allocation2 + $0x120] sm:$0xff]
        %v2716 = vld [vmem:[#allocation2 + $0x128] sm:$0xff]
        %v2717 = vld [vmem:[#allocation2 + $0x130] sm:$0xff]
        %v2718 = vld [vmem:[#allocation2 + $0x138] sm:$0xff]
        %v2719 = vld [vmem:[#allocation2 + $0x140] sm:$0xff]
        %v2720 = vld [vmem:[#allocation2 + $0x148] sm:$0xff]
        %v2721 = vld [vmem:[#allocation2 + $0x150] sm:$0xff]
        %v2722 = vld [vmem:[#allocation2 + $0x158] sm:$0xff]
        %v2723 = vld [vmem:[#allocation2 + $0x160] sm:$0xff]
        %v2724 = vld [vmem:[#allocation2 + $0x168] sm:$0xff]
        %v2725 = vld [vmem:[#allocation2 + $0x170] sm:$0xff]
        %v2726 = vld [vmem:[#allocation2 + $0x178] sm:$0xff]
        %v2727 = vld [vmem:[#allocation2 + $0x180] sm:$0xff]
        %v2728 = vld [vmem:[#allocation2 + $0x188] sm:$0xff]
        %v2729 = vld [vmem:[#allocation2 + $0x190] sm:$0xff]
        %v2730 = vld [vmem:[#allocation2 + $0x198] sm:$0xff]
        %v2731 = vld [vmem:[#allocation2 + $0x1a0] sm:$0xff]
        %v2732 = vld [vmem:[#allocation2 + $0x1a8] sm:$0xff]
        %v2733 = vld [vmem:[#allocation2 + $0x1b0] sm:$0xff]
        %v2734 = vld [vmem:[#allocation2 + $0x1b8] sm:$0xff]
        %v2735 = vld [vmem:[#allocation2 + $0x1c0] sm:$0xff]
        %v2736 = vld [vmem:[#allocation2 + $0x1c8] sm:$0xff]
        %v2737 = vld [vmem:[#allocation2 + $0x1d0] sm:$0xff]
        %v2738 = vld [vmem:[#allocation2 + $0x1d8] sm:$0xff]
        %v2739 = vld [vmem:[#allocation2 + $0x1e0] sm:$0xff]
        %v2740 = vld [vmem:[#allocation2 + $0x1e8] sm:$0xff]
        %v2741 = vld [vmem:[#allocation2 + $0x1f0] sm:$0xf]
        %v2742 = vld [vmem:[#allocation2 + $0x1f8] sm:$0xf]
        %v2743 = vld [vmem:[%s2] sm:$0x3]
        %v2745 = vperm.slane %v2743, 0
        %v2746 = vperm.slane %v2743, 1
        %v2749 = vadd.f32 %v2679, %v2745
        %v2750 = vadd.f32 %v2680, %v2746
        %v2751 = vadd.f32 %v2681, %v2745
        %v2752 = vadd.f32 %v2682, %v2746
        %v2753 = vadd.f32 %v2683, %v2745
        %v2754 = vadd.f32 %v2684, %v2746
        %v2755 = vadd.f32 %v2685, %v2745
        %v2756 = vadd.f32 %v2686, %v2746
        %v2757 = vadd.f32 %v2687, %v2745
        %v2758 = vadd.f32 %v2688, %v2746
        %v2759 = vadd.f32 %v2689, %v2745
        %v2760 = vadd.f32 %v2690, %v2746
        %v2761 = vadd.f32 %v2691, %v2745
        %v2762 = vadd.f32 %v2692, %v2746
        %v2763 = vadd.f32 %v2693, %v2745
        %v2764 = vadd.f32 %v2694, %v2746
        %v2765 = vadd.f32 %v2695, %v2745
        %v2766 = vadd.f32 %v2696, %v2746
        %v2767 = vadd.f32 %v2697, %v2745
        %v2768 = vadd.f32 %v2698, %v2746
        %v2769 = vadd.f32 %v2699, %v2745
        %v2770 = vadd.f32 %v2700, %v2746
        %v2771 = vadd.f32 %v2701, %v2745
        %v2772 = vadd.f32 %v2702, %v2746
        %v2773 = vadd.f32 %v2703, %v2745
        %v2774 = vadd.f32 %v2704, %v2746
        %v2775 = vadd.f32 %v2705, %v2745
        %v2776 = vadd.f32 %v2706, %v2746
        %v2777 = vadd.f32 %v2707, %v2745
        %v2778 = vadd.f32 %v2708, %v2746
        %v2779 = vadd.f32 %v2709, %v2745
        %v2780 = vadd.f32 %v2710, %v2746
        %v2781 = vadd.f32 %v2711, %v2745
        %v2782 = vadd.f32 %v2712, %v2746
        %v2783 = vadd.f32 %v2713, %v2745
        %v2784 = vadd.f32 %v2714, %v2746
        %v2785 = vadd.f32 %v2715, %v2745
        %v2786 = vadd.f32 %v2716, %v2746
        %v2787 = vadd.f32 %v2717, %v2745
        %v2788 = vadd.f32 %v2718, %v2746
        %v2789 = vadd.f32 %v2719, %v2745
        %v2790 = vadd.f32 %v2720, %v2746
        %v2791 = vadd.f32 %v2721, %v2745
        %v2792 = vadd.f32 %v2722, %v2746
        %v2793 = vadd.f32 %v2723, %v2745
        %v2794 = vadd.f32 %v2724, %v2746
        %v2795 = vadd.f32 %v2725, %v2745
        %v2796 = vadd.f32 %v2726, %v2746
        %v2797 = vadd.f32 %v2727, %v2745
        %v2798 = vadd.f32 %v2728, %v2746
        %v2799 = vadd.f32 %v2729, %v2745
        %v2800 = vadd.f32 %v2730, %v2746
        %v2801 = vadd.f32 %v2731, %v2745
        %v2802 = vadd.f32 %v2732, %v2746
        %v2803 = vadd.f32 %v2733, %v2745
        %v2804 = vadd.f32 %v2734, %v2746
        %v2805 = vadd.f32 %v2735, %v2745
        %v2806 = vadd.f32 %v2736, %v2746
        %v2807 = vadd.f32 %v2737, %v2745
        %v2808 = vadd.f32 %v2738, %v2746
        %v2809 = vadd.f32 %v2739, %v2745
        %v2810 = vadd.f32 %v2740, %v2746
        %v2811 = vadd.f32 %v2741, %v2745
        %v2812 = vadd.f32 %v2742, %v2746
        %v2813 = vmax.f32 %v2749, 0.0
        %v2814 = vmax.f32 %v2750, 0.0
        %v2815 = vmax.f32 %v2751, 0.0
        %v2816 = vmax.f32 %v2752, 0.0
        %v2817 = vmax.f32 %v2753, 0.0
        %v2818 = vmax.f32 %v2754, 0.0
        %v2819 = vmax.f32 %v2755, 0.0
        %v2820 = vmax.f32 %v2756, 0.0
        %v2821 = vmax.f32 %v2757, 0.0
        %v2822 = vmax.f32 %v2758, 0.0
        %v2823 = vmax.f32 %v2759, 0.0
        %v2824 = vmax.f32 %v2760, 0.0
        %v2825 = vmax.f32 %v2761, 0.0
        %v2826 = vmax.f32 %v2762, 0.0
        %v2827 = vmax.f32 %v2763, 0.0
        %v2828 = vmax.f32 %v2764, 0.0
        %v2829 = vmax.f32 %v2765, 0.0
        %v2830 = vmax.f32 %v2766, 0.0
        %v2831 = vmax.f32 %v2767, 0.0
        %v2832 = vmax.f32 %v2768, 0.0
        %v2833 = vmax.f32 %v2769, 0.0
        %v2834 = vmax.f32 %v2770, 0.0
        %v2835 = vmax.f32 %v2771, 0.0
        %v2836 = vmax.f32 %v2772, 0.0
        %v2837 = vmax.f32 %v2773, 0.0
        %v2838 = vmax.f32 %v2774, 0.0
        %v2839 = vmax.f32 %v2775, 0.0
        %v2840 = vmax.f32 %v2776, 0.0
        %v2841 = vmax.f32 %v2777, 0.0
        %v2842 = vmax.f32 %v2778, 0.0
        %v2843 = vmax.f32 %v2779, 0.0
        %v2844 = vmax.f32 %v2780, 0.0
        %v2845 = vmax.f32 %v2781, 0.0
        %v2846 = vmax.f32 %v2782, 0.0
        %v2847 = vmax.f32 %v2783, 0.0
        %v2848 = vmax.f32 %v2784, 0.0
        %v2849 = vmax.f32 %v2785, 0.0
        %v2850 = vmax.f32 %v2786, 0.0
        %v2851 = vmax.f32 %v2787, 0.0
        %v2852 = vmax.f32 %v2788, 0.0
        %v2853 = vmax.f32 %v2789, 0.0
        %v2854 = vmax.f32 %v2790, 0.0
        %v2855 = vmax.f32 %v2791, 0.0
        %v2856 = vmax.f32 %v2792, 0.0
        %v2857 = vmax.f32 %v2793, 0.0
        %v2858 = vmax.f32 %v2794, 0.0
        %v2859 = vmax.f32 %v2795, 0.0
        %v2860 = vmax.f32 %v2796, 0.0
        %v2861 = vmax.f32 %v2797, 0.0
        %v2862 = vmax.f32 %v2798, 0.0
        %v2863 = vmax.f32 %v2799, 0.0
        %v2864 = vmax.f32 %v2800, 0.0
        %v2865 = vmax.f32 %v2801, 0.0
        %v2866 = vmax.f32 %v2802, 0.0
        %v2867 = vmax.f32 %v2803, 0.0
        %v2868 = vmax.f32 %v2804, 0.0
        %v2869 = vmax.f32 %v2805, 0.0
        %v2870 = vmax.f32 %v2806, 0.0
        %v2871 = vmax.f32 %v2807, 0.0
        %v2872 = vmax.f32 %v2808, 0.0
        %v2873 = vmax.f32 %v2809, 0.0
        %v2874 = vmax.f32 %v2810, 0.0
        %v2875 = vmax.f32 %v2811, 0.0
        %v2876 = vmax.f32 %v2812, 0.0
        %v2877 = vmax.f32 %v2813, %v2814
        %v2878 = vmax.f32 %v2815, %v2816
        %v2879 = vmax.f32 %v2817, %v2818
        %v2880 = vmax.f32 %v2819, %v2820
        %v2881 = vmax.f32 %v2821, %v2822
        %v2882 = vmax.f32 %v2823, %v2824
        %v2883 = vmax.f32 %v2825, %v2826
        %v2884 = vmax.f32 %v2827, %v2828
        %v2885 = vmax.f32 %v2829, %v2830
        %v2886 = vmax.f32 %v2831, %v2832
        %v2887 = vmax.f32 %v2833, %v2834
        %v2888 = vmax.f32 %v2835, %v2836
        %v2889 = vmax.f32 %v2837, %v2838
        %v2890 = vmax.f32 %v2839, %v2840
        %v2891 = vmax.f32 %v2841, %v2842
        %v2892 = vmax.f32 %v2843, %v2844
        %v2893 = vmax.f32 %v2845, %v2846
        %v2894 = vmax.f32 %v2847, %v2848
        %v2895 = vmax.f32 %v2849, %v2850
        %v2896 = vmax.f32 %v2851, %v2852
        %v2897 = vmax.f32 %v2853, %v2854
        %v2898 = vmax.f32 %v2855, %v2856
        %v2899 = vmax.f32 %v2857, %v2858
        %v2900 = vmax.f32 %v2859, %v2860
        %v2901 = vmax.f32 %v2861, %v2862
        %v2902 = vmax.f32 %v2863, %v2864
        %v2903 = vmax.f32 %v2865, %v2866
        %v2904 = vmax.f32 %v2867, %v2868
        %v2905 = vmax.f32 %v2869, %v2870
        %v2906 = vmax.f32 %v2871, %v2872
        %v2907 = vmax.f32 %v2873, %v2874
        %v2908 = vmax.f32 %v2875, %v2876
        %2909 = vst [vmem:[#allocation3] sm:$0xff] %v2877
        %2910 = vst [vmem:[#allocation3 + $0x8] sm:$0xff] %v2878
        %2911 = vst [vmem:[#allocation3 + $0x10] sm:$0xff] %v2879
        %2912 = vst [vmem:[#allocation3 + $0x18] sm:$0xff] %v2880
        %2913 = vst [vmem:[#allocation3 + $0x20] sm:$0xff] %v2881
        %2914 = vst [vmem:[#allocation3 + $0x28] sm:$0xff] %v2882
        %2915 = vst [vmem:[#allocation3 + $0x30] sm:$0xff] %v2883
        %2916 = vst [vmem:[#allocation3 + $0x38] sm:$0xff] %v2884
        %2917 = vst [vmem:[#allocation3 + $0x40] sm:$0xff] %v2885
        %2918 = vst [vmem:[#allocation3 + $0x48] sm:$0xff] %v2886
        %2919 = vst [vmem:[#allocation3 + $0x50] sm:$0xff] %v2887
        %2920 = vst [vmem:[#allocation3 + $0x58] sm:$0xff] %v2888
        %2921 = vst [vmem:[#allocation3 + $0x60] sm:$0xff] %v2889
        %2922 = vst [vmem:[#allocation3 + $0x68] sm:$0xff] %v2890
        %2923 = vst [vmem:[#allocation3 + $0x70] sm:$0xff] %v2891
        %2924 = vst [vmem:[#allocation3 + $0x78] sm:$0xff] %v2892
        %2925 = vst [vmem:[#allocation3 + $0x80] sm:$0xff] %v2893
        %2926 = vst [vmem:[#allocation3 + $0x88] sm:$0xff] %v2894
        %2927 = vst [vmem:[#allocation3 + $0x90] sm:$0xff] %v2895
        %2928 = vst [vmem:[#allocation3 + $0x98] sm:$0xff] %v2896
        %2929 = vst [vmem:[#allocation3 + $0xa0] sm:$0xff] %v2897
        %2930 = vst [vmem:[#allocation3 + $0xa8] sm:$0xff] %v2898
        %2931 = vst [vmem:[#allocation3 + $0xb0] sm:$0xff] %v2899
        %2932 = vst [vmem:[#allocation3 + $0xb8] sm:$0xff] %v2900
        %2933 = vst [vmem:[#allocation3 + $0xc0] sm:$0xff] %v2901
        %2934 = vst [vmem:[#allocation3 + $0xc8] sm:$0xff] %v2902
        %2935 = vst [vmem:[#allocation3 + $0xd0] sm:$0xff] %v2903
        %2936 = vst [vmem:[#allocation3 + $0xd8] sm:$0xff] %v2904
        %2937 = vst [vmem:[#allocation3 + $0xe0] sm:$0xff] %v2905
        %2938 = vst [vmem:[#allocation3 + $0xe8] sm:$0xff] %v2906
        %2939 = vst [vmem:[#allocation3 + $0xf0] sm:$0xff] %v2907
        %2940 = vst [vmem:[#allocation3 + $0xf8] sm:$0xf] %v2908
        %v2941 = vld [vmem:[#allocation3] ss:$2 sm:$0xff]
        %s2942 = scalar_lea.vmem [#allocation3], 16
        %v2943 = vld [vmem:[%s2942] ss:$2 sm:$0xff]
        %s2944 = scalar_lea.vmem [#allocation3], 32
        %v2945 = vld [vmem:[%s2944] ss:$2 sm:$0xff]
        %s2946 = scalar_lea.vmem [#allocation3], 48
        %v2947 = vld [vmem:[%s2946] ss:$2 sm:$0xff]
        %s2948 = scalar_lea.vmem [#allocation3], 64
        %v2949 = vld [vmem:[%s2948] ss:$2 sm:$0xff]
        %s2950 = scalar_lea.vmem [#allocation3], 80
        %v2951 = vld [vmem:[%s2950] ss:$2 sm:$0xff]
        %s2952 = scalar_lea.vmem [#allocation3], 96
        %v2953 = vld [vmem:[%s2952] ss:$2 sm:$0xff]
        %s2954 = scalar_lea.vmem [#allocation3], 112
        %v2955 = vld [vmem:[%s2954] ss:$2 sm:$0xff]
        %s2956 = scalar_lea.vmem [#allocation3], 128
        %v2957 = vld [vmem:[%s2956] ss:$2 sm:$0xff]
        %s2958 = scalar_lea.vmem [#allocation3], 144
        %v2959 = vld [vmem:[%s2958] ss:$2 sm:$0xff]
        %s2960 = scalar_lea.vmem [#allocation3], 160
        %v2961 = vld [vmem:[%s2960] ss:$2 sm:$0xff]
        %s2962 = scalar_lea.vmem [#allocation3], 176
        %v2963 = vld [vmem:[%s2962] ss:$2 sm:$0xff]
        %s2964 = scalar_lea.vmem [#allocation3], 192
        %v2965 = vld [vmem:[%s2964] ss:$2 sm:$0xff]
        %s2966 = scalar_lea.vmem [#allocation3], 208
        %v2967 = vld [vmem:[%s2966] ss:$2 sm:$0xff]
        %s2968 = scalar_lea.vmem [#allocation3], 224
        %v2969 = vld [vmem:[%s2968] ss:$2 sm:$0xff]
        %s2970 = scalar_lea.vmem [#allocation3], 240
        %v2971 = vld [vmem:[%s2970] ss:$2 sm:$0xff]
        %s2972 = scalar_lea.vmem [#allocation3], 1
        %v2973 = vld [vmem:[%s2972] ss:$2 sm:$0xff]
        %s2974 = scalar_lea.vmem [#allocation3], 17
        %v2975 = vld [vmem:[%s2974] ss:$2 sm:$0xff]
        %s2976 = scalar_lea.vmem [#allocation3], 33
        %v2977 = vld [vmem:[%s2976] ss:$2 sm:$0xff]
        %s2978 = scalar_lea.vmem [#allocation3], 49
        %v2979 = vld [vmem:[%s2978] ss:$2 sm:$0xff]
        %s2980 = scalar_lea.vmem [#allocation3], 65
        %v2981 = vld [vmem:[%s2980] ss:$2 sm:$0xff]
        %s2982 = scalar_lea.vmem [#allocation3], 81
        %v2983 = vld [vmem:[%s2982] ss:$2 sm:$0xff]
        %s2984 = scalar_lea.vmem [#allocation3], 97
        %v2985 = vld [vmem:[%s2984] ss:$2 sm:$0xff]
        %s2986 = scalar_lea.vmem [#allocation3], 113
        %v2987 = vld [vmem:[%s2986] ss:$2 sm:$0xff]
        %s2988 = scalar_lea.vmem [#allocation3], 129
        %v2989 = vld [vmem:[%s2988] ss:$2 sm:$0xff]
        %s2990 = scalar_lea.vmem [#allocation3], 145
        %v2991 = vld [vmem:[%s2990] ss:$2 sm:$0xff]
        %s2992 = scalar_lea.vmem [#allocation3], 161
        %v2993 = vld [vmem:[%s2992] ss:$2 sm:$0xff]
        %s2994 = scalar_lea.vmem [#allocation3], 177
        %v2995 = vld [vmem:[%s2994] ss:$2 sm:$0xff]
        %s2996 = scalar_lea.vmem [#allocation3], 193
        %v2997 = vld [vmem:[%s2996] ss:$2 sm:$0xff]
        %s2998 = scalar_lea.vmem [#allocation3], 209
        %v2999 = vld [vmem:[%s2998] ss:$2 sm:$0xff]
        %s3000 = scalar_lea.vmem [#allocation3], 225
        %v3001 = vld [vmem:[%s3000] ss:$2 sm:$0xff]
        %s3002 = scalar_lea.vmem [#allocation3], 241
        %v3003 = vld [vmem:[%s3002] ss:$2 sm:$0xff]
        %v3004 = vmax.f32 %v2941, %v2973
        %v3005 = vmax.f32 %v2943, %v2975
        %v3006 = vmax.f32 %v2945, %v2977
        %v3007 = vmax.f32 %v2947, %v2979
        %v3008 = vmax.f32 %v2949, %v2981
        %v3009 = vmax.f32 %v2951, %v2983
        %v3010 = vmax.f32 %v2953, %v2985
        %v3011 = vmax.f32 %v2955, %v2987
        %v3012 = vmax.f32 %v2957, %v2989
        %v3013 = vmax.f32 %v2959, %v2991
        %v3014 = vmax.f32 %v2961, %v2993
        %v3015 = vmax.f32 %v2963, %v2995
        %v3016 = vmax.f32 %v2965, %v2997
        %v3017 = vmax.f32 %v2967, %v2999
        %v3018 = vmax.f32 %v2969, %v3001
        %v3019 = vmax.f32 %v2971, %v3003
        %3020 = vst [vmem:[#allocation4] sm:$0xff] %v3004
        %3021 = vst [vmem:[#allocation4 + $0x8] sm:$0xff] %v3005
        %3022 = vst [vmem:[#allocation4 + $0x10] sm:$0xff] %v3006
        %3023 = vst [vmem:[#allocation4 + $0x18] sm:$0xff] %v3007
        %3024 = vst [vmem:[#allocation4 + $0x20] sm:$0xff] %v3008
        %3025 = vst [vmem:[#allocation4 + $0x28] sm:$0xff] %v3009
        %3026 = vst [vmem:[#allocation4 + $0x30] sm:$0xff] %v3010
        %3027 = vst [vmem:[#allocation4 + $0x38] sm:$0xff] %v3011
        %3028 = vst [vmem:[#allocation4 + $0x40] sm:$0xff] %v3012
        %3029 = vst [vmem:[#allocation4 + $0x48] sm:$0xff] %v3013
        %3030 = vst [vmem:[#allocation4 + $0x50] sm:$0xff] %v3014
        %3031 = vst [vmem:[#allocation4 + $0x58] sm:$0xff] %v3015
        %3032 = vst [vmem:[#allocation4 + $0x60] sm:$0xff] %v3016
        %3033 = vst [vmem:[#allocation4 + $0x68] sm:$0xff] %v3017
        %3034 = vst [vmem:[#allocation4 + $0x70] sm:$0xff] %v3018
        %3035 = vst [vmem:[#allocation4 + $0x78] sm:$0xff] %v3019
        %v3036 = vld [vmem:[#allocation4] sm:$0xff]
        %v3037 = vld [vmem:[#allocation4 + $0x8] sm:$0xff]
        %v3038 = vld [vmem:[#allocation4 + $0x10] sm:$0xff]
        %v3039 = vld [vmem:[#allocation4 + $0x18] sm:$0xff]
        %v3040 = vld [vmem:[#allocation4 + $0x20] sm:$0xff]
        %v3041 = vld [vmem:[#allocation4 + $0x28] sm:$0xff]
        %v3042 = vld [vmem:[#allocation4 + $0x30] sm:$0xff]
        %v3043 = vld [vmem:[#allocation4 + $0x38] sm:$0xff]
        %v3044 = vld [vmem:[#allocation4 + $0x40] sm:$0xff]
        %v3045 = vld [vmem:[#allocation4 + $0x48] sm:$0xff]
        %v3046 = vld [vmem:[#allocation4 + $0x50] sm:$0xff]
        %v3047 = vld [vmem:[#allocation4 + $0x58] sm:$0xff]
        %v3048 = vld [vmem:[#allocation4 + $0x60] sm:$0xff]
        %v3049 = vld [vmem:[#allocation4 + $0x68] sm:$0xff]
        %v3050 = vld [vmem:[#allocation4 + $0x70] sm:$0xff]
        %v3051 = vld [vmem:[#allocation4 + $0x78] sm:$0xf]
        %v3052 = vld [vmem:[%s3] sm:$0xff]
        %v3053 = vld [vmem:[%s3 + $0x8] sm:$0xff]
        %v3054 = vld [vmem:[%s3 + $0x10] sm:$0xff]
        %v3055 = vld [vmem:[%s3 + $0x18] sm:$0xff]
        %v3056 = vld [vmem:[%s3 + $0x20] sm:$0xff]
        %v3057 = vld [vmem:[%s3 + $0x28] sm:$0xff]
        %v3058 = vld [vmem:[%s3 + $0x30] sm:$0xff]
        %v3059 = vld [vmem:[%s3 + $0x38] sm:$0xff]
        %v3060 = vld [vmem:[%s3 + $0x40] sm:$0xff]
        %v3061 = vld [vmem:[%s3 + $0x48] sm:$0xff]
        %v3062 = vld [vmem:[%s3 + $0x50] sm:$0xff]
        %v3063 = vld [vmem:[%s3 + $0x58] sm:$0xff]
        %v3064 = vld [vmem:[%s3 + $0x60] sm:$0xff]
        %v3065 = vld [vmem:[%s3 + $0x68] sm:$0xff]
        %v3066 = vld [vmem:[%s3 + $0x70] sm:$0xff]
        %v3067 = vld [vmem:[%s3 + $0x78] sm:$0xff]
        %v3068 = vld [vmem:[%s3 + $0x80] sm:$0xff]
        %v3069 = vld [vmem:[%s3 + $0x88] sm:$0xff]
        %v3070 = vld [vmem:[%s3 + $0x90] sm:$0xff]
        %v3071 = vld [vmem:[%s3 + $0x98] sm:$0xff]
        %v3072 = vld [vmem:[%s3 + $0xa0] sm:$0xff]
        %v3073 = vld [vmem:[%s3 + $0xa8] sm:$0xff]
        %v3074 = vld [vmem:[%s3 + $0xb0] sm:$0xff]
        %v3075 = vld [vmem:[%s3 + $0xb8] sm:$0xff]
        %v3076 = vld [vmem:[%s3 + $0xc0] sm:$0xff]
        %v3077 = vld [vmem:[%s3 + $0xc8] sm:$0xff]
        %v3078 = vld [vmem:[%s3 + $0xd0] sm:$0xff]
        %v3079 = vld [vmem:[%s3 + $0xd8] sm:$0xff]
        %v3080 = vld [vmem:[%s3 + $0xe0] sm:$0xff]
        %v3081 = vld [vmem:[%s3 + $0xe8] sm:$0xff]
        %v3082 = vld [vmem:[%s3 + $0xf0] sm:$0xff]
        %v3083 = vld [vmem:[%s3 + $0xf8] sm:$0xff]
        %3084 = vmatpush.msra.mxu0 %v3082
        %3085 = vmatpush.msra.mxu0 %v3080
        %3086 = vmatpush.msra.mxu0 %v3078
        %3087 = vmatpush.msra.mxu0 %v3076
        %3088 = vmatpush.msra.mxu0 %v3074
        %3089 = vmatpush.msra.mxu0 %v3072
        %3090 = vmatpush.msra.mxu0 %v3070
        %3091 = vmatpush.msra.mxu0 %v3068
        %3092 = vmatpush.msra.mxu0 %v3066
        %3093 = vmatpush.msra.mxu0 %v3064
        %3094 = vmatpush.msra.mxu0 %v3062
        %3095 = vmatpush.msra.mxu0 %v3060
        %3096 = vmatpush.msra.mxu0 %v3058
        %3097 = vmatpush.msra.mxu0 %v3056
        %3098 = vmatpush.msra.mxu0 %v3054
        %3099 = vmatpush.msra.mxu0 %v3052
        %3100 = vmatmul.f32.gmra.mxu0 %v3036
        %v3101 = vpop.f32.mrf.mxu0
        %v3102 = vadd.f32 0.0, %v3101
        %3103 = vmatmul.f32.gmra.mxu0 %v3037
        %v3104 = vpop.f32.mrf.mxu0
        %v3105 = vadd.f32 0.0, %v3104
        %3106 = vmatmul.f32.gmra.mxu0 %v3038
        %v3107 = vpop.f32.mrf.mxu0
        %v3108 = vadd.f32 0.0, %v3107
        %3109 = vmatmul.f32.gmra.mxu0 %v3039
        %v3110 = vpop.f32.mrf.mxu0
        %v3111 = vadd.f32 0.0, %v3110
        %3112 = vmatmul.f32.gmra.mxu0 %v3040
        %v3113 = vpop.f32.mrf.mxu0
        %v3114 = vadd.f32 0.0, %v3113
        %3115 = vmatmul.f32.gmra.mxu0 %v3041
        %v3116 = vpop.f32.mrf.mxu0
        %v3117 = vadd.f32 0.0, %v3116
        %3118 = vmatmul.f32.gmra.mxu0 %v3042
        %v3119 = vpop.f32.mrf.mxu0
        %v3120 = vadd.f32 0.0, %v3119
        %3121 = vmatmul.f32.gmra.mxu0 %v3043
        %v3122 = vpop.f32.mrf.mxu0
        %v3123 = vadd.f32 0.0, %v3122
        %3124 = vmatmul.f32.gmra.mxu0 %v3044
        %v3125 = vpop.f32.mrf.mxu0
        %v3126 = vadd.f32 0.0, %v3125
        %3127 = vmatmul.f32.gmra.mxu0 %v3045
        %v3128 = vpop.f32.mrf.mxu0
        %v3129 = vadd.f32 0.0, %v3128
        %3130 = vmatmul.f32.gmra.mxu0 %v3046
        %v3131 = vpop.f32.mrf.mxu0
        %v3132 = vadd.f32 0.0, %v3131
        %3133 = vmatmul.f32.gmra.mxu0 %v3047
        %v3134 = vpop.f32.mrf.mxu0
        %v3135 = vadd.f32 0.0, %v3134
        %3136 = vmatmul.f32.gmra.mxu0 %v3048
        %v3137 = vpop.f32.mrf.mxu0
        %v3138 = vadd.f32 0.0, %v3137
        %3139 = vmatmul.f32.gmra.mxu0 %v3049
        %v3140 = vpop.f32.mrf.mxu0
        %v3141 = vadd.f32 0.0, %v3140
        %3142 = vmatmul.f32.gmra.mxu0 %v3050
        %v3143 = vpop.f32.mrf.mxu0
        %v3144 = vadd.f32 0.0, %v3143
        %3145 = vmatmul.f32.gmra.mxu0 %v3051
        %v3146 = vpop.f32.mrf.mxu0
        %v3147 = vadd.f32 0.0, %v3146
        %3148 = vdwg.mxu0
        %3149 = vmatpush.msra.mxu0 %v3083
        %3150 = vmatpush.msra.mxu0 %v3081
        %3151 = vmatpush.msra.mxu0 %v3079
        %3152 = vmatpush.msra.mxu0 %v3077
        %3153 = vmatpush.msra.mxu0 %v3075
        %3154 = vmatpush.msra.mxu0 %v3073
        %3155 = vmatpush.msra.mxu0 %v3071
        %3156 = vmatpush.msra.mxu0 %v3069
        %3157 = vmatpush.msra.mxu0 %v3067
        %3158 = vmatpush.msra.mxu0 %v3065
        %3159 = vmatpush.msra.mxu0 %v3063
        %3160 = vmatpush.msra.mxu0 %v3061
        %3161 = vmatpush.msra.mxu0 %v3059
        %3162 = vmatpush.msra.mxu0 %v3057
        %3163 = vmatpush.msra.mxu0 %v3055
        %3164 = vmatpush.msra.mxu0 %v3053
        %3165 = vmatmul.f32.gmra.mxu0 %v3036
        %v3166 = vpop.f32.mrf.mxu0
        %v3167 = vadd.f32 0.0, %v3166
        %3168 = vmatmul.f32.gmra.mxu0 %v3037
        %v3169 = vpop.f32.mrf.mxu0
        %v3170 = vadd.f32 0.0, %v3169
        %3171 = vmatmul.f32.gmra.mxu0 %v3038
        %v3172 = vpop.f32.mrf.mxu0
        %v3173 = vadd.f32 0.0, %v3172
        %3174 = vmatmul.f32.gmra.mxu0 %v3039
        %v3175 = vpop.f32.mrf.mxu0
        %v3176 = vadd.f32 0.0, %v3175
        %3177 = vmatmul.f32.gmra.mxu0 %v3040
        %v3178 = vpop.f32.mrf.mxu0
        %v3179 = vadd.f32 0.0, %v3178
        %3180 = vmatmul.f32.gmra.mxu0 %v3041
        %v3181 = vpop.f32.mrf.mxu0
        %v3182 = vadd.f32 0.0, %v3181
        %3183 = vmatmul.f32.gmra.mxu0 %v3042
        %v3184 = vpop.f32.mrf.mxu0
        %v3185 = vadd.f32 0.0, %v3184
        %3186 = vmatmul.f32.gmra.mxu0 %v3043
        %v3187 = vpop.f32.mrf.mxu0
        %v3188 = vadd.f32 0.0, %v3187
        %3189 = vmatmul.f32.gmra.mxu0 %v3044
        %v3190 = vpop.f32.mrf.mxu0
        %v3191 = vadd.f32 0.0, %v3190
        %3192 = vmatmul.f32.gmra.mxu0 %v3045
        %v3193 = vpop.f32.mrf.mxu0
        %v3194 = vadd.f32 0.0, %v3193
        %3195 = vmatmul.f32.gmra.mxu0 %v3046
        %v3196 = vpop.f32.mrf.mxu0
        %v3197 = vadd.f32 0.0, %v3196
        %3198 = vmatmul.f32.gmra.mxu0 %v3047
        %v3199 = vpop.f32.mrf.mxu0
        %v3200 = vadd.f32 0.0, %v3199
        %3201 = vmatmul.f32.gmra.mxu0 %v3048
        %v3202 = vpop.f32.mrf.mxu0
        %v3203 = vadd.f32 0.0, %v3202
        %3204 = vmatmul.f32.gmra.mxu0 %v3049
        %v3205 = vpop.f32.mrf.mxu0
        %v3206 = vadd.f32 0.0, %v3205
        %3207 = vmatmul.f32.gmra.mxu0 %v3050
        %v3208 = vpop.f32.mrf.mxu0
        %v3209 = vadd.f32 0.0, %v3208
        %3210 = vmatmul.f32.gmra.mxu0 %v3051
        %v3211 = vpop.f32.mrf.mxu0
        %v3212 = vadd.f32 0.0, %v3211
        %3213 = vdwg.mxu0
        %3214 = vst [vmem:[#allocation2] sm:$0xff] %v3102
        %3215 = vst [vmem:[#allocation2 + $0x8] sm:$0xff] %v3167
        %3216 = vst [vmem:[#allocation2 + $0x10] sm:$0xff] %v3105
        %3217 = vst [vmem:[#allocation2 + $0x18] sm:$0xff] %v3170
        %3218 = vst [vmem:[#allocation2 + $0x20] sm:$0xff] %v3108
        %3219 = vst [vmem:[#allocation2 + $0x28] sm:$0xff] %v3173
        %3220 = vst [vmem:[#allocation2 + $0x30] sm:$0xff] %v3111
        %3221 = vst [vmem:[#allocation2 + $0x38] sm:$0xff] %v3176
        %3222 = vst [vmem:[#allocation2 + $0x40] sm:$0xff] %v3114
        %3223 = vst [vmem:[#allocation2 + $0x48] sm:$0xff] %v3179
        %3224 = vst [vmem:[#allocation2 + $0x50] sm:$0xff] %v3117
        %3225 = vst [vmem:[#allocation2 + $0x58] sm:$0xff] %v3182
        %3226 = vst [vmem:[#allocation2 + $0x60] sm:$0xff] %v3120
        %3227 = vst [vmem:[#allocation2 + $0x68] sm:$0xff] %v3185
        %3228 = vst [vmem:[#allocation2 + $0x70] sm:$0xff] %v3123
        %3229 = vst [vmem:[#allocation2 + $0x78] sm:$0xff] %v3188
        %3230 = vst [vmem:[#allocation2 + $0x80] sm:$0xff] %v3126
        %3231 = vst [vmem:[#allocation2 + $0x88] sm:$0xff] %v3191
        %3232 = vst [vmem:[#allocation2 + $0x90] sm:$0xff] %v3129
        %3233 = vst [vmem:[#allocation2 + $0x98] sm:$0xff] %v3194
        %3234 = vst [vmem:[#allocation2 + $0xa0] sm:$0xff] %v3132
        %3235 = vst [vmem:[#allocation2 + $0xa8] sm:$0xff] %v3197
        %3236 = vst [vmem:[#allocation2 + $0xb0] sm:$0xff] %v3135
        %3237 = vst [vmem:[#allocation2 + $0xb8] sm:$0xff] %v3200
        %3238 = vst [vmem:[#allocation2 + $0xc0] sm:$0xff] %v3138
        %3239 = vst [vmem:[#allocation2 + $0xc8] sm:$0xff] %v3203
        %3240 = vst [vmem:[#allocation2 + $0xd0] sm:$0xff] %v3141
        %3241 = vst [vmem:[#allocation2 + $0xd8] sm:$0xff] %v3206
        %3242 = vst [vmem:[#allocation2 + $0xe0] sm:$0xff] %v3144
        %3243 = vst [vmem:[#allocation2 + $0xe8] sm:$0xff] %v3209
        %3244 = vst [vmem:[#allocation2 + $0xf0] sm:$0xf] %v3147
        %3245 = vst [vmem:[#allocation2 + $0xf8] sm:$0xf] %v3212
        %v3246 = vld [vmem:[#allocation2] sm:$0xff]
        %v3247 = vld [vmem:[#allocation2 + $0x8] sm:$0xff]
        %v3248 = vld [vmem:[#allocation2 + $0x10] sm:$0xff]
        %v3249 = vld [vmem:[#allocation2 + $0x18] sm:$0xff]
        %v3250 = vld [vmem:[#allocation2 + $0x20] sm:$0xff]
        %v3251 = vld [vmem:[#allocation2 + $0x28] sm:$0xff]
        %v3252 = vld [vmem:[#allocation2 + $0x30] sm:$0xff]
        %v3253 = vld [vmem:[#allocation2 + $0x38] sm:$0xff]
        %v3254 = vld [vmem:[#allocation2 + $0x40] sm:$0xff]
        %v3255 = vld [vmem:[#allocation2 + $0x48] sm:$0xff]
        %v3256 = vld [vmem:[#allocation2 + $0x50] sm:$0xff]
        %v3257 = vld [vmem:[#allocation2 + $0x58] sm:$0xff]
        %v3258 = vld [vmem:[#allocation2 + $0x60] sm:$0xff]
        %v3259 = vld [vmem:[#allocation2 + $0x68] sm:$0xff]
        %v3260 = vld [vmem:[#allocation2 + $0x70] sm:$0xff]
        %v3261 = vld [vmem:[#allocation2 + $0x78] sm:$0xff]
        %v3262 = vld [vmem:[#allocation2 + $0x80] sm:$0xff]
        %v3263 = vld [vmem:[#allocation2 + $0x88] sm:$0xff]
        %v3264 = vld [vmem:[#allocation2 + $0x90] sm:$0xff]
        %v3265 = vld [vmem:[#allocation2 + $0x98] sm:$0xff]
        %v3266 = vld [vmem:[#allocation2 + $0xa0] sm:$0xff]
        %v3267 = vld [vmem:[#allocation2 + $0xa8] sm:$0xff]
        %v3268 = vld [vmem:[#allocation2 + $0xb0] sm:$0xff]
        %v3269 = vld [vmem:[#allocation2 + $0xb8] sm:$0xff]
        %v3270 = vld [vmem:[#allocation2 + $0xc0] sm:$0xff]
        %v3271 = vld [vmem:[#allocation2 + $0xc8] sm:$0xff]
        %v3272 = vld [vmem:[#allocation2 + $0xd0] sm:$0xff]
        %v3273 = vld [vmem:[#allocation2 + $0xd8] sm:$0xff]
        %v3274 = vld [vmem:[#allocation2 + $0xe0] sm:$0xff]
        %v3275 = vld [vmem:[#allocation2 + $0xe8] sm:$0xff]
        %v3276 = vld [vmem:[#allocation2 + $0xf0] sm:$0xf]
        %v3277 = vld [vmem:[#allocation2 + $0xf8] sm:$0xf]
        %v3278 = vld [vmem:[#allocation4 + $0x1] sm:$0xff]
        %v3279 = vld [vmem:[#allocation4 + $0x9] sm:$0xff]
        %v3280 = vld [vmem:[#allocation4 + $0x11] sm:$0xff]
        %v3281 = vld [vmem:[#allocation4 + $0x19] sm:$0xff]
        %v3282 = vld [vmem:[#allocation4 + $0x21] sm:$0xff]
        %v3283 = vld [vmem:[#allocation4 + $0x29] sm:$0xff]
        %v3284 = vld [vmem:[#allocation4 + $0x31] sm:$0xff]
        %v3285 = vld [vmem:[#allocation4 + $0x39] sm:$0xff]
        %v3286 = vld [vmem:[#allocation4 + $0x41] sm:$0xff]
        %v3287 = vld [vmem:[#allocation4 + $0x49] sm:$0xff]
        %v3288 = vld [vmem:[#allocation4 + $0x51] sm:$0xff]
        %v3289 = vld [vmem:[#allocation4 + $0x59] sm:$0xff]
        %v3290 = vld [vmem:[#allocation4 + $0x61] sm:$0xff]
        %v3291 = vld [vmem:[#allocation4 + $0x69] sm:$0xff]
        %v3292 = vld [vmem:[#allocation4 + $0x71] sm:$0xff]
        %v3293 = vld [vmem:[#allocation4 + $0x79] sm:$0xf]
        %s3294 = scalar_lea.vmem %s3, 256
        %v3295 = vld [vmem:[%s3294] sm:$0xff]
        %v3296 = vld [vmem:[%s3294 + $0x8] sm:$0xff]
        %v3297 = vld [vmem:[%s3294 + $0x10] sm:$0xff]
        %v3298 = vld [vmem:[%s3294 + $0x18] sm:$0xff]
        %v3299 = vld [vmem:[%s3294 + $0x20] sm:$0xff]
        %v3300 = vld [vmem:[%s3294 + $0x28] sm:$0xff]
        %v3301 = vld [vmem:[%s3294 + $0x30] sm:$0xff]
        %v3302 = vld [vmem:[%s3294 + $0x38] sm:$0xff]
        %v3303 = vld [vmem:[%s3294 + $0x40] sm:$0xff]
        %v3304 = vld [vmem:[%s3294 + $0x48] sm:$0xff]
        %v3305 = vld [vmem:[%s3294 + $0x50] sm:$0xff]
        %v3306 = vld [vmem:[%s3294 + $0x58] sm:$0xff]
        %v3307 = vld [vmem:[%s3294 + $0x60] sm:$0xff]
        %v3308 = vld [vmem:[%s3294 + $0x68] sm:$0xff]
        %v3309 = vld [vmem:[%s3294 + $0x70] sm:$0xff]
        %v3310 = vld [vmem:[%s3294 + $0x78] sm:$0xff]
        %v3311 = vld [vmem:[%s3294 + $0x80] sm:$0xff]
        %v3312 = vld [vmem:[%s3294 + $0x88] sm:$0xff]
        %v3313 = vld [vmem:[%s3294 + $0x90] sm:$0xff]
        %v3314 = vld [vmem:[%s3294 + $0x98] sm:$0xff]
        %v3315 = vld [vmem:[%s3294 + $0xa0] sm:$0xff]
        %v3316 = vld [vmem:[%s3294 + $0xa8] sm:$0xff]
        %v3317 = vld [vmem:[%s3294 + $0xb0] sm:$0xff]
        %v3318 = vld [vmem:[%s3294 + $0xb8] sm:$0xff]
        %v3319 = vld [vmem:[%s3294 + $0xc0] sm:$0xff]
        %v3320 = vld [vmem:[%s3294 + $0xc8] sm:$0xff]
        %v3321 = vld [vmem:[%s3294 + $0xd0] sm:$0xff]
        %v3322 = vld [vmem:[%s3294 + $0xd8] sm:$0xff]
        %v3323 = vld [vmem:[%s3294 + $0xe0] sm:$0xff]
        %v3324 = vld [vmem:[%s3294 + $0xe8] sm:$0xff]
        %v3325 = vld [vmem:[%s3294 + $0xf0] sm:$0xff]
        %v3326 = vld [vmem:[%s3294 + $0xf8] sm:$0xff]
        %3327 = vmatpush.msra.mxu0 %v3325
        %3328 = vmatpush.msra.mxu0 %v3323
        %3329 = vmatpush.msra.mxu0 %v3321
        %3330 = vmatpush.msra.mxu0 %v3319
        %3331 = vmatpush.msra.mxu0 %v3317
        %3332 = vmatpush.msra.mxu0 %v3315
        %3333 = vmatpush.msra.mxu0 %v3313
        %3334 = vmatpush.msra.mxu0 %v3311
        %3335 = vmatpush.msra.mxu0 %v3309
        %3336 = vmatpush.msra.mxu0 %v3307
        %3337 = vmatpush.msra.mxu0 %v3305
        %3338 = vmatpush.msra.mxu0 %v3303
        %3339 = vmatpush.msra.mxu0 %v3301
        %3340 = vmatpush.msra.mxu0 %v3299
        %3341 = vmatpush.msra.mxu0 %v3297
        %3342 = vmatpush.msra.mxu0 %v3295
        %3343 = vmatmul.f32.gmra.mxu0 %v3278
        %v3344 = vpop.f32.mrf.mxu0
        %v3345 = vadd.f32 0.0, %v3344
        %3346 = vmatmul.f32.gmra.mxu0 %v3279
        %v3347 = vpop.f32.mrf.mxu0
        %v3348 = vadd.f32 0.0, %v3347
        %3349 = vmatmul.f32.gmra.mxu0 %v3280
        %v3350 = vpop.f32.mrf.mxu0
        %v3351 = vadd.f32 0.0, %v3350
        %3352 = vmatmul.f32.gmra.mxu0 %v3281
        %v3353 = vpop.f32.mrf.mxu0
        %v3354 = vadd.f32 0.0, %v3353
        %3355 = vmatmul.f32.gmra.mxu0 %v3282
        %v3356 = vpop.f32.mrf.mxu0
        %v3357 = vadd.f32 0.0, %v3356
        %3358 = vmatmul.f32.gmra.mxu0 %v3283
        %v3359 = vpop.f32.mrf.mxu0
        %v3360 = vadd.f32 0.0, %v3359
        %3361 = vmatmul.f32.gmra.mxu0 %v3284
        %v3362 = vpop.f32.mrf.mxu0
        %v3363 = vadd.f32 0.0, %v3362
        %3364 = vmatmul.f32.gmra.mxu0 %v3285
        %v3365 = vpop.f32.mrf.mxu0
        %v3366 = vadd.f32 0.0, %v3365
        %3367 = vmatmul.f32.gmra.mxu0 %v3286
        %v3368 = vpop.f32.mrf.mxu0
        %v3369 = vadd.f32 0.0, %v3368
        %3370 = vmatmul.f32.gmra.mxu0 %v3287
        %v3371 = vpop.f32.mrf.mxu0
        %v3372 = vadd.f32 0.0, %v3371
        %3373 = vmatmul.f32.gmra.mxu0 %v3288
        %v3374 = vpop.f32.mrf.mxu0
        %v3375 = vadd.f32 0.0, %v3374
        %3376 = vmatmul.f32.gmra.mxu0 %v3289
        %v3377 = vpop.f32.mrf.mxu0
        %v3378 = vadd.f32 0.0, %v3377
        %3379 = vmatmul.f32.gmra.mxu0 %v3290
        %v3380 = vpop.f32.mrf.mxu0
        %v3381 = vadd.f32 0.0, %v3380
        %3382 = vmatmul.f32.gmra.mxu0 %v3291
        %v3383 = vpop.f32.mrf.mxu0
        %v3384 = vadd.f32 0.0, %v3383
        %3385 = vmatmul.f32.gmra.mxu0 %v3292
        %v3386 = vpop.f32.mrf.mxu0
        %v3387 = vadd.f32 0.0, %v3386
        %3388 = vmatmul.f32.gmra.mxu0 %v3293
        %v3389 = vpop.f32.mrf.mxu0
        %v3390 = vadd.f32 0.0, %v3389
        %3391 = vdwg.mxu0
        %3392 = vmatpush.msra.mxu0 %v3326
        %3393 = vmatpush.msra.mxu0 %v3324
        %3394 = vmatpush.msra.mxu0 %v3322
        %3395 = vmatpush.msra.mxu0 %v3320
        %3396 = vmatpush.msra.mxu0 %v3318
        %3397 = vmatpush.msra.mxu0 %v3316
        %3398 = vmatpush.msra.mxu0 %v3314
        %3399 = vmatpush.msra.mxu0 %v3312
        %3400 = vmatpush.msra.mxu0 %v3310
        %3401 = vmatpush.msra.mxu0 %v3308
        %3402 = vmatpush.msra.mxu0 %v3306
        %3403 = vmatpush.msra.mxu0 %v3304
        %3404 = vmatpush.msra.mxu0 %v3302
        %3405 = vmatpush.msra.mxu0 %v3300
        %3406 = vmatpush.msra.mxu0 %v3298
        %3407 = vmatpush.msra.mxu0 %v3296
        %3408 = vmatmul.f32.gmra.mxu0 %v3278
        %v3409 = vpop.f32.mrf.mxu0
        %v3410 = vadd.f32 0.0, %v3409
        %3411 = vmatmul.f32.gmra.mxu0 %v3279
        %v3412 = vpop.f32.mrf.mxu0
        %v3413 = vadd.f32 0.0, %v3412
        %3414 = vmatmul.f32.gmra.mxu0 %v3280
        %v3415 = vpop.f32.mrf.mxu0
        %v3416 = vadd.f32 0.0, %v3415
        %3417 = vmatmul.f32.gmra.mxu0 %v3281
        %v3418 = vpop.f32.mrf.mxu0
        %v3419 = vadd.f32 0.0, %v3418
        %3420 = vmatmul.f32.gmra.mxu0 %v3282
        %v3421 = vpop.f32.mrf.mxu0
        %v3422 = vadd.f32 0.0, %v3421
        %3423 = vmatmul.f32.gmra.mxu0 %v3283
        %v3424 = vpop.f32.mrf.mxu0
        %v3425 = vadd.f32 0.0, %v3424
        %3426 = vmatmul.f32.gmra.mxu0 %v3284
        %v3427 = vpop.f32.mrf.mxu0
        %v3428 = vadd.f32 0.0, %v3427
        %3429 = vmatmul.f32.gmra.mxu0 %v3285
        %v3430 = vpop.f32.mrf.mxu0
        %v3431 = vadd.f32 0.0, %v3430
        %3432 = vmatmul.f32.gmra.mxu0 %v3286
        %v3433 = vpop.f32.mrf.mxu0
        %v3434 = vadd.f32 0.0, %v3433
        %3435 = vmatmul.f32.gmra.mxu0 %v3287
        %v3436 = vpop.f32.mrf.mxu0
        %v3437 = vadd.f32 0.0, %v3436
        %3438 = vmatmul.f32.gmra.mxu0 %v3288
        %v3439 = vpop.f32.mrf.mxu0
        %v3440 = vadd.f32 0.0, %v3439
        %3441 = vmatmul.f32.gmra.mxu0 %v3289
        %v3442 = vpop.f32.mrf.mxu0
        %v3443 = vadd.f32 0.0, %v3442
        %3444 = vmatmul.f32.gmra.mxu0 %v3290
        %v3445 = vpop.f32.mrf.mxu0
        %v3446 = vadd.f32 0.0, %v3445
        %3447 = vmatmul.f32.gmra.mxu0 %v3291
        %v3448 = vpop.f32.mrf.mxu0
        %v3449 = vadd.f32 0.0, %v3448
        %3450 = vmatmul.f32.gmra.mxu0 %v3292
        %v3451 = vpop.f32.mrf.mxu0
        %v3452 = vadd.f32 0.0, %v3451
        %3453 = vmatmul.f32.gmra.mxu0 %v3293
        %v3454 = vpop.f32.mrf.mxu0
        %v3455 = vadd.f32 0.0, %v3454
        %3456 = vdwg.mxu0
        %v3457 = vadd.f32 %v3246, %v3345
        %v3458 = vadd.f32 %v3247, %v3410
        %v3459 = vadd.f32 %v3248, %v3348
        %v3460 = vadd.f32 %v3249, %v3413
        %v3461 = vadd.f32 %v3250, %v3351
        %v3462 = vadd.f32 %v3251, %v3416
        %v3463 = vadd.f32 %v3252, %v3354
        %v3464 = vadd.f32 %v3253, %v3419
        %v3465 = vadd.f32 %v3254, %v3357
        %v3466 = vadd.f32 %v3255, %v3422
        %v3467 = vadd.f32 %v3256, %v3360
        %v3468 = vadd.f32 %v3257, %v3425
        %v3469 = vadd.f32 %v3258, %v3363
        %v3470 = vadd.f32 %v3259, %v3428
        %v3471 = vadd.f32 %v3260, %v3366
        %v3472 = vadd.f32 %v3261, %v3431
        %v3473 = vadd.f32 %v3262, %v3369
        %v3474 = vadd.f32 %v3263, %v3434
        %v3475 = vadd.f32 %v3264, %v3372
        %v3476 = vadd.f32 %v3265, %v3437
        %v3477 = vadd.f32 %v3266, %v3375
        %v3478 = vadd.f32 %v3267, %v3440
        %v3479 = vadd.f32 %v3268, %v3378
        %v3480 = vadd.f32 %v3269, %v3443
        %v3481 = vadd.f32 %v3270, %v3381
        %v3482 = vadd.f32 %v3271, %v3446
        %v3483 = vadd.f32 %v3272, %v3384
        %v3484 = vadd.f32 %v3273, %v3449
        %v3485 = vadd.f32 %v3274, %v3387
        %v3486 = vadd.f32 %v3275, %v3452
        %v3487 = vadd.f32 %v3276, %v3390
        %v3488 = vadd.f32 %v3277, %v3455
        %3489 = vst [vmem:[#allocation2] sm:$0xff] %v3457
        %3490 = vst [vmem:[#allocation2 + $0x8] sm:$0xff] %v3458
        %3491 = vst [vmem:[#allocation2 + $0x10] sm:$0xff] %v3459
        %3492 = vst [vmem:[#allocation2 + $0x18] sm:$0xff] %v3460
        %3493 = vst [vmem:[#allocation2 + $0x20] sm:$0xff] %v3461
        %3494 = vst [vmem:[#allocation2 + $0x28] sm:$0xff] %v3462
        %3495 = vst [vmem:[#allocation2 + $0x30] sm:$0xff] %v3463
        %3496 = vst [vmem:[#allocation2 + $0x38] sm:$0xff] %v3464
        %3497 = vst [vmem:[#allocation2 + $0x40] sm:$0xff] %v3465
        %3498 = vst [vmem:[#allocation2 + $0x48] sm:$0xff] %v3466
        %3499 = vst [vmem:[#allocation2 + $0x50] sm:$0xff] %v3467
        %3500 = vst [vmem:[#allocation2 + $0x58] sm:$0xff] %v3468
        %3501 = vst [vmem:[#allocation2 + $0x60] sm:$0xff] %v3469
        %3502 = vst [vmem:[#allocation2 + $0x68] sm:$0xff] %v3470
        %3503 = vst [vmem:[#allocation2 + $0x70] sm:$0xff] %v3471
        %3504 = vst [vmem:[#allocation2 + $0x78] sm:$0xff] %v3472
        %3505 = vst [vmem:[#allocation2 + $0x80] sm:$0xff] %v3473
        %3506 = vst [vmem:[#allocation2 + $0x88] sm:$0xff] %v3474
        %3507 = vst [vmem:[#allocation2 + $0x90] sm:$0xff] %v3475
        %3508 = vst [vmem:[#allocation2 + $0x98] sm:$0xff] %v3476
        %3509 = vst [vmem:[#allocation2 + $0xa0] sm:$0xff] %v3477
        %3510 = vst [vmem:[#allocation2 + $0xa8] sm:$0xff] %v3478
        %3511 = vst [vmem:[#allocation2 + $0xb0] sm:$0xff] %v3479
        %3512 = vst [vmem:[#allocation2 + $0xb8] sm:$0xff] %v3480
        %3513 = vst [vmem:[#allocation2 + $0xc0] sm:$0xff] %v3481
        %3514 = vst [vmem:[#allocation2 + $0xc8] sm:$0xff] %v3482
        %3515 = vst [vmem:[#allocation2 + $0xd0] sm:$0xff] %v3483
        %3516 = vst [vmem:[#allocation2 + $0xd8] sm:$0xff] %v3484
        %3517 = vst [vmem:[#allocation2 + $0xe0] sm:$0xff] %v3485
        %3518 = vst [vmem:[#allocation2 + $0xe8] sm:$0xff] %v3486
        %3519 = vst [vmem:[#allocation2 + $0xf0] sm:$0xf] %v3487
        %3520 = vst [vmem:[#allocation2 + $0xf8] sm:$0xf] %v3488
        %v3521 = vld [vmem:[#allocation2] sm:$0xff]
        %v3522 = vld [vmem:[#allocation2 + $0x8] sm:$0xff]
        %v3523 = vld [vmem:[#allocation2 + $0x10] sm:$0xff]
        %v3524 = vld [vmem:[#allocation2 + $0x18] sm:$0xff]
        %v3525 = vld [vmem:[#allocation2 + $0x20] sm:$0xff]
        %v3526 = vld [vmem:[#allocation2 + $0x28] sm:$0xff]
        %v3527 = vld [vmem:[#allocation2 + $0x30] sm:$0xff]
        %v3528 = vld [vmem:[#allocation2 + $0x38] sm:$0xff]
        %v3529 = vld [vmem:[#allocation2 + $0x40] sm:$0xff]
        %v3530 = vld [vmem:[#allocation2 + $0x48] sm:$0xff]
        %v3531 = vld [vmem:[#allocation2 + $0x50] sm:$0xff]
        %v3532 = vld [vmem:[#allocation2 + $0x58] sm:$0xff]
        %v3533 = vld [vmem:[#allocation2 + $0x60] sm:$0xff]
        %v3534 = vld [vmem:[#allocation2 + $0x68] sm:$0xff]
        %v3535 = vld [vmem:[#allocation2 + $0x70] sm:$0xff]
        %v3536 = vld [vmem:[#allocation2 + $0x78] sm:$0xff]
        %v3537 = vld [vmem:[#allocation2 + $0x80] sm:$0xff]
        %v3538 = vld [vmem:[#allocation2 + $0x88] sm:$0xff]
        %v3539 = vld [vmem:[#allocation2 + $0x90] sm:$0xff]
        %v3540 = vld [vmem:[#allocation2 + $0x98] sm:$0xff]
        %v3541 = vld [vmem:[#allocation2 + $0xa0] sm:$0xff]
        %v3542 = vld [vmem:[#allocation2 + $0xa8] sm:$0xff]
        %v3543 = vld [vmem:[#allocation2 + $0xb0] sm:$0xff]
        %v3544 = vld [vmem:[#allocation2 + $0xb8] sm:$0xff]
        %v3545 = vld [vmem:[#allocation2 + $0xc0] sm:$0xff]
        %v3546 = vld [vmem:[#allocation2 + $0xc8] sm:$0xff]
        %v3547 = vld [vmem:[#allocation2 + $0xd0] sm:$0xff]
        %v3548 = vld [vmem:[#allocation2 + $0xd8] sm:$0xff]
        %v3549 = vld [vmem:[#allocation2 + $0xe0] sm:$0xff]
        %v3550 = vld [vmem:[#allocation2 + $0xe8] sm:$0xff]
        %v3551 = vld [vmem:[#allocation2 + $0xf0] sm:$0xf]
        %v3552 = vld [vmem:[#allocation2 + $0xf8] sm:$0xf]
        %v3553 = vld [vmem:[#allocation4 + $0x2] sm:$0xff]
        %v3554 = vld [vmem:[#allocation4 + $0xa] sm:$0xff]
        %v3555 = vld [vmem:[#allocation4 + $0x12] sm:$0xff]
        %v3556 = vld [vmem:[#allocation4 + $0x1a] sm:$0xff]
        %v3557 = vld [vmem:[#allocation4 + $0x22] sm:$0xff]
        %v3558 = vld [vmem:[#allocation4 + $0x2a] sm:$0xff]
        %v3559 = vld [vmem:[#allocation4 + $0x32] sm:$0xff]
        %v3560 = vld [vmem:[#allocation4 + $0x3a] sm:$0xff]
        %v3561 = vld [vmem:[#allocation4 + $0x42] sm:$0xff]
        %v3562 = vld [vmem:[#allocation4 + $0x4a] sm:$0xff]
        %v3563 = vld [vmem:[#allocation4 + $0x52] sm:$0xff]
        %v3564 = vld [vmem:[#allocation4 + $0x5a] sm:$0xff]
        %v3565 = vld [vmem:[#allocation4 + $0x62] sm:$0xff]
        %v3566 = vld [vmem:[#allocation4 + $0x6a] sm:$0xff]
        %v3567 = vld [vmem:[#allocation4 + $0x72] sm:$0xff]
        %v3568 = vld [vmem:[#allocation4 + $0x7a] sm:$0xf]
        %s3569 = scalar_lea.vmem %s3, 512
        %v3570 = vld [vmem:[%s3569] sm:$0xff]
        %v3571 = vld [vmem:[%s3569 + $0x8] sm:$0xff]
        %v3572 = vld [vmem:[%s3569 + $0x10] sm:$0xff]
        %v3573 = vld [vmem:[%s3569 + $0x18] sm:$0xff]
        %v3574 = vld [vmem:[%s3569 + $0x20] sm:$0xff]
        %v3575 = vld [vmem:[%s3569 + $0x28] sm:$0xff]
        %v3576 = vld [vmem:[%s3569 + $0x30] sm:$0xff]
        %v3577 = vld [vmem:[%s3569 + $0x38] sm:$0xff]
        %v3578 = vld [vmem:[%s3569 + $0x40] sm:$0xff]
        %v3579 = vld [vmem:[%s3569 + $0x48] sm:$0xff]
        %v3580 = vld [vmem:[%s3569 + $0x50] sm:$0xff]
        %v3581 = vld [vmem:[%s3569 + $0x58] sm:$0xff]
        %v3582 = vld [vmem:[%s3569 + $0x60] sm:$0xff]
        %v3583 = vld [vmem:[%s3569 + $0x68] sm:$0xff]
        %v3584 = vld [vmem:[%s3569 + $0x70] sm:$0xff]
        %v3585 = vld [vmem:[%s3569 + $0x78] sm:$0xff]
        %v3586 = vld [vmem:[%s3569 + $0x80] sm:$0xff]
        %v3587 = vld [vmem:[%s3569 + $0x88] sm:$0xff]
        %v3588 = vld [vmem:[%s3569 + $0x90] sm:$0xff]
        %v3589 = vld [vmem:[%s3569 + $0x98] sm:$0xff]
        %v3590 = vld [vmem:[%s3569 + $0xa0] sm:$0xff]
        %v3591 = vld [vmem:[%s3569 + $0xa8] sm:$0xff]
        %v3592 = vld [vmem:[%s3569 + $0xb0] sm:$0xff]
        %v3593 = vld [vmem:[%s3569 + $0xb8] sm:$0xff]
        %v3594 = vld [vmem:[%s3569 + $0xc0] sm:$0xff]
        %v3595 = vld [vmem:[%s3569 + $0xc8] sm:$0xff]
        %v3596 = vld [vmem:[%s3569 + $0xd0] sm:$0xff]
        %v3597 = vld [vmem:[%s3569 + $0xd8] sm:$0xff]
        %v3598 = vld [vmem:[%s3569 + $0xe0] sm:$0xff]
        %v3599 = vld [vmem:[%s3569 + $0xe8] sm:$0xff]
        %v3600 = vld [vmem:[%s3569 + $0xf0] sm:$0xff]
        %v3601 = vld [vmem:[%s3569 + $0xf8] sm:$0xff]
        %3602 = vmatpush.msra.mxu0 %v3600
        %3603 = vmatpush.msra.mxu0 %v3598
        %3604 = vmatpush.msra.mxu0 %v3596
        %3605 = vmatpush.msra.mxu0 %v3594
        %3606 = vmatpush.msra.mxu0 %v3592
        %3607 = vmatpush.msra.mxu0 %v3590
        %3608 = vmatpush.msra.mxu0 %v3588
        %3609 = vmatpush.msra.mxu0 %v3586
        %3610 = vmatpush.msra.mxu0 %v3584
        %3611 = vmatpush.msra.mxu0 %v3582
        %3612 = vmatpush.msra.mxu0 %v3580
        %3613 = vmatpush.msra.mxu0 %v3578
        %3614 = vmatpush.msra.mxu0 %v3576
        %3615 = vmatpush.msra.mxu0 %v3574
        %3616 = vmatpush.msra.mxu0 %v3572
        %3617 = vmatpush.msra.mxu0 %v3570
        %3618 = vmatmul.f32.gmra.mxu0 %v3553
        %v3619 = vpop.f32.mrf.mxu0
        %v3620 = vadd.f32 0.0, %v3619
        %3621 = vmatmul.f32.gmra.mxu0 %v3554
        %v3622 = vpop.f32.mrf.mxu0
        %v3623 = vadd.f32 0.0, %v3622
        %3624 = vmatmul.f32.gmra.mxu0 %v3555
        %v3625 = vpop.f32.mrf.mxu0
        %v3626 = vadd.f32 0.0, %v3625
        %3627 = vmatmul.f32.gmra.mxu0 %v3556
        %v3628 = vpop.f32.mrf.mxu0
        %v3629 = vadd.f32 0.0, %v3628
        %3630 = vmatmul.f32.gmra.mxu0 %v3557
        %v3631 = vpop.f32.mrf.mxu0
        %v3632 = vadd.f32 0.0, %v3631
        %3633 = vmatmul.f32.gmra.mxu0 %v3558
        %v3634 = vpop.f32.mrf.mxu0
        %v3635 = vadd.f32 0.0, %v3634
        %3636 = vmatmul.f32.gmra.mxu0 %v3559
        %v3637 = vpop.f32.mrf.mxu0
        %v3638 = vadd.f32 0.0, %v3637
        %3639 = vmatmul.f32.gmra.mxu0 %v3560
        %v3640 = vpop.f32.mrf.mxu0
        %v3641 = vadd.f32 0.0, %v3640
        %3642 = vmatmul.f32.gmra.mxu0 %v3561
        %v3643 = vpop.f32.mrf.mxu0
        %v3644 = vadd.f32 0.0, %v3643
        %3645 = vmatmul.f32.gmra.mxu0 %v3562
        %v3646 = vpop.f32.mrf.mxu0
        %v3647 = vadd.f32 0.0, %v3646
        %3648 = vmatmul.f32.gmra.mxu0 %v3563
        %v3649 = vpop.f32.mrf.mxu0
        %v3650 = vadd.f32 0.0, %v3649
        %3651 = vmatmul.f32.gmra.mxu0 %v3564
        %v3652 = vpop.f32.mrf.mxu0
        %v3653 = vadd.f32 0.0, %v3652
        %3654 = vmatmul.f32.gmra.mxu0 %v3565
        %v3655 = vpop.f32.mrf.mxu0
        %v3656 = vadd.f32 0.0, %v3655
        %3657 = vmatmul.f32.gmra.mxu0 %v3566
        %v3658 = vpop.f32.mrf.mxu0
        %v3659 = vadd.f32 0.0, %v3658
        %3660 = vmatmul.f32.gmra.mxu0 %v3567
        %v3661 = vpop.f32.mrf.mxu0
        %v3662 = vadd.f32 0.0, %v3661
        %3663 = vmatmul.f32.gmra.mxu0 %v3568
        %v3664 = vpop.f32.mrf.mxu0
        %v3665 = vadd.f32 0.0, %v3664
        %3666 = vdwg.mxu0
        %3667 = vmatpush.msra.mxu0 %v3601
        %3668 = vmatpush.msra.mxu0 %v3599
        %3669 = vmatpush.msra.mxu0 %v3597
        %3670 = vmatpush.msra.mxu0 %v3595
        %3671 = vmatpush.msra.mxu0 %v3593
        %3672 = vmatpush.msra.mxu0 %v3591
        %3673 = vmatpush.msra.mxu0 %v3589
        %3674 = vmatpush.msra.mxu0 %v3587
        %3675 = vmatpush.msra.mxu0 %v3585
        %3676 = vmatpush.msra.mxu0 %v3583
        %3677 = vmatpush.msra.mxu0 %v3581
        %3678 = vmatpush.msra.mxu0 %v3579
        %3679 = vmatpush.msra.mxu0 %v3577
        %3680 = vmatpush.msra.mxu0 %v3575
        %3681 = vmatpush.msra.mxu0 %v3573
        %3682 = vmatpush.msra.mxu0 %v3571
        %3683 = vmatmul.f32.gmra.mxu0 %v3553
        %v3684 = vpop.f32.mrf.mxu0
        %v3685 = vadd.f32 0.0, %v3684
        %3686 = vmatmul.f32.gmra.mxu0 %v3554
        %v3687 = vpop.f32.mrf.mxu0
        %v3688 = vadd.f32 0.0, %v3687
        %3689 = vmatmul.f32.gmra.mxu0 %v3555
        %v3690 = vpop.f32.mrf.mxu0
        %v3691 = vadd.f32 0.0, %v3690
        %3692 = vmatmul.f32.gmra.mxu0 %v3556
        %v3693 = vpop.f32.mrf.mxu0
        %v3694 = vadd.f32 0.0, %v3693
        %3695 = vmatmul.f32.gmra.mxu0 %v3557
        %v3696 = vpop.f32.mrf.mxu0
        %v3697 = vadd.f32 0.0, %v3696
        %3698 = vmatmul.f32.gmra.mxu0 %v3558
        %v3699 = vpop.f32.mrf.mxu0
        %v3700 = vadd.f32 0.0, %v3699
        %3701 = vmatmul.f32.gmra.mxu0 %v3559
        %v3702 = vpop.f32.mrf.mxu0
        %v3703 = vadd.f32 0.0, %v3702
        %3704 = vmatmul.f32.gmra.mxu0 %v3560
        %v3705 = vpop.f32.mrf.mxu0
        %v3706 = vadd.f32 0.0, %v3705
        %3707 = vmatmul.f32.gmra.mxu0 %v3561
        %v3708 = vpop.f32.mrf.mxu0
        %v3709 = vadd.f32 0.0, %v3708
        %3710 = vmatmul.f32.gmra.mxu0 %v3562
        %v3711 = vpop.f32.mrf.mxu0
        %v3712 = vadd.f32 0.0, %v3711
        %3713 = vmatmul.f32.gmra.mxu0 %v3563
        %v3714 = vpop.f32.mrf.mxu0
        %v3715 = vadd.f32 0.0, %v3714
        %3716 = vmatmul.f32.gmra.mxu0 %v3564
        %v3717 = vpop.f32.mrf.mxu0
        %v3718 = vadd.f32 0.0, %v3717
        %3719 = vmatmul.f32.gmra.mxu0 %v3565
        %v3720 = vpop.f32.mrf.mxu0
        %v3721 = vadd.f32 0.0, %v3720
        %3722 = vmatmul.f32.gmra.mxu0 %v3566
        %v3723 = vpop.f32.mrf.mxu0
        %v3724 = vadd.f32 0.0, %v3723
        %3725 = vmatmul.f32.gmra.mxu0 %v3567
        %v3726 = vpop.f32.mrf.mxu0
        %v3727 = vadd.f32 0.0, %v3726
        %3728 = vmatmul.f32.gmra.mxu0 %v3568
        %v3729 = vpop.f32.mrf.mxu0
        %v3730 = vadd.f32 0.0, %v3729
        %3731 = vdwg.mxu0
        %v3732 = vadd.f32 %v3521, %v3620
        %v3733 = vadd.f32 %v3522, %v3685
        %v3734 = vadd.f32 %v3523, %v3623
        %v3735 = vadd.f32 %v3524, %v3688
        %v3736 = vadd.f32 %v3525, %v3626
        %v3737 = vadd.f32 %v3526, %v3691
        %v3738 = vadd.f32 %v3527, %v3629
        %v3739 = vadd.f32 %v3528, %v3694
        %v3740 = vadd.f32 %v3529, %v3632
        %v3741 = vadd.f32 %v3530, %v3697
        %v3742 = vadd.f32 %v3531, %v3635
        %v3743 = vadd.f32 %v3532, %v3700
        %v3744 = vadd.f32 %v3533, %v3638
        %v3745 = vadd.f32 %v3534, %v3703
        %v3746 = vadd.f32 %v3535, %v3641
        %v3747 = vadd.f32 %v3536, %v3706
        %v3748 = vadd.f32 %v3537, %v3644
        %v3749 = vadd.f32 %v3538, %v3709
        %v3750 = vadd.f32 %v3539, %v3647
        %v3751 = vadd.f32 %v3540, %v3712
        %v3752 = vadd.f32 %v3541, %v3650
        %v3753 = vadd.f32 %v3542, %v3715
        %v3754 = vadd.f32 %v3543, %v3653
        %v3755 = vadd.f32 %v3544, %v3718
        %v3756 = vadd.f32 %v3545, %v3656
        %v3757 = vadd.f32 %v3546, %v3721
        %v3758 = vadd.f32 %v3547, %v3659
        %v3759 = vadd.f32 %v3548, %v3724
        %v3760 = vadd.f32 %v3549, %v3662
        %v3761 = vadd.f32 %v3550, %v3727
        %v3762 = vadd.f32 %v3551, %v3665
        %v3763 = vadd.f32 %v3552, %v3730
        %3764 = vst [vmem:[#allocation2] sm:$0xff] %v3732
        %3765 = vst [vmem:[#allocation2 + $0x8] sm:$0xff] %v3733
        %3766 = vst [vmem:[#allocation2 + $0x10] sm:$0xff] %v3734
        %3767 = vst [vmem:[#allocation2 + $0x18] sm:$0xff] %v3735
        %3768 = vst [vmem:[#allocation2 + $0x20] sm:$0xff] %v3736
        %3769 = vst [vmem:[#allocation2 + $0x28] sm:$0xff] %v3737
        %3770 = vst [vmem:[#allocation2 + $0x30] sm:$0xff] %v3738
        %3771 = vst [vmem:[#allocation2 + $0x38] sm:$0xff] %v3739
        %3772 = vst [vmem:[#allocation2 + $0x40] sm:$0xff] %v3740
        %3773 = vst [vmem:[#allocation2 + $0x48] sm:$0xff] %v3741
        %3774 = vst [vmem:[#allocation2 + $0x50] sm:$0xff] %v3742
        %3775 = vst [vmem:[#allocation2 + $0x58] sm:$0xff] %v3743
        %3776 = vst [vmem:[#allocation2 + $0x60] sm:$0xff] %v3744
        %3777 = vst [vmem:[#allocation2 + $0x68] sm:$0xff] %v3745
        %3778 = vst [vmem:[#allocation2 + $0x70] sm:$0xff] %v3746
        %3779 = vst [vmem:[#allocation2 + $0x78] sm:$0xff] %v3747
        %3780 = vst [vmem:[#allocation2 + $0x80] sm:$0xff] %v3748
        %3781 = vst [vmem:[#allocation2 + $0x88] sm:$0xff] %v3749
        %3782 = vst [vmem:[#allocation2 + $0x90] sm:$0xff] %v3750
        %3783 = vst [vmem:[#allocation2 + $0x98] sm:$0xff] %v3751
        %3784 = vst [vmem:[#allocation2 + $0xa0] sm:$0xff] %v3752
        %3785 = vst [vmem:[#allocation2 + $0xa8] sm:$0xff] %v3753
        %3786 = vst [vmem:[#allocation2 + $0xb0] sm:$0xff] %v3754
        %3787 = vst [vmem:[#allocation2 + $0xb8] sm:$0xff] %v3755
        %3788 = vst [vmem:[#allocation2 + $0xc0] sm:$0xff] %v3756
        %3789 = vst [vmem:[#allocation2 + $0xc8] sm:$0xff] %v3757
        %3790 = vst [vmem:[#allocation2 + $0xd0] sm:$0xff] %v3758
        %3791 = vst [vmem:[#allocation2 + $0xd8] sm:$0xff] %v3759
        %3792 = vst [vmem:[#allocation2 + $0xe0] sm:$0xff] %v3760
        %3793 = vst [vmem:[#allocation2 + $0xe8] sm:$0xff] %v3761
        %3794 = vst [vmem:[#allocation2 + $0xf0] sm:$0xf] %v3762
        %3795 = vst [vmem:[#allocation2 + $0xf8] sm:$0xf] %v3763
        %v3796 = vld [vmem:[#allocation2] sm:$0xff]
        %v3797 = vld [vmem:[#allocation2 + $0x8] sm:$0xff]
        %v3798 = vld [vmem:[#allocation2 + $0x10] sm:$0xff]
        %v3799 = vld [vmem:[#allocation2 + $0x18] sm:$0xff]
        %v3800 = vld [vmem:[#allocation2 + $0x20] sm:$0xff]
        %v3801 = vld [vmem:[#allocation2 + $0x28] sm:$0xff]
        %v3802 = vld [vmem:[#allocation2 + $0x30] sm:$0xff]
        %v3803 = vld [vmem:[#allocation2 + $0x38] sm:$0xff]
        %v3804 = vld [vmem:[#allocation2 + $0x40] sm:$0xff]
        %v3805 = vld [vmem:[#allocation2 + $0x48] sm:$0xff]
        %v3806 = vld [vmem:[#allocation2 + $0x50] sm:$0xff]
        %v3807 = vld [vmem:[#allocation2 + $0x58] sm:$0xff]
        %v3808 = vld [vmem:[#allocation2 + $0x60] sm:$0xff]
        %v3809 = vld [vmem:[#allocation2 + $0x68] sm:$0xff]
        %v3810 = vld [vmem:[#allocation2 + $0x70] sm:$0xff]
        %v3811 = vld [vmem:[#allocation2 + $0x78] sm:$0xff]
        %v3812 = vld [vmem:[#allocation2 + $0x80] sm:$0xff]
        %v3813 = vld [vmem:[#allocation2 + $0x88] sm:$0xff]
        %v3814 = vld [vmem:[#allocation2 + $0x90] sm:$0xff]
        %v3815 = vld [vmem:[#allocation2 + $0x98] sm:$0xff]
        %v3816 = vld [vmem:[#allocation2 + $0xa0] sm:$0xff]
        %v3817 = vld [vmem:[#allocation2 + $0xa8] sm:$0xff]
        %v3818 = vld [vmem:[#allocation2 + $0xb0] sm:$0xff]
        %v3819 = vld [vmem:[#allocation2 + $0xb8] sm:$0xff]
        %v3820 = vld [vmem:[#allocation2 + $0xc0] sm:$0xff]
        %v3821 = vld [vmem:[#allocation2 + $0xc8] sm:$0xff]
        %v3822 = vld [vmem:[#allocation2 + $0xd0] sm:$0xff]
        %v3823 = vld [vmem:[#allocation2 + $0xd8] sm:$0xff]
        %v3824 = vld [vmem:[#allocation2 + $0xe0] sm:$0xff]
        %v3825 = vld [vmem:[#allocation2 + $0xe8] sm:$0xff]
        %v3826 = vld [vmem:[#allocation2 + $0xf0] sm:$0xf]
        %v3827 = vld [vmem:[#allocation2 + $0xf8] sm:$0xf]
        %v3828 = vld [vmem:[#allocation4 + $0x3] sm:$0xff]
        %v3829 = vld [vmem:[#allocation4 + $0xb] sm:$0xff]
        %v3830 = vld [vmem:[#allocation4 + $0x13] sm:$0xff]
        %v3831 = vld [vmem:[#allocation4 + $0x1b] sm:$0xff]
        %v3832 = vld [vmem:[#allocation4 + $0x23] sm:$0xff]
        %v3833 = vld [vmem:[#allocation4 + $0x2b] sm:$0xff]
        %v3834 = vld [vmem:[#allocation4 + $0x33] sm:$0xff]
        %v3835 = vld [vmem:[#allocation4 + $0x3b] sm:$0xff]
        %v3836 = vld [vmem:[#allocation4 + $0x43] sm:$0xff]
        %v3837 = vld [vmem:[#allocation4 + $0x4b] sm:$0xff]
        %v3838 = vld [vmem:[#allocation4 + $0x53] sm:$0xff]
        %v3839 = vld [vmem:[#allocation4 + $0x5b] sm:$0xff]
        %v3840 = vld [vmem:[#allocation4 + $0x63] sm:$0xff]
        %v3841 = vld [vmem:[#allocation4 + $0x6b] sm:$0xff]
        %v3842 = vld [vmem:[#allocation4 + $0x73] sm:$0xff]
        %v3843 = vld [vmem:[#allocation4 + $0x7b] sm:$0xf]
        %s3844 = scalar_lea.vmem %s3, 768
        %v3845 = vld [vmem:[%s3844] sm:$0xff]
        %v3846 = vld [vmem:[%s3844 + $0x8] sm:$0xff]
        %v3847 = vld [vmem:[%s3844 + $0x10] sm:$0xff]
        %v3848 = vld [vmem:[%s3844 + $0x18] sm:$0xff]
        %v3849 = vld [vmem:[%s3844 + $0x20] sm:$0xff]
        %v3850 = vld [vmem:[%s3844 + $0x28] sm:$0xff]
        %v3851 = vld [vmem:[%s3844 + $0x30] sm:$0xff]
        %v3852 = vld [vmem:[%s3844 + $0x38] sm:$0xff]
        %v3853 = vld [vmem:[%s3844 + $0x40] sm:$0xff]
        %v3854 = vld [vmem:[%s3844 + $0x48] sm:$0xff]
        %v3855 = vld [vmem:[%s3844 + $0x50] sm:$0xff]
        %v3856 = vld [vmem:[%s3844 + $0x58] sm:$0xff]
        %v3857 = vld [vmem:[%s3844 + $0x60] sm:$0xff]
        %v3858 = vld [vmem:[%s3844 + $0x68] sm:$0xff]
        %v3859 = vld [vmem:[%s3844 + $0x70] sm:$0xff]
        %v3860 = vld [vmem:[%s3844 + $0x78] sm:$0xff]
        %v3861 = vld [vmem:[%s3844 + $0x80] sm:$0xff]
        %v3862 = vld [vmem:[%s3844 + $0x88] sm:$0xff]
        %v3863 = vld [vmem:[%s3844 + $0x90] sm:$0xff]
        %v3864 = vld [vmem:[%s3844 + $0x98] sm:$0xff]
        %v3865 = vld [vmem:[%s3844 + $0xa0] sm:$0xff]
        %v3866 = vld [vmem:[%s3844 + $0xa8] sm:$0xff]
        %v3867 = vld [vmem:[%s3844 + $0xb0] sm:$0xff]
        %v3868 = vld [vmem:[%s3844 + $0xb8] sm:$0xff]
        %v3869 = vld [vmem:[%s3844 + $0xc0] sm:$0xff]
        %v3870 = vld [vmem:[%s3844 + $0xc8] sm:$0xff]
        %v3871 = vld [vmem:[%s3844 + $0xd0] sm:$0xff]
        %v3872 = vld [vmem:[%s3844 + $0xd8] sm:$0xff]
        %v3873 = vld [vmem:[%s3844 + $0xe0] sm:$0xff]
        %v3874 = vld [vmem:[%s3844 + $0xe8] sm:$0xff]
        %v3875 = vld [vmem:[%s3844 + $0xf0] sm:$0xff]
        %v3876 = vld [vmem:[%s3844 + $0xf8] sm:$0xff]
        %3877 = vmatpush.msra.mxu0 %v3875
        %3878 = vmatpush.msra.mxu0 %v3873
        %3879 = vmatpush.msra.mxu0 %v3871
        %3880 = vmatpush.msra.mxu0 %v3869
        %3881 = vmatpush.msra.mxu0 %v3867
        %3882 = vmatpush.msra.mxu0 %v3865
        %3883 = vmatpush.msra.mxu0 %v3863
        %3884 = vmatpush.msra.mxu0 %v3861
        %3885 = vmatpush.msra.mxu0 %v3859
        %3886 = vmatpush.msra.mxu0 %v3857
        %3887 = vmatpush.msra.mxu0 %v3855
        %3888 = vmatpush.msra.mxu0 %v3853
        %3889 = vmatpush.msra.mxu0 %v3851
        %3890 = vmatpush.msra.mxu0 %v3849
        %3891 = vmatpush.msra.mxu0 %v3847
        %3892 = vmatpush.msra.mxu0 %v3845
        %3893 = vmatmul.f32.gmra.mxu0 %v3828
        %v3894 = vpop.f32.mrf.mxu0
        %v3895 = vadd.f32 0.0, %v3894
        %3896 = vmatmul.f32.gmra.mxu0 %v3829
        %v3897 = vpop.f32.mrf.mxu0
        %v3898 = vadd.f32 0.0, %v3897
        %3899 = vmatmul.f32.gmra.mxu0 %v3830
        %v3900 = vpop.f32.mrf.mxu0
        %v3901 = vadd.f32 0.0, %v3900
        %3902 = vmatmul.f32.gmra.mxu0 %v3831
        %v3903 = vpop.f32.mrf.mxu0
        %v3904 = vadd.f32 0.0, %v3903
        %3905 = vmatmul.f32.gmra.mxu0 %v3832
        %v3906 = vpop.f32.mrf.mxu0
        %v3907 = vadd.f32 0.0, %v3906
        %3908 = vmatmul.f32.gmra.mxu0 %v3833
        %v3909 = vpop.f32.mrf.mxu0
        %v3910 = vadd.f32 0.0, %v3909
        %3911 = vmatmul.f32.gmra.mxu0 %v3834
        %v3912 = vpop.f32.mrf.mxu0
        %v3913 = vadd.f32 0.0, %v3912
        %3914 = vmatmul.f32.gmra.mxu0 %v3835
        %v3915 = vpop.f32.mrf.mxu0
        %v3916 = vadd.f32 0.0, %v3915
        %3917 = vmatmul.f32.gmra.mxu0 %v3836
        %v3918 = vpop.f32.mrf.mxu0
        %v3919 = vadd.f32 0.0, %v3918
        %3920 = vmatmul.f32.gmra.mxu0 %v3837
        %v3921 = vpop.f32.mrf.mxu0
        %v3922 = vadd.f32 0.0, %v3921
        %3923 = vmatmul.f32.gmra.mxu0 %v3838
        %v3924 = vpop.f32.mrf.mxu0
        %v3925 = vadd.f32 0.0, %v3924
        %3926 = vmatmul.f32.gmra.mxu0 %v3839
        %v3927 = vpop.f32.mrf.mxu0
        %v3928 = vadd.f32 0.0, %v3927
        %3929 = vmatmul.f32.gmra.mxu0 %v3840
        %v3930 = vpop.f32.mrf.mxu0
        %v3931 = vadd.f32 0.0, %v3930
        %3932 = vmatmul.f32.gmra.mxu0 %v3841
        %v3933 = vpop.f32.mrf.mxu0
        %v3934 = vadd.f32 0.0, %v3933
        %3935 = vmatmul.f32.gmra.mxu0 %v3842
        %v3936 = vpop.f32.mrf.mxu0
        %v3937 = vadd.f32 0.0, %v3936
        %3938 = vmatmul.f32.gmra.mxu0 %v3843
        %v3939 = vpop.f32.mrf.mxu0
        %v3940 = vadd.f32 0.0, %v3939
        %3941 = vdwg.mxu0
        %3942 = vmatpush.msra.mxu0 %v3876
        %3943 = vmatpush.msra.mxu0 %v3874
        %3944 = vmatpush.msra.mxu0 %v3872
        %3945 = vmatpush.msra.mxu0 %v3870
        %3946 = vmatpush.msra.mxu0 %v3868
        %3947 = vmatpush.msra.mxu0 %v3866
        %3948 = vmatpush.msra.mxu0 %v3864
        %3949 = vmatpush.msra.mxu0 %v3862
        %3950 = vmatpush.msra.mxu0 %v3860
        %3951 = vmatpush.msra.mxu0 %v3858
        %3952 = vmatpush.msra.mxu0 %v3856
        %3953 = vmatpush.msra.mxu0 %v3854
        %3954 = vmatpush.msra.mxu0 %v3852
        %3955 = vmatpush.msra.mxu0 %v3850
        %3956 = vmatpush.msra.mxu0 %v3848
        %3957 = vmatpush.msra.mxu0 %v3846
        %3958 = vmatmul.f32.gmra.mxu0 %v3828
        %v3959 = vpop.f32.mrf.mxu0
        %v3960 = vadd.f32 0.0, %v3959
        %3961 = vmatmul.f32.gmra.mxu0 %v3829
        %v3962 = vpop.f32.mrf.mxu0
        %v3963 = vadd.f32 0.0, %v3962
        %3964 = vmatmul.f32.gmra.mxu0 %v3830
        %v3965 = vpop.f32.mrf.mxu0
        %v3966 = vadd.f32 0.0, %v3965
        %3967 = vmatmul.f32.gmra.mxu0 %v3831
        %v3968 = vpop.f32.mrf.mxu0
        %v3969 = vadd.f32 0.0, %v3968
        %3970 = vmatmul.f32.gmra.mxu0 %v3832
        %v3971 = vpop.f32.mrf.mxu0
        %v3972 = vadd.f32 0.0, %v3971
        %3973 = vmatmul.f32.gmra.mxu0 %v3833
        %v3974 = vpop.f32.mrf.mxu0
        %v3975 = vadd.f32 0.0, %v3974
        %3976 = vmatmul.f32.gmra.mxu0 %v3834
        %v3977 = vpop.f32.mrf.mxu0
        %v3978 = vadd.f32 0.0, %v3977
        %3979 = vmatmul.f32.gmra.mxu0 %v3835
        %v3980 = vpop.f32.mrf.mxu0
        %v3981 = vadd.f32 0.0, %v3980
        %3982 = vmatmul.f32.gmra.mxu0 %v3836
        %v3983 = vpop.f32.mrf.mxu0
        %v3984 = vadd.f32 0.0, %v3983
        %3985 = vmatmul.f32.gmra.mxu0 %v3837
        %v3986 = vpop.f32.mrf.mxu0
        %v3987 = vadd.f32 0.0, %v3986
        %3988 = vmatmul.f32.gmra.mxu0 %v3838
        %v3989 = vpop.f32.mrf.mxu0
        %v3990 = vadd.f32 0.0, %v3989
        %3991 = vmatmul.f32.gmra.mxu0 %v3839
        %v3992 = vpop.f32.mrf.mxu0
        %v3993 = vadd.f32 0.0, %v3992
        %3994 = vmatmul.f32.gmra.mxu0 %v3840
        %v3995 = vpop.f32.mrf.mxu0
        %v3996 = vadd.f32 0.0, %v3995
        %3997 = vmatmul.f32.gmra.mxu0 %v3841
        %v3998 = vpop.f32.mrf.mxu0
        %v3999 = vadd.f32 0.0, %v3998
        %4000 = vmatmul.f32.gmra.mxu0 %v3842
        %v4001 = vpop.f32.mrf.mxu0
        %v4002 = vadd.f32 0.0, %v4001
        %4003 = vmatmul.f32.gmra.mxu0 %v3843
        %v4004 = vpop.f32.mrf.mxu0
        %v4005 = vadd.f32 0.0, %v4004
        %4006 = vdwg.mxu0
        %v4007 = vadd.f32 %v3796, %v3895
        %v4008 = vadd.f32 %v3797, %v3960
        %v4009 = vadd.f32 %v3798, %v3898
        %v4010 = vadd.f32 %v3799, %v3963
        %v4011 = vadd.f32 %v3800, %v3901
        %v4012 = vadd.f32 %v3801, %v3966
        %v4013 = vadd.f32 %v3802, %v3904
        %v4014 = vadd.f32 %v3803, %v3969
        %v4015 = vadd.f32 %v3804, %v3907
        %v4016 = vadd.f32 %v3805, %v3972
        %v4017 = vadd.f32 %v3806, %v3910
        %v4018 = vadd.f32 %v3807, %v3975
        %v4019 = vadd.f32 %v3808, %v3913
        %v4020 = vadd.f32 %v3809, %v3978
        %v4021 = vadd.f32 %v3810, %v3916
        %v4022 = vadd.f32 %v3811, %v3981
        %v4023 = vadd.f32 %v3812, %v3919
        %v4024 = vadd.f32 %v3813, %v3984
        %v4025 = vadd.f32 %v3814, %v3922
        %v4026 = vadd.f32 %v3815, %v3987
        %v4027 = vadd.f32 %v3816, %v3925
        %v4028 = vadd.f32 %v3817, %v3990
        %v4029 = vadd.f32 %v3818, %v3928
        %v4030 = vadd.f32 %v3819, %v3993
        %v4031 = vadd.f32 %v3820, %v3931
        %v4032 = vadd.f32 %v3821, %v3996
        %v4033 = vadd.f32 %v3822, %v3934
        %v4034 = vadd.f32 %v3823, %v3999
        %v4035 = vadd.f32 %v3824, %v3937
        %v4036 = vadd.f32 %v3825, %v4002
        %v4037 = vadd.f32 %v3826, %v3940
        %v4038 = vadd.f32 %v3827, %v4005
        %4039 = vst [vmem:[#allocation2] sm:$0xff] %v4007
        %4040 = vst [vmem:[#allocation2 + $0x8] sm:$0xff] %v4008
        %4041 = vst [vmem:[#allocation2 + $0x10] sm:$0xff] %v4009
        %4042 = vst [vmem:[#allocation2 + $0x18] sm:$0xff] %v4010
        %4043 = vst [vmem:[#allocation2 + $0x20] sm:$0xff] %v4011
        %4044 = vst [vmem:[#allocation2 + $0x28] sm:$0xff] %v4012
        %4045 = vst [vmem:[#allocation2 + $0x30] sm:$0xff] %v4013
        %4046 = vst [vmem:[#allocation2 + $0x38] sm:$0xff] %v4014
        %4047 = vst [vmem:[#allocation2 + $0x40] sm:$0xff] %v4015
        %4048 = vst [vmem:[#allocation2 + $0x48] sm:$0xff] %v4016
        %4049 = vst [vmem:[#allocation2 + $0x50] sm:$0xff] %v4017
        %4050 = vst [vmem:[#allocation2 + $0x58] sm:$0xff] %v4018
        %4051 = vst [vmem:[#allocation2 + $0x60] sm:$0xff] %v4019
        %4052 = vst [vmem:[#allocation2 + $0x68] sm:$0xff] %v4020
        %4053 = vst [vmem:[#allocation2 + $0x70] sm:$0xff] %v4021
        %4054 = vst [vmem:[#allocation2 + $0x78] sm:$0xff] %v4022
        %4055 = vst [vmem:[#allocation2 + $0x80] sm:$0xff] %v4023
        %4056 = vst [vmem:[#allocation2 + $0x88] sm:$0xff] %v4024
        %4057 = vst [vmem:[#allocation2 + $0x90] sm:$0xff] %v4025
        %4058 = vst [vmem:[#allocation2 + $0x98] sm:$0xff] %v4026
        %4059 = vst [vmem:[#allocation2 + $0xa0] sm:$0xff] %v4027
        %4060 = vst [vmem:[#allocation2 + $0xa8] sm:$0xff] %v4028
        %4061 = vst [vmem:[#allocation2 + $0xb0] sm:$0xff] %v4029
        %4062 = vst [vmem:[#allocation2 + $0xb8] sm:$0xff] %v4030
        %4063 = vst [vmem:[#allocation2 + $0xc0] sm:$0xff] %v4031
        %4064 = vst [vmem:[#allocation2 + $0xc8] sm:$0xff] %v4032
        %4065 = vst [vmem:[#allocation2 + $0xd0] sm:$0xff] %v4033
        %4066 = vst [vmem:[#allocation2 + $0xd8] sm:$0xff] %v4034
        %4067 = vst [vmem:[#allocation2 + $0xe0] sm:$0xff] %v4035
        %4068 = vst [vmem:[#allocation2 + $0xe8] sm:$0xff] %v4036
        %4069 = vst [vmem:[#allocation2 + $0xf0] sm:$0xf] %v4037
        %4070 = vst [vmem:[#allocation2 + $0xf8] sm:$0xf] %v4038
        %v4071 = vld [vmem:[#allocation2] sm:$0xff]
        %v4072 = vld [vmem:[#allocation2 + $0x8] sm:$0xff]
        %v4073 = vld [vmem:[#allocation2 + $0x10] sm:$0xff]
        %v4074 = vld [vmem:[#allocation2 + $0x18] sm:$0xff]
        %v4075 = vld [vmem:[#allocation2 + $0x20] sm:$0xff]
        %v4076 = vld [vmem:[#allocation2 + $0x28] sm:$0xff]
        %v4077 = vld [vmem:[#allocation2 + $0x30] sm:$0xff]
        %v4078 = vld [vmem:[#allocation2 + $0x38] sm:$0xff]
        %v4079 = vld [vmem:[#allocation2 + $0x40] sm:$0xff]
        %v4080 = vld [vmem:[#allocation2 + $0x48] sm:$0xff]
        %v4081 = vld [vmem:[#allocation2 + $0x50] sm:$0xff]
        %v4082 = vld [vmem:[#allocation2 + $0x58] sm:$0xff]
        %v4083 = vld [vmem:[#allocation2 + $0x60] sm:$0xff]
        %v4084 = vld [vmem:[#allocation2 + $0x68] sm:$0xff]
        %v4085 = vld [vmem:[#allocation2 + $0x70] sm:$0xff]
        %v4086 = vld [vmem:[#allocation2 + $0x78] sm:$0xff]
        %v4087 = vld [vmem:[#allocation2 + $0x80] sm:$0xff]
        %v4088 = vld [vmem:[#allocation2 + $0x88] sm:$0xff]
        %v4089 = vld [vmem:[#allocation2 + $0x90] sm:$0xff]
        %v4090 = vld [vmem:[#allocation2 + $0x98] sm:$0xff]
        %v4091 = vld [vmem:[#allocation2 + $0xa0] sm:$0xff]
        %v4092 = vld [vmem:[#allocation2 + $0xa8] sm:$0xff]
        %v4093 = vld [vmem:[#allocation2 + $0xb0] sm:$0xff]
        %v4094 = vld [vmem:[#allocation2 + $0xb8] sm:$0xff]
        %v4095 = vld [vmem:[#allocation2 + $0xc0] sm:$0xff]
        %v4096 = vld [vmem:[#allocation2 + $0xc8] sm:$0xff]
        %v4097 = vld [vmem:[#allocation2 + $0xd0] sm:$0xff]
        %v4098 = vld [vmem:[#allocation2 + $0xd8] sm:$0xff]
        %v4099 = vld [vmem:[#allocation2 + $0xe0] sm:$0xff]
        %v4100 = vld [vmem:[#allocation2 + $0xe8] sm:$0xff]
        %v4101 = vld [vmem:[#allocation2 + $0xf0] sm:$0xf]
        %v4102 = vld [vmem:[#allocation2 + $0xf8] sm:$0xf]
        %v4103 = vld [vmem:[#allocation4 + $0x4] sm:$0xff]
        %v4104 = vld [vmem:[#allocation4 + $0xc] sm:$0xff]
        %v4105 = vld [vmem:[#allocation4 + $0x14] sm:$0xff]
        %v4106 = vld [vmem:[#allocation4 + $0x1c] sm:$0xff]
        %v4107 = vld [vmem:[#allocation4 + $0x24] sm:$0xff]
        %v4108 = vld [vmem:[#allocation4 + $0x2c] sm:$0xff]
        %v4109 = vld [vmem:[#allocation4 + $0x34] sm:$0xff]
        %v4110 = vld [vmem:[#allocation4 + $0x3c] sm:$0xff]
        %v4111 = vld [vmem:[#allocation4 + $0x44] sm:$0xff]
        %v4112 = vld [vmem:[#allocation4 + $0x4c] sm:$0xff]
        %v4113 = vld [vmem:[#allocation4 + $0x54] sm:$0xff]
        %v4114 = vld [vmem:[#allocation4 + $0x5c] sm:$0xff]
        %v4115 = vld [vmem:[#allocation4 + $0x64] sm:$0xff]
        %v4116 = vld [vmem:[#allocation4 + $0x6c] sm:$0xff]
        %v4117 = vld [vmem:[#allocation4 + $0x74] sm:$0xff]
        %v4118 = vld [vmem:[#allocation4 + $0x7c] sm:$0xf]
        %s4119 = scalar_lea.vmem %s3, 1024
        %v4120 = vld [vmem:[%s4119] sm:$0xff]
        %v4121 = vld [vmem:[%s4119 + $0x8] sm:$0xff]
        %v4122 = vld [vmem:[%s4119 + $0x10] sm:$0xff]
        %v4123 = vld [vmem:[%s4119 + $0x18] sm:$0xff]
        %v4124 = vld [vmem:[%s4119 + $0x20] sm:$0xff]
        %v4125 = vld [vmem:[%s4119 + $0x28] sm:$0xff]
        %v4126 = vld [vmem:[%s4119 + $0x30] sm:$0xff]
        %v4127 = vld [vmem:[%s4119 + $0x38] sm:$0xff]
        %v4128 = vld [vmem:[%s4119 + $0x40] sm:$0xff]
        %v4129 = vld [vmem:[%s4119 + $0x48] sm:$0xff]
        %v4130 = vld [vmem:[%s4119 + $0x50] sm:$0xff]
        %v4131 = vld [vmem:[%s4119 + $0x58] sm:$0xff]
        %v4132 = vld [vmem:[%s4119 + $0x60] sm:$0xff]
        %v4133 = vld [vmem:[%s4119 + $0x68] sm:$0xff]
        %v4134 = vld [vmem:[%s4119 + $0x70] sm:$0xff]
        %v4135 = vld [vmem:[%s4119 + $0x78] sm:$0xff]
        %v4136 = vld [vmem:[%s4119 + $0x80] sm:$0xff]
        %v4137 = vld [vmem:[%s4119 + $0x88] sm:$0xff]
        %v4138 = vld [vmem:[%s4119 + $0x90] sm:$0xff]
        %v4139 = vld [vmem:[%s4119 + $0x98] sm:$0xff]
        %v4140 = vld [vmem:[%s4119 + $0xa0] sm:$0xff]
        %v4141 = vld [vmem:[%s4119 + $0xa8] sm:$0xff]
        %v4142 = vld [vmem:[%s4119 + $0xb0] sm:$0xff]
        %v4143 = vld [vmem:[%s4119 + $0xb8] sm:$0xff]
        %v4144 = vld [vmem:[%s4119 + $0xc0] sm:$0xff]
        %v4145 = vld [vmem:[%s4119 + $0xc8] sm:$0xff]
        %v4146 = vld [vmem:[%s4119 + $0xd0] sm:$0xff]
        %v4147 = vld [vmem:[%s4119 + $0xd8] sm:$0xff]
        %v4148 = vld [vmem:[%s4119 + $0xe0] sm:$0xff]
        %v4149 = vld [vmem:[%s4119 + $0xe8] sm:$0xff]
        %v4150 = vld [vmem:[%s4119 + $0xf0] sm:$0xff]
        %v4151 = vld [vmem:[%s4119 + $0xf8] sm:$0xff]
        %4152 = vmatpush.msra.mxu0 %v4150
        %4153 = vmatpush.msra.mxu0 %v4148
        %4154 = vmatpush.msra.mxu0 %v4146
        %4155 = vmatpush.msra.mxu0 %v4144
        %4156 = vmatpush.msra.mxu0 %v4142
        %4157 = vmatpush.msra.mxu0 %v4140
        %4158 = vmatpush.msra.mxu0 %v4138
        %4159 = vmatpush.msra.mxu0 %v4136
        %4160 = vmatpush.msra.mxu0 %v4134
        %4161 = vmatpush.msra.mxu0 %v4132
        %4162 = vmatpush.msra.mxu0 %v4130
        %4163 = vmatpush.msra.mxu0 %v4128
        %4164 = vmatpush.msra.mxu0 %v4126
        %4165 = vmatpush.msra.mxu0 %v4124
        %4166 = vmatpush.msra.mxu0 %v4122
        %4167 = vmatpush.msra.mxu0 %v4120
        %4168 = vmatmul.f32.gmra.mxu0 %v4103
        %v4169 = vpop.f32.mrf.mxu0
        %v4170 = vadd.f32 0.0, %v4169
        %4171 = vmatmul.f32.gmra.mxu0 %v4104
        %v4172 = vpop.f32.mrf.mxu0
        %v4173 = vadd.f32 0.0, %v4172
        %4174 = vmatmul.f32.gmra.mxu0 %v4105
        %v4175 = vpop.f32.mrf.mxu0
        %v4176 = vadd.f32 0.0, %v4175
        %4177 = vmatmul.f32.gmra.mxu0 %v4106
        %v4178 = vpop.f32.mrf.mxu0
        %v4179 = vadd.f32 0.0, %v4178
        %4180 = vmatmul.f32.gmra.mxu0 %v4107
        %v4181 = vpop.f32.mrf.mxu0
        %v4182 = vadd.f32 0.0, %v4181
        %4183 = vmatmul.f32.gmra.mxu0 %v4108
        %v4184 = vpop.f32.mrf.mxu0
        %v4185 = vadd.f32 0.0, %v4184
        %4186 = vmatmul.f32.gmra.mxu0 %v4109
        %v4187 = vpop.f32.mrf.mxu0
        %v4188 = vadd.f32 0.0, %v4187
        %4189 = vmatmul.f32.gmra.mxu0 %v4110
        %v4190 = vpop.f32.mrf.mxu0
        %v4191 = vadd.f32 0.0, %v4190
        %4192 = vmatmul.f32.gmra.mxu0 %v4111
        %v4193 = vpop.f32.mrf.mxu0
        %v4194 = vadd.f32 0.0, %v4193
        %4195 = vmatmul.f32.gmra.mxu0 %v4112
        %v4196 = vpop.f32.mrf.mxu0
        %v4197 = vadd.f32 0.0, %v4196
        %4198 = vmatmul.f32.gmra.mxu0 %v4113
        %v4199 = vpop.f32.mrf.mxu0
        %v4200 = vadd.f32 0.0, %v4199
        %4201 = vmatmul.f32.gmra.mxu0 %v4114
        %v4202 = vpop.f32.mrf.mxu0
        %v4203 = vadd.f32 0.0, %v4202
        %4204 = vmatmul.f32.gmra.mxu0 %v4115
        %v4205 = vpop.f32.mrf.mxu0
        %v4206 = vadd.f32 0.0, %v4205
        %4207 = vmatmul.f32.gmra.mxu0 %v4116
        %v4208 = vpop.f32.mrf.mxu0
        %v4209 = vadd.f32 0.0, %v4208
        %4210 = vmatmul.f32.gmra.mxu0 %v4117
        %v4211 = vpop.f32.mrf.mxu0
        %v4212 = vadd.f32 0.0, %v4211
        %4213 = vmatmul.f32.gmra.mxu0 %v4118
        %v4214 = vpop.f32.mrf.mxu0
        %v4215 = vadd.f32 0.0, %v4214
        %4216 = vdwg.mxu0
        %4217 = vmatpush.msra.mxu0 %v4151
        %4218 = vmatpush.msra.mxu0 %v4149
        %4219 = vmatpush.msra.mxu0 %v4147
        %4220 = vmatpush.msra.mxu0 %v4145
        %4221 = vmatpush.msra.mxu0 %v4143
        %4222 = vmatpush.msra.mxu0 %v4141
        %4223 = vmatpush.msra.mxu0 %v4139
        %4224 = vmatpush.msra.mxu0 %v4137
        %4225 = vmatpush.msra.mxu0 %v4135
        %4226 = vmatpush.msra.mxu0 %v4133
        %4227 = vmatpush.msra.mxu0 %v4131
        %4228 = vmatpush.msra.mxu0 %v4129
        %4229 = vmatpush.msra.mxu0 %v4127
        %4230 = vmatpush.msra.mxu0 %v4125
        %4231 = vmatpush.msra.mxu0 %v4123
        %4232 = vmatpush.msra.mxu0 %v4121
        %4233 = vmatmul.f32.gmra.mxu0 %v4103
        %v4234 = vpop.f32.mrf.mxu0
        %v4235 = vadd.f32 0.0, %v4234
        %4236 = vmatmul.f32.gmra.mxu0 %v4104
        %v4237 = vpop.f32.mrf.mxu0
        %v4238 = vadd.f32 0.0, %v4237
        %4239 = vmatmul.f32.gmra.mxu0 %v4105
        %v4240 = vpop.f32.mrf.mxu0
        %v4241 = vadd.f32 0.0, %v4240
        %4242 = vmatmul.f32.gmra.mxu0 %v4106
        %v4243 = vpop.f32.mrf.mxu0
        %v4244 = vadd.f32 0.0, %v4243
        %4245 = vmatmul.f32.gmra.mxu0 %v4107
        %v4246 = vpop.f32.mrf.mxu0
        %v4247 = vadd.f32 0.0, %v4246
        %4248 = vmatmul.f32.gmra.mxu0 %v4108
        %v4249 = vpop.f32.mrf.mxu0
        %v4250 = vadd.f32 0.0, %v4249
        %4251 = vmatmul.f32.gmra.mxu0 %v4109
        %v4252 = vpop.f32.mrf.mxu0
        %v4253 = vadd.f32 0.0, %v4252
        %4254 = vmatmul.f32.gmra.mxu0 %v4110
        %v4255 = vpop.f32.mrf.mxu0
        %v4256 = vadd.f32 0.0, %v4255
        %4257 = vmatmul.f32.gmra.mxu0 %v4111
        %v4258 = vpop.f32.mrf.mxu0
        %v4259 = vadd.f32 0.0, %v4258
        %4260 = vmatmul.f32.gmra.mxu0 %v4112
        %v4261 = vpop.f32.mrf.mxu0
        %v4262 = vadd.f32 0.0, %v4261
        %4263 = vmatmul.f32.gmra.mxu0 %v4113
        %v4264 = vpop.f32.mrf.mxu0
        %v4265 = vadd.f32 0.0, %v4264
        %4266 = vmatmul.f32.gmra.mxu0 %v4114
        %v4267 = vpop.f32.mrf.mxu0
        %v4268 = vadd.f32 0.0, %v4267
        %4269 = vmatmul.f32.gmra.mxu0 %v4115
        %v4270 = vpop.f32.mrf.mxu0
        %v4271 = vadd.f32 0.0, %v4270
        %4272 = vmatmul.f32.gmra.mxu0 %v4116
        %v4273 = vpop.f32.mrf.mxu0
        %v4274 = vadd.f32 0.0, %v4273
        %4275 = vmatmul.f32.gmra.mxu0 %v4117
        %v4276 = vpop.f32.mrf.mxu0
        %v4277 = vadd.f32 0.0, %v4276
        %4278 = vmatmul.f32.gmra.mxu0 %v4118
        %v4279 = vpop.f32.mrf.mxu0
        %v4280 = vadd.f32 0.0, %v4279
        %4281 = vdwg.mxu0
        %v4282 = vadd.f32 %v4071, %v4170
        %v4283 = vadd.f32 %v4072, %v4235
        %v4284 = vadd.f32 %v4073, %v4173
        %v4285 = vadd.f32 %v4074, %v4238
        %v4286 = vadd.f32 %v4075, %v4176
        %v4287 = vadd.f32 %v4076, %v4241
        %v4288 = vadd.f32 %v4077, %v4179
        %v4289 = vadd.f32 %v4078, %v4244
        %v4290 = vadd.f32 %v4079, %v4182
        %v4291 = vadd.f32 %v4080, %v4247
        %v4292 = vadd.f32 %v4081, %v4185
        %v4293 = vadd.f32 %v4082, %v4250
        %v4294 = vadd.f32 %v4083, %v4188
        %v4295 = vadd.f32 %v4084, %v4253
        %v4296 = vadd.f32 %v4085, %v4191
        %v4297 = vadd.f32 %v4086, %v4256
        %v4298 = vadd.f32 %v4087, %v4194
        %v4299 = vadd.f32 %v4088, %v4259
        %v4300 = vadd.f32 %v4089, %v4197
        %v4301 = vadd.f32 %v4090, %v4262
        %v4302 = vadd.f32 %v4091, %v4200
        %v4303 = vadd.f32 %v4092, %v4265
        %v4304 = vadd.f32 %v4093, %v4203
        %v4305 = vadd.f32 %v4094, %v4268
        %v4306 = vadd.f32 %v4095, %v4206
        %v4307 = vadd.f32 %v4096, %v4271
        %v4308 = vadd.f32 %v4097, %v4209
        %v4309 = vadd.f32 %v4098, %v4274
        %v4310 = vadd.f32 %v4099, %v4212
        %v4311 = vadd.f32 %v4100, %v4277
        %v4312 = vadd.f32 %v4101, %v4215
        %v4313 = vadd.f32 %v4102, %v4280
        %4314 = vst [vmem:[#allocation2] sm:$0xff] %v4282
        %4315 = vst [vmem:[#allocation2 + $0x8] sm:$0xff] %v4283
        %4316 = vst [vmem:[#allocation2 + $0x10] sm:$0xff] %v4284
        %4317 = vst [vmem:[#allocation2 + $0x18] sm:$0xff] %v4285
        %4318 = vst [vmem:[#allocation2 + $0x20] sm:$0xff] %v4286
        %4319 = vst [vmem:[#allocation2 + $0x28] sm:$0xff] %v4287
        %4320 = vst [vmem:[#allocation2 + $0x30] sm:$0xff] %v4288
        %4321 = vst [vmem:[#allocation2 + $0x38] sm:$0xff] %v4289
        %4322 = vst [vmem:[#allocation2 + $0x40] sm:$0xff] %v4290
        %4323 = vst [vmem:[#allocation2 + $0x48] sm:$0xff] %v4291
        %4324 = vst [vmem:[#allocation2 + $0x50] sm:$0xff] %v4292
        %4325 = vst [vmem:[#allocation2 + $0x58] sm:$0xff] %v4293
        %4326 = vst [vmem:[#allocation2 + $0x60] sm:$0xff] %v4294
        %4327 = vst [vmem:[#allocation2 + $0x68] sm:$0xff] %v4295
        %4328 = vst [vmem:[#allocation2 + $0x70] sm:$0xff] %v4296
        %4329 = vst [vmem:[#allocation2 + $0x78] sm:$0xff] %v4297
        %4330 = vst [vmem:[#allocation2 + $0x80] sm:$0xff] %v4298
        %4331 = vst [vmem:[#allocation2 + $0x88] sm:$0xff] %v4299
        %4332 = vst [vmem:[#allocation2 + $0x90] sm:$0xff] %v4300
        %4333 = vst [vmem:[#allocation2 + $0x98] sm:$0xff] %v4301
        %4334 = vst [vmem:[#allocation2 + $0xa0] sm:$0xff] %v4302
        %4335 = vst [vmem:[#allocation2 + $0xa8] sm:$0xff] %v4303
        %4336 = vst [vmem:[#allocation2 + $0xb0] sm:$0xff] %v4304
        %4337 = vst [vmem:[#allocation2 + $0xb8] sm:$0xff] %v4305
        %4338 = vst [vmem:[#allocation2 + $0xc0] sm:$0xff] %v4306
        %4339 = vst [vmem:[#allocation2 + $0xc8] sm:$0xff] %v4307
        %4340 = vst [vmem:[#allocation2 + $0xd0] sm:$0xff] %v4308
        %4341 = vst [vmem:[#allocation2 + $0xd8] sm:$0xff] %v4309
        %4342 = vst [vmem:[#allocation2 + $0xe0] sm:$0xff] %v4310
        %4343 = vst [vmem:[#allocation2 + $0xe8] sm:$0xff] %v4311
        %4344 = vst [vmem:[#allocation2 + $0xf0] sm:$0xf] %v4312
        %4345 = vst [vmem:[#allocation2 + $0xf8] sm:$0xf] %v4313
        %v4346 = vld [vmem:[#allocation2] sm:$0xff]
        %v4347 = vld [vmem:[#allocation2 + $0x8] sm:$0xff]
        %v4348 = vld [vmem:[#allocation2 + $0x10] sm:$0xff]
        %v4349 = vld [vmem:[#allocation2 + $0x18] sm:$0xff]
        %v4350 = vld [vmem:[#allocation2 + $0x20] sm:$0xff]
        %v4351 = vld [vmem:[#allocation2 + $0x28] sm:$0xff]
        %v4352 = vld [vmem:[#allocation2 + $0x30] sm:$0xff]
        %v4353 = vld [vmem:[#allocation2 + $0x38] sm:$0xff]
        %v4354 = vld [vmem:[#allocation2 + $0x40] sm:$0xff]
        %v4355 = vld [vmem:[#allocation2 + $0x48] sm:$0xff]
        %v4356 = vld [vmem:[#allocation2 + $0x50] sm:$0xff]
        %v4357 = vld [vmem:[#allocation2 + $0x58] sm:$0xff]
        %v4358 = vld [vmem:[#allocation2 + $0x60] sm:$0xff]
        %v4359 = vld [vmem:[#allocation2 + $0x68] sm:$0xff]
        %v4360 = vld [vmem:[#allocation2 + $0x70] sm:$0xff]
        %v4361 = vld [vmem:[#allocation2 + $0x78] sm:$0xff]
        %v4362 = vld [vmem:[#allocation2 + $0x80] sm:$0xff]
        %v4363 = vld [vmem:[#allocation2 + $0x88] sm:$0xff]
        %v4364 = vld [vmem:[#allocation2 + $0x90] sm:$0xff]
        %v4365 = vld [vmem:[#allocation2 + $0x98] sm:$0xff]
        %v4366 = vld [vmem:[#allocation2 + $0xa0] sm:$0xff]
        %v4367 = vld [vmem:[#allocation2 + $0xa8] sm:$0xff]
        %v4368 = vld [vmem:[#allocation2 + $0xb0] sm:$0xff]
        %v4369 = vld [vmem:[#allocation2 + $0xb8] sm:$0xff]
        %v4370 = vld [vmem:[#allocation2 + $0xc0] sm:$0xff]
        %v4371 = vld [vmem:[#allocation2 + $0xc8] sm:$0xff]
        %v4372 = vld [vmem:[#allocation2 + $0xd0] sm:$0xff]
        %v4373 = vld [vmem:[#allocation2 + $0xd8] sm:$0xff]
        %v4374 = vld [vmem:[#allocation2 + $0xe0] sm:$0xff]
        %v4375 = vld [vmem:[#allocation2 + $0xe8] sm:$0xff]
        %v4376 = vld [vmem:[#allocation2 + $0xf0] sm:$0xf]
        %v4377 = vld [vmem:[#allocation2 + $0xf8] sm:$0xf]
        %v4378 = vld [vmem:[%s4] sm:$0x3]
        %v4380 = vperm.slane %v4378, 0
        %v4381 = vperm.slane %v4378, 1
        %v4384 = vadd.f32 %v4346, %v4380
        %v4385 = vadd.f32 %v4347, %v4381
        %v4386 = vadd.f32 %v4348, %v4380
        %v4387 = vadd.f32 %v4349, %v4381
        %v4388 = vadd.f32 %v4350, %v4380
        %v4389 = vadd.f32 %v4351, %v4381
        %v4390 = vadd.f32 %v4352, %v4380
        %v4391 = vadd.f32 %v4353, %v4381
        %v4392 = vadd.f32 %v4354, %v4380
        %v4393 = vadd.f32 %v4355, %v4381
        %v4394 = vadd.f32 %v4356, %v4380
        %v4395 = vadd.f32 %v4357, %v4381
        %v4396 = vadd.f32 %v4358, %v4380
        %v4397 = vadd.f32 %v4359, %v4381
        %v4398 = vadd.f32 %v4360, %v4380
        %v4399 = vadd.f32 %v4361, %v4381
        %v4400 = vadd.f32 %v4362, %v4380
        %v4401 = vadd.f32 %v4363, %v4381
        %v4402 = vadd.f32 %v4364, %v4380
        %v4403 = vadd.f32 %v4365, %v4381
        %v4404 = vadd.f32 %v4366, %v4380
        %v4405 = vadd.f32 %v4367, %v4381
        %v4406 = vadd.f32 %v4368, %v4380
        %v4407 = vadd.f32 %v4369, %v4381
        %v4408 = vadd.f32 %v4370, %v4380
        %v4409 = vadd.f32 %v4371, %v4381
        %v4410 = vadd.f32 %v4372, %v4380
        %v4411 = vadd.f32 %v4373, %v4381
        %v4412 = vadd.f32 %v4374, %v4380
        %v4413 = vadd.f32 %v4375, %v4381
        %v4414 = vadd.f32 %v4376, %v4380
        %v4415 = vadd.f32 %v4377, %v4381
        %v4416 = vmax.f32 %v4384, 0.0
        %v4417 = vmax.f32 %v4385, 0.0
        %v4418 = vmax.f32 %v4386, 0.0
        %v4419 = vmax.f32 %v4387, 0.0
        %v4420 = vmax.f32 %v4388, 0.0
        %v4421 = vmax.f32 %v4389, 0.0
        %v4422 = vmax.f32 %v4390, 0.0
        %v4423 = vmax.f32 %v4391, 0.0
        %v4424 = vmax.f32 %v4392, 0.0
        %v4425 = vmax.f32 %v4393, 0.0
        %v4426 = vmax.f32 %v4394, 0.0
        %v4427 = vmax.f32 %v4395, 0.0
        %v4428 = vmax.f32 %v4396, 0.0
        %v4429 = vmax.f32 %v4397, 0.0
        %v4430 = vmax.f32 %v4398, 0.0
        %v4431 = vmax.f32 %v4399, 0.0
        %v4432 = vmax.f32 %v4400, 0.0
        %v4433 = vmax.f32 %v4401, 0.0
        %v4434 = vmax.f32 %v4402, 0.0
        %v4435 = vmax.f32 %v4403, 0.0
        %v4436 = vmax.f32 %v4404, 0.0
        %v4437 = vmax.f32 %v4405, 0.0
        %v4438 = vmax.f32 %v4406, 0.0
        %v4439 = vmax.f32 %v4407, 0.0
        %v4440 = vmax.f32 %v4408, 0.0
        %v4441 = vmax.f32 %v4409, 0.0
        %v4442 = vmax.f32 %v4410, 0.0
        %v4443 = vmax.f32 %v4411, 0.0
        %v4444 = vmax.f32 %v4412, 0.0
        %v4445 = vmax.f32 %v4413, 0.0
        %v4446 = vmax.f32 %v4414, 0.0
        %v4447 = vmax.f32 %v4415, 0.0
        %v4448 = vmax.f32 %v4416, %v4417
        %v4449 = vmax.f32 %v4418, %v4419
        %v4450 = vmax.f32 %v4420, %v4421
        %v4451 = vmax.f32 %v4422, %v4423
        %v4452 = vmax.f32 %v4424, %v4425
        %v4453 = vmax.f32 %v4426, %v4427
        %v4454 = vmax.f32 %v4428, %v4429
        %v4455 = vmax.f32 %v4430, %v4431
        %v4456 = vmax.f32 %v4432, %v4433
        %v4457 = vmax.f32 %v4434, %v4435
        %v4458 = vmax.f32 %v4436, %v4437
        %v4459 = vmax.f32 %v4438, %v4439
        %v4460 = vmax.f32 %v4440, %v4441
        %v4461 = vmax.f32 %v4442, %v4443
        %v4462 = vmax.f32 %v4444, %v4445
        %v4463 = vmax.f32 %v4446, %v4447
        %4464 = vst [vmem:[#allocation5] sm:$0xff] %v4448
        %4465 = vst [vmem:[#allocation5 + $0x8] sm:$0xff] %v4449
        %4466 = vst [vmem:[#allocation5 + $0x10] sm:$0xff] %v4450
        %4467 = vst [vmem:[#allocation5 + $0x18] sm:$0xff] %v4451
        %4468 = vst [vmem:[#allocation5 + $0x20] sm:$0xff] %v4452
        %4469 = vst [vmem:[#allocation5 + $0x28] sm:$0xff] %v4453
        %4470 = vst [vmem:[#allocation5 + $0x30] sm:$0xff] %v4454
        %4471 = vst [vmem:[#allocation5 + $0x38] sm:$0xff] %v4455
        %4472 = vst [vmem:[#allocation5 + $0x40] sm:$0xff] %v4456
        %4473 = vst [vmem:[#allocation5 + $0x48] sm:$0xff] %v4457
        %4474 = vst [vmem:[#allocation5 + $0x50] sm:$0xff] %v4458
        %4475 = vst [vmem:[#allocation5 + $0x58] sm:$0xff] %v4459
        %4476 = vst [vmem:[#allocation5 + $0x60] sm:$0xff] %v4460
        %4477 = vst [vmem:[#allocation5 + $0x68] sm:$0xff] %v4461
        %4478 = vst [vmem:[#allocation5 + $0x70] sm:$0xff] %v4462
        %4479 = vst [vmem:[#allocation5 + $0x78] sm:$0xf] %v4463
        %v4480 = vld [vmem:[#allocation5] ss:$2 sm:$0xff]
        %s4481 = scalar_lea.vmem [#allocation5], 16
        %v4482 = vld [vmem:[%s4481] ss:$2 sm:$0xff]
        %s4483 = scalar_lea.vmem [#allocation5], 32
        %v4484 = vld [vmem:[%s4483] ss:$2 sm:$0xff]
        %s4485 = scalar_lea.vmem [#allocation5], 48
        %v4486 = vld [vmem:[%s4485] ss:$2 sm:$0xff]
        %s4487 = scalar_lea.vmem [#allocation5], 64
        %v4488 = vld [vmem:[%s4487] ss:$2 sm:$0xff]
        %s4489 = scalar_lea.vmem [#allocation5], 80
        %v4490 = vld [vmem:[%s4489] ss:$2 sm:$0xff]
        %s4491 = scalar_lea.vmem [#allocation5], 96
        %v4492 = vld [vmem:[%s4491] ss:$2 sm:$0xff]
        %s4493 = scalar_lea.vmem [#allocation5], 112
        %v4494 = vld [vmem:[%s4493] ss:$2 sm:$0xff]
        %s4495 = scalar_lea.vmem [#allocation5], 1
        %v4496 = vld [vmem:[%s4495] ss:$2 sm:$0xff]
        %s4497 = scalar_lea.vmem [#allocation5], 17
        %v4498 = vld [vmem:[%s4497] ss:$2 sm:$0xff]
        %s4499 = scalar_lea.vmem [#allocation5], 33
        %v4500 = vld [vmem:[%s4499] ss:$2 sm:$0xff]
        %s4501 = scalar_lea.vmem [#allocation5], 49
        %v4502 = vld [vmem:[%s4501] ss:$2 sm:$0xff]
        %s4503 = scalar_lea.vmem [#allocation5], 65
        %v4504 = vld [vmem:[%s4503] ss:$2 sm:$0xff]
        %s4505 = scalar_lea.vmem [#allocation5], 81
        %v4506 = vld [vmem:[%s4505] ss:$2 sm:$0xff]
        %s4507 = scalar_lea.vmem [#allocation5], 97
        %v4508 = vld [vmem:[%s4507] ss:$2 sm:$0xff]
        %s4509 = scalar_lea.vmem [#allocation5], 113
        %v4510 = vld [vmem:[%s4509] ss:$2 sm:$0xff]
        %v4511 = vmax.f32 %v4480, %v4496
        %v4512 = vmax.f32 %v4482, %v4498
        %v4513 = vmax.f32 %v4484, %v4500
        %v4514 = vmax.f32 %v4486, %v4502
        %v4515 = vmax.f32 %v4488, %v4504
        %v4516 = vmax.f32 %v4490, %v4506
        %v4517 = vmax.f32 %v4492, %v4508
        %v4518 = vmax.f32 %v4494, %v4510
        %4519 = vst [vmem:[#allocation6] sm:$0xff] %v4511
        %4520 = vst [vmem:[#allocation6 + $0x8] sm:$0xff] %v4512
        %4521 = vst [vmem:[#allocation6 + $0x10] sm:$0xff] %v4513
        %4522 = vst [vmem:[#allocation6 + $0x18] sm:$0xff] %v4514
        %4523 = vst [vmem:[#allocation6 + $0x20] sm:$0xff] %v4515
        %4524 = vst [vmem:[#allocation6 + $0x28] sm:$0xff] %v4516
        %4525 = vst [vmem:[#allocation6 + $0x30] sm:$0xff] %v4517
        %4526 = vst [vmem:[#allocation6 + $0x38] sm:$0xff] %v4518
        %v4527 = vld [vmem:[#allocation6] ss:$8 sm:$0xf]
        %v4528 = vld [vmem:[#allocation6] ss:$8 sm:$0xf0]
        %v4529 = vor.u32 %v4527, %v4528
        %v4530 = vld [vmem:[%s5] sm:$0xff]
        %v4531 = vld [vmem:[%s5 + $0x8] sm:$0xff]
        %v4532 = vld [vmem:[%s5 + $0x10] sm:$0xff]
        %v4533 = vld [vmem:[%s5 + $0x18] sm:$0xff]
        %v4534 = vld [vmem:[%s5 + $0x20] sm:$0xff]
        %v4535 = vld [vmem:[%s5 + $0x28] sm:$0xff]
        %v4536 = vld [vmem:[%s5 + $0x30] sm:$0xff]
        %v4537 = vld [vmem:[%s5 + $0x38] sm:$0xff]
        %v4538 = vld [vmem:[%s5 + $0x40] sm:$0xff]
        %v4539 = vld [vmem:[%s5 + $0x48] sm:$0xff]
        %v4540 = vld [vmem:[%s5 + $0x50] sm:$0xff]
        %v4541 = vld [vmem:[%s5 + $0x58] sm:$0xff]
        %v4542 = vld [vmem:[%s5 + $0x60] sm:$0xff]
        %v4543 = vld [vmem:[%s5 + $0x68] sm:$0xff]
        %v4544 = vld [vmem:[%s5 + $0x70] sm:$0xff]
        %v4545 = vld [vmem:[%s5 + $0x78] sm:$0xff]
        %s4546 = scalar_lea.vmem [#allocation6], 1
        %v4547 = vld [vmem:[%s4546] ss:$8 sm:$0xf]
        %v4548 = vld [vmem:[%s4546] ss:$8 sm:$0xf0]
        %v4549 = vor.u32 %v4547, %v4548
        %s4550 = scalar_lea.vmem %s5, 128
        %v4551 = vld [vmem:[%s4550] sm:$0xff]
        %v4552 = vld [vmem:[%s4550 + $0x8] sm:$0xff]
        %v4553 = vld [vmem:[%s4550 + $0x10] sm:$0xff]
        %v4554 = vld [vmem:[%s4550 + $0x18] sm:$0xff]
        %v4555 = vld [vmem:[%s4550 + $0x20] sm:$0xff]
        %v4556 = vld [vmem:[%s4550 + $0x28] sm:$0xff]
        %v4557 = vld [vmem:[%s4550 + $0x30] sm:$0xff]
        %v4558 = vld [vmem:[%s4550 + $0x38] sm:$0xff]
        %v4559 = vld [vmem:[%s4550 + $0x40] sm:$0xff]
        %v4560 = vld [vmem:[%s4550 + $0x48] sm:$0xff]
        %v4561 = vld [vmem:[%s4550 + $0x50] sm:$0xff]
        %v4562 = vld [vmem:[%s4550 + $0x58] sm:$0xff]
        %v4563 = vld [vmem:[%s4550 + $0x60] sm:$0xff]
        %v4564 = vld [vmem:[%s4550 + $0x68] sm:$0xff]
        %v4565 = vld [vmem:[%s4550 + $0x70] sm:$0xff]
        %v4566 = vld [vmem:[%s4550 + $0x78] sm:$0xff]
        %4567 = vmatpush.msra.mxu0 %v4566
        %4568 = vmatpush.msra.mxu0 %v4565
        %4569 = vmatpush.msra.mxu0 %v4564
        %4570 = vmatpush.msra.mxu0 %v4563
        %4571 = vmatpush.msra.mxu0 %v4562
        %4572 = vmatpush.msra.mxu0 %v4561
        %4573 = vmatpush.msra.mxu0 %v4560
        %4574 = vmatpush.msra.mxu0 %v4559
        %4575 = vmatpush.msra.mxu0 %v4558
        %4576 = vmatpush.msra.mxu0 %v4557
        %4577 = vmatpush.msra.mxu0 %v4556
        %4578 = vmatpush.msra.mxu0 %v4555
        %4579 = vmatpush.msra.mxu0 %v4554
        %4580 = vmatpush.msra.mxu0 %v4553
        %4581 = vmatpush.msra.mxu0 %v4552
        %4582 = vmatpush.msra.mxu0 %v4551
        %4583 = vmatmul.f32.gmra.mxu0 %v4549
        %v4584 = vpop.f32.mrf.mxu0
        %v4585 = vadd.f32 0.0, %v4584
        %4586 = vdwg.mxu0
        %4587 = vmatpush.msra.mxu0 %v4545
        %4588 = vmatpush.msra.mxu0 %v4544
        %4589 = vmatpush.msra.mxu0 %v4543
        %4590 = vmatpush.msra.mxu0 %v4542
        %4591 = vmatpush.msra.mxu0 %v4541
        %4592 = vmatpush.msra.mxu0 %v4540
        %4593 = vmatpush.msra.mxu0 %v4539
        %4594 = vmatpush.msra.mxu0 %v4538
        %4595 = vmatpush.msra.mxu0 %v4537
        %4596 = vmatpush.msra.mxu0 %v4536
        %4597 = vmatpush.msra.mxu0 %v4535
        %4598 = vmatpush.msra.mxu0 %v4534
        %4599 = vmatpush.msra.mxu0 %v4533
        %4600 = vmatpush.msra.mxu0 %v4532
        %4601 = vmatpush.msra.mxu0 %v4531
        %4602 = vmatpush.msra.mxu0 %v4530
        %4603 = vmatmul.f32.gmra.mxu0 %v4529
        %v4604 = vpop.f32.mrf.mxu0
        %v4605 = vadd.f32 %v4585, %v4604
        %4606 = vdwg.mxu0
        %s4607 = scalar_lea.vmem [#allocation6], 2
        %v4608 = vld [vmem:[%s4607] ss:$8 sm:$0xf]
        %v4609 = vld [vmem:[%s4607] ss:$8 sm:$0xf0]
        %v4610 = vor.u32 %v4608, %v4609
        %s4611 = scalar_lea.vmem %s5, 256
        %v4612 = vld [vmem:[%s4611] sm:$0xff]
        %v4613 = vld [vmem:[%s4611 + $0x8] sm:$0xff]
        %v4614 = vld [vmem:[%s4611 + $0x10] sm:$0xff]
        %v4615 = vld [vmem:[%s4611 + $0x18] sm:$0xff]
        %v4616 = vld [vmem:[%s4611 + $0x20] sm:$0xff]
        %v4617 = vld [vmem:[%s4611 + $0x28] sm:$0xff]
        %v4618 = vld [vmem:[%s4611 + $0x30] sm:$0xff]
        %v4619 = vld [vmem:[%s4611 + $0x38] sm:$0xff]
        %v4620 = vld [vmem:[%s4611 + $0x40] sm:$0xff]
        %v4621 = vld [vmem:[%s4611 + $0x48] sm:$0xff]
        %v4622 = vld [vmem:[%s4611 + $0x50] sm:$0xff]
        %v4623 = vld [vmem:[%s4611 + $0x58] sm:$0xff]
        %v4624 = vld [vmem:[%s4611 + $0x60] sm:$0xff]
        %v4625 = vld [vmem:[%s4611 + $0x68] sm:$0xff]
        %v4626 = vld [vmem:[%s4611 + $0x70] sm:$0xff]
        %v4627 = vld [vmem:[%s4611 + $0x78] sm:$0xff]
        %4628 = vmatpush.msra.mxu0 %v4627
        %4629 = vmatpush.msra.mxu0 %v4626
        %4630 = vmatpush.msra.mxu0 %v4625
        %4631 = vmatpush.msra.mxu0 %v4624
        %4632 = vmatpush.msra.mxu0 %v4623
        %4633 = vmatpush.msra.mxu0 %v4622
        %4634 = vmatpush.msra.mxu0 %v4621
        %4635 = vmatpush.msra.mxu0 %v4620
        %4636 = vmatpush.msra.mxu0 %v4619
        %4637 = vmatpush.msra.mxu0 %v4618
        %4638 = vmatpush.msra.mxu0 %v4617
        %4639 = vmatpush.msra.mxu0 %v4616
        %4640 = vmatpush.msra.mxu0 %v4615
        %4641 = vmatpush.msra.mxu0 %v4614
        %4642 = vmatpush.msra.mxu0 %v4613
        %4643 = vmatpush.msra.mxu0 %v4612
        %4644 = vmatmul.f32.gmra.mxu0 %v4610
        %v4645 = vpop.f32.mrf.mxu0
        %v4646 = vadd.f32 0.0, %v4645
        %4647 = vdwg.mxu0
        %v4648 = vadd.f32 %v4605, %v4646
        %s4649 = scalar_lea.vmem [#allocation6], 3
        %v4650 = vld [vmem:[%s4649] ss:$8 sm:$0xf]
        %v4651 = vld [vmem:[%s4649] ss:$8 sm:$0xf0]
        %v4652 = vor.u32 %v4650, %v4651
        %s4653 = scalar_lea.vmem %s5, 384
        %v4654 = vld [vmem:[%s4653] sm:$0xff]
        %v4655 = vld [vmem:[%s4653 + $0x8] sm:$0xff]
        %v4656 = vld [vmem:[%s4653 + $0x10] sm:$0xff]
        %v4657 = vld [vmem:[%s4653 + $0x18] sm:$0xff]
        %v4658 = vld [vmem:[%s4653 + $0x20] sm:$0xff]
        %v4659 = vld [vmem:[%s4653 + $0x28] sm:$0xff]
        %v4660 = vld [vmem:[%s4653 + $0x30] sm:$0xff]
        %v4661 = vld [vmem:[%s4653 + $0x38] sm:$0xff]
        %v4662 = vld [vmem:[%s4653 + $0x40] sm:$0xff]
        %v4663 = vld [vmem:[%s4653 + $0x48] sm:$0xff]
        %v4664 = vld [vmem:[%s4653 + $0x50] sm:$0xff]
        %v4665 = vld [vmem:[%s4653 + $0x58] sm:$0xff]
        %v4666 = vld [vmem:[%s4653 + $0x60] sm:$0xff]
        %v4667 = vld [vmem:[%s4653 + $0x68] sm:$0xff]
        %v4668 = vld [vmem:[%s4653 + $0x70] sm:$0xff]
        %v4669 = vld [vmem:[%s4653 + $0x78] sm:$0xff]
        %4670 = vmatpush.msra.mxu0 %v4669
        %4671 = vmatpush.msra.mxu0 %v4668
        %4672 = vmatpush.msra.mxu0 %v4667
        %4673 = vmatpush.msra.mxu0 %v4666
        %4674 = vmatpush.msra.mxu0 %v4665
        %4675 = vmatpush.msra.mxu0 %v4664
        %4676 = vmatpush.msra.mxu0 %v4663
        %4677 = vmatpush.msra.mxu0 %v4662
        %4678 = vmatpush.msra.mxu0 %v4661
        %4679 = vmatpush.msra.mxu0 %v4660
        %4680 = vmatpush.msra.mxu0 %v4659
        %4681 = vmatpush.msra.mxu0 %v4658
        %4682 = vmatpush.msra.mxu0 %v4657
        %4683 = vmatpush.msra.mxu0 %v4656
        %4684 = vmatpush.msra.mxu0 %v4655
        %4685 = vmatpush.msra.mxu0 %v4654
        %4686 = vmatmul.f32.gmra.mxu0 %v4652
        %v4687 = vpop.f32.mrf.mxu0
        %v4688 = vadd.f32 0.0, %v4687
        %4689 = vdwg.mxu0
        %v4690 = vadd.f32 %v4648, %v4688
        %s4691 = scalar_lea.vmem [#allocation6], 4
        %v4692 = vld [vmem:[%s4691] ss:$8 sm:$0xf]
        %v4693 = vld [vmem:[%s4691] ss:$8 sm:$0xf0]
        %v4694 = vor.u32 %v4692, %v4693
        %s4695 = scalar_lea.vmem %s5, 512
        %v4696 = vld [vmem:[%s4695] sm:$0xff]
        %v4697 = vld [vmem:[%s4695 + $0x8] sm:$0xff]
        %v4698 = vld [vmem:[%s4695 + $0x10] sm:$0xff]
        %v4699 = vld [vmem:[%s4695 + $0x18] sm:$0xff]
        %v4700 = vld [vmem:[%s4695 + $0x20] sm:$0xff]
        %v4701 = vld [vmem:[%s4695 + $0x28] sm:$0xff]
        %v4702 = vld [vmem:[%s4695 + $0x30] sm:$0xff]
        %v4703 = vld [vmem:[%s4695 + $0x38] sm:$0xff]
        %v4704 = vld [vmem:[%s4695 + $0x40] sm:$0xff]
        %v4705 = vld [vmem:[%s4695 + $0x48] sm:$0xff]
        %v4706 = vld [vmem:[%s4695 + $0x50] sm:$0xff]
        %v4707 = vld [vmem:[%s4695 + $0x58] sm:$0xff]
        %v4708 = vld [vmem:[%s4695 + $0x60] sm:$0xff]
        %v4709 = vld [vmem:[%s4695 + $0x68] sm:$0xff]
        %v4710 = vld [vmem:[%s4695 + $0x70] sm:$0xff]
        %v4711 = vld [vmem:[%s4695 + $0x78] sm:$0xff]
        %4712 = vmatpush.msra.mxu0 %v4711
        %4713 = vmatpush.msra.mxu0 %v4710
        %4714 = vmatpush.msra.mxu0 %v4709
        %4715 = vmatpush.msra.mxu0 %v4708
        %4716 = vmatpush.msra.mxu0 %v4707
        %4717 = vmatpush.msra.mxu0 %v4706
        %4718 = vmatpush.msra.mxu0 %v4705
        %4719 = vmatpush.msra.mxu0 %v4704
        %4720 = vmatpush.msra.mxu0 %v4703
        %4721 = vmatpush.msra.mxu0 %v4702
        %4722 = vmatpush.msra.mxu0 %v4701
        %4723 = vmatpush.msra.mxu0 %v4700
        %4724 = vmatpush.msra.mxu0 %v4699
        %4725 = vmatpush.msra.mxu0 %v4698
        %4726 = vmatpush.msra.mxu0 %v4697
        %4727 = vmatpush.msra.mxu0 %v4696
        %4728 = vmatmul.f32.gmra.mxu0 %v4694
        %v4729 = vpop.f32.mrf.mxu0
        %v4730 = vadd.f32 0.0, %v4729
        %4731 = vdwg.mxu0
        %v4732 = vadd.f32 %v4690, %v4730
        %v4733 = vld [vmem:[%s6] sm:$0x1]
        %v4735 = vperm.slane %v4733, 0
        %v4737 = vadd.f32 %v4732, %v4735
        %v4738 = vmax.f32 %v4737, 0.0
        %v4739 = vld [vmem:[%s7] sm:$0xff]
        %v4740 = vld [vmem:[%s7 + $0x8] sm:$0xff]
        %v4741 = vld [vmem:[%s7 + $0x10] sm:$0xff]
        %v4742 = vld [vmem:[%s7 + $0x18] sm:$0xff]
        %v4743 = vld [vmem:[%s7 + $0x20] sm:$0xff]
        %v4744 = vld [vmem:[%s7 + $0x28] sm:$0xff]
        %v4745 = vld [vmem:[%s7 + $0x30] sm:$0xff]
        %v4746 = vld [vmem:[%s7 + $0x38] sm:$0xff]
        %v4747 = vld [vmem:[%s7 + $0x40] sm:$0xff]
        %v4748 = vld [vmem:[%s7 + $0x48] sm:$0xff]
        %v4749 = vld [vmem:[%s7 + $0x50] sm:$0xff]
        %v4750 = vld [vmem:[%s7 + $0x58] sm:$0xff]
        %v4751 = vld [vmem:[%s7 + $0x60] sm:$0xff]
        %v4752 = vld [vmem:[%s7 + $0x68] sm:$0xff]
        %v4753 = vld [vmem:[%s7 + $0x70] sm:$0xff]
        %v4754 = vld [vmem:[%s7 + $0x78] sm:$0xff]
        %v4755 = vld [vmem:[%s8] sm:$0x1]
        %v4757 = vperm.slane %v4755, 0
        %4759 = vmatpush.msra.mxu0 %v4754
        %4760 = vmatpush.msra.mxu0 %v4753
        %4761 = vmatpush.msra.mxu0 %v4752
        %4762 = vmatpush.msra.mxu0 %v4751
        %4763 = vmatpush.msra.mxu0 %v4750
        %4764 = vmatpush.msra.mxu0 %v4749
        %4765 = vmatpush.msra.mxu0 %v4748
        %4766 = vmatpush.msra.mxu0 %v4747
        %4767 = vmatpush.msra.mxu0 %v4746
        %4768 = vmatpush.msra.mxu0 %v4745
        %4769 = vmatpush.msra.mxu0 %v4744
        %4770 = vmatpush.msra.mxu0 %v4743
        %4771 = vmatpush.msra.mxu0 %v4742
        %4772 = vmatpush.msra.mxu0 %v4741
        %4773 = vmatpush.msra.mxu0 %v4740
        %4774 = vmatpush.msra.mxu0 %v4739
        %4775 = vmatmul.f32.gmra.mxu0 %v4738
        %v4776 = vpop.f32.mrf.mxu0
        %v4777 = vadd.f32 %v4757, %v4776
        %4778 = vdwg.mxu0
        %v4779 = vmax.f32 %v4777, 0.0
        %v4780 = vld [vmem:[%s9] sm:$0xff]
        %v4781 = vld [vmem:[%s9 + $0x8] sm:$0xff]
        %v4782 = vld [vmem:[%s9 + $0x10] sm:$0xff]
        %v4783 = vld [vmem:[%s9 + $0x18] sm:$0xff]
        %v4784 = vld [vmem:[%s9 + $0x20] sm:$0xff]
        %v4785 = vld [vmem:[%s9 + $0x28] sm:$0xff]
        %v4786 = vld [vmem:[%s9 + $0x30] sm:$0xff]
        %v4787 = vld [vmem:[%s9 + $0x38] sm:$0xff]
        %v4788 = vld [vmem:[%s9 + $0x40] sm:$0xff]
        %v4789 = vld [vmem:[%s9 + $0x48] sm:$0xff]
        %v4790 = vld [vmem:[%s9 + $0x50] sm:$0xff]
        %v4791 = vld [vmem:[%s9 + $0x58] sm:$0xff]
        %v4792 = vld [vmem:[%s9 + $0x60] sm:$0xff]
        %v4793 = vld [vmem:[%s9 + $0x68] sm:$0xff]
        %v4794 = vld [vmem:[%s9 + $0x70] sm:$0xff]
        %v4795 = vld [vmem:[%s9 + $0x78] sm:$0xff]
        %v4796 = vld [vmem:[%s10] sm:$0x1]
        %v4798 = vperm.slane %v4796, 0
        %4800 = vmatpush.msra.mxu0 %v4795
        %4801 = vmatpush.msra.mxu0 %v4794
        %4802 = vmatpush.msra.mxu0 %v4793
        %4803 = vmatpush.msra.mxu0 %v4792
        %4804 = vmatpush.msra.mxu0 %v4791
        %4805 = vmatpush.msra.mxu0 %v4790
        %4806 = vmatpush.msra.mxu0 %v4789
        %4807 = vmatpush.msra.mxu0 %v4788
        %4808 = vmatpush.msra.mxu0 %v4787
        %4809 = vmatpush.msra.mxu0 %v4786
        %4810 = vmatpush.msra.mxu0 %v4785
        %4811 = vmatpush.msra.mxu0 %v4784
        %4812 = vmatpush.msra.mxu0 %v4783
        %4813 = vmatpush.msra.mxu0 %v4782
        %4814 = vmatpush.msra.mxu0 %v4781
        %4815 = vmatpush.msra.mxu0 %v4780
        %4816 = vmatmul.f32.gmra.mxu0 %v4779
        %v4817 = vpop.f32.mrf.mxu0
        %v4818 = vadd.f32 %v4798, %v4817
        %4819 = vdwg.mxu0
        %4820 = vst [vmem:[%s380] sm:$0xff] %v4818
        %s4821 = sand.u32 %s269, 1
        %s4822 = scalar_lea.sflag [#allocation8], %s4821
        %s4823 = sand.u32 %s269, 1
        %s4824 = smul.addr %s4823, 8
        %s4825 = scalar_lea.vmem [#allocation7], %s4824
        // Predicated region
        $region69: #{net_forward.1} parent=63 // pred_check
          %p4826 = pneg %p279
        $region70: #{net_forward.1} parent=63 // pred_check_branch
          %4828 = sbr.rel (%p4826) target = $region72
        $region71: #{net_forward.1} parent=63 // pred_region
          %4830 = vsyncadd %s4822, 0
          %s4831 = smul.addr %s25, 8
          %s4832 = scalar_lea.hbm %s11, %s4831
          %s4834 = sshll.u32 %s4825, 4
          %s4835 = int_to_ptr.vmem [resolvable:$true] %s4834
          %s4836 = sshll.u32 %s4832, 4
          %s4837 = int_to_ptr.hbm [resolvable:$true] %s4836
          %4839 = dma.vmem_to_hbm [thread:$0]  %s4835, 128, %s4837, %s4822
        $region72: #{net_forward.1} parent=63 // pred_fallthru
          _
      $region64: #{net_forward.1} parent=5 // pred_fallthru
        _
      %p4840 = scmp.le.s32.totalorder 2, %s20
      // Predicated region
      $region73: #{net_forward.1} parent=5 // pred_check
        %p4841 = pneg %p4840
      $region74: #{net_forward.1} parent=5 // pred_check_branch
        %4843 = sbr.rel (%p4841) target = $region76
      $region75: #{net_forward.1} parent=5 // pred_region
        %s4844 = ssub.s32 %s20, 2
        // Predicated region
        $region77: #{net_forward.1} parent=75 // pred_check
          %p4845 = pneg %p285
        $region78: #{net_forward.1} parent=75 // pred_check_branch
          %4847 = sbr.rel (%p4845) target = $region80
        $region79: #{net_forward.1} parent=75 // pred_region
          %s4848 = sand.u32 %s270, 1
          %s4849 = scalar_lea.sflag [#allocation8], %s4848
          %s4850 = sand.u32 %s270, 1
          %s4851 = smul.addr %s4850, 8
          %s4852 = scalar_lea.vmem [#allocation7], %s4851
          %4854 = dma.done %s4849, 128
        $region80: #{net_forward.1} parent=75 // pred_fallthru
          _
      $region76: #{net_forward.1} parent=5 // pred_fallthru
        _
    $region6: #{net_forward.1} parent=1 // loop_footer
      %s24 = sadd.s32 1, %s20
    $region7: #{net_forward.1} parent=1 // loop_footer_branch
      %19 = sbr.rel target = $region3
    $region8: #{net_forward.1} parent=1 // loop_exit
      _
    %4855 = vsyncpa [#allocation8], 1
    %s4856 = scalar_lea.sflag [#allocation8], 1
    %4857 = vsyncpa %s4856, 1

</llo_original>
